<compile_context>
chip_gen: v5e
topology: v5e:2x2
jax: 0.10.0
libtpu: 0.0.40
codegen_flags: <defaults>
</compile_context>

<pallas_src>
import math

import jax
import jax.numpy as jnp
from jax.experimental import pallas as pl
from jax.experimental.pallas import tpu as pltpu

_LANE = 128  # decoder tail padded to one full lane group


def _sigmoid(x):
    # Exact exp + divide. (The EUP approx-reciprocal variant is a micro-opt on a
    # tiny (Bt, 4H) tensor; the exact form is kept for bit-accuracy and because it
    # is known to lower cleanly on every TPU generation.)
    return 1.0 / (1.0 + jnp.exp(-x))


def _vln_forward_kernel(
    # per-tile activations (batch-blocked)
    direction_ref,    # (Bt, 2)   f32   [sin, cos]
    lang_ref,         # (Bt, S, H)      language features (attention context)
    h0_ref,           # (Bt, H)
    c0_ref,           # (Bt, H)
    # weights (full arrays, resident; matmul weights streamed in bf16)
    w_dir_ref,        # (2, E)    f32   direction_embedding.weight^T
    b_dir_ref,        # (1, E)    f32
    w_ih_ref,         # (E, 4H)   bf16  LSTMCell weight_ih^T  (gate order i, f, g, o)
    w_hh_ref,         # (H, 4H)   bf16  LSTMCell weight_hh^T
    b_gates_ref,      # (1, 4H)   f32   bias_ih + bias_hh
    w_attn_in_ref,    # (H, H)    bf16  SoftDotAttention.linear_in.weight^T
    w_attn_out_ref,   # (2H, H)   bf16  linear_out.weight^T (rows 0:H ctx, H:2H h)
    w_d1_ref, b_d1_ref,   # (H, 256) bf16, (1, 256) f32
    w_d2_ref, b_d2_ref,   # (256, 128) bf16 zero-padded 32->128, (1, 128) f32
    w_d3_ref, b_d3_ref,   # (128, 128) bf16 zero-padded,          (1, 128) f32
    # outputs (batch-blocked)
    h1_ref,           # (Bt, H)
    c1_ref,           # (Bt, H)
    act_ref,          # (Bt, 128)  columns 4: are zero; wrapper slices them off
):
    f32 = jnp.float32
    cdt = w_ih_ref.dtype                      # matmul streaming dtype (bf16)
    hidden = h0_ref.shape[-1]

    # --- direction embedding: Linear(2, E).  K=2 is far too small for the MXU, so
    # use the (batched) broadcast form. -------------------------------------------
    d = direction_ref[...].astype(f32)                                   # (Bt, 2)
    wd = w_dir_ref[...]                                                  # (2, E)
    dir_emb = d[:, 0:1] * wd[0:1, :] + d[:, 1:2] * wd[1:2, :] + b_dir_ref[...]  # (Bt, E)

    # --- LSTMCell (torch.nn.LSTMCell equations / gate order) over the whole tile --
    h0 = h0_ref[...].astype(f32)                                         # (Bt, H)
    c0 = c0_ref[...].astype(f32)                                         # (Bt, H)
    gates = (jnp.dot(dir_emb.astype(cdt), w_ih_ref[...], preferred_element_type=f32)
             + jnp.dot(h0.astype(cdt), w_hh_ref[...], preferred_element_type=f32)
             + b_gates_ref[...])                                         # (Bt, 4H) f32
    i_g = _sigmoid(gates[:, 0 * hidden:1 * hidden])
    f_g = _sigmoid(gates[:, 1 * hidden:2 * hidden])
    g_g = jnp.tanh(gates[:, 2 * hidden:3 * hidden])
    o_g = _sigmoid(gates[:, 3 * hidden:4 * hidden])
    c1 = f_g * c0 + i_g * g_g                                            # (Bt, H)
    h1 = o_g * jnp.tanh(c1)                                              # (Bt, H)

    # --- SoftDotAttention (mask=None path), batched on the MXU --------------------
    ctx = lang_ref[...].astype(cdt)                                      # (Bt, S, H)
    h1c = h1.astype(cdt)
    target = jnp.dot(h1c, w_attn_in_ref[...], preferred_element_type=f32)  # (Bt, H)
    # flash-attention style batched contraction with a q-dim of 1 (lane-dense S).
    logits = jnp.einsum("bqd,bkd->bqk", target[:, None, :].astype(cdt), ctx,
                        preferred_element_type=f32)[:, 0, :]             # (Bt, S)
    m = jnp.max(logits, axis=-1, keepdims=True)                          # (Bt, 1)
    e = jnp.exp(logits - m)                                              # (Bt, S)
    attn = e / jnp.sum(e, axis=-1, keepdims=True)                        # softmax over seq
    wctx = jnp.einsum("bqk,bkd->bqd", attn[:, None, :].astype(cdt), ctx,
                      preferred_element_type=f32)[:, 0, :]               # (Bt, H)
    lang_emb = jnp.tanh(
        jnp.dot(wctx.astype(cdt), w_attn_out_ref[0:hidden, :], preferred_element_type=f32)
        + jnp.dot(h1c, w_attn_out_ref[hidden:2 * hidden, :],
                  preferred_element_type=f32))                           # (Bt, H)

    # --- decoder_2_action_full (inference mode: Dropout == identity), lane-dense --
    # TODO(synk): training-mode dropout would need the TPU PRNG (pltpu.prng_*);
    # eval-mode semantics are exact here.
    t = jnp.maximum(
        jnp.dot(lang_emb.astype(cdt), w_d1_ref[...], preferred_element_type=f32)
        + b_d1_ref[...], 0.0)                                            # (Bt, 256)
    t = jnp.maximum(
        jnp.dot(t.astype(cdt), w_d2_ref[...], preferred_element_type=f32)
        + b_d2_ref[...], 0.0)                                            # (Bt, 128) padded
    act = (jnp.dot(t.astype(cdt), w_d3_ref[...], preferred_element_type=f32)
           + b_d3_ref[...])                                              # (Bt, 128) padded

    h1_ref[...] = h1.astype(h1_ref.dtype)
    c1_ref[...] = c1.astype(c1_ref.dtype)
    act_ref[...] = act.astype(act_ref.dtype)


def _pad_last(x, n):
    pad = n - x.shape[-1]
    return x if pad <= 0 else jnp.pad(x, [(0, 0)] * (x.ndim - 1) + [(0, pad)])


def _pad_first(x, n):
    pad = n - x.shape[0]
    return x if pad <= 0 else jnp.pad(x, [(0, pad)] + [(0, 0)] * (x.ndim - 1))


def _pick_batch_tile(batch):
    """Whole batch if small; otherwise big sublane-aligned tiles that divide B."""
    if batch <= 256:
        return batch
    for t in (256, 128, 64, 32, 16, 8):
        if batch % t == 0:
            return t
    return batch


def vit_lstm_lang_only_forward(params, current_direct, pos_input, lang_feature,
                               h_0=None, c_0=None, *, weight_dtype=jnp.bfloat16):
    """Pallas forward of ViT_LSTM_lang_only. Returns (h_1, c_1, action_logits)."""
    del pos_input  # present in the PyTorch signature but never used by its forward
    B = current_direct.shape[0]
    _, S, H = lang_feature.shape
    dtype = lang_feature.dtype

    # (B, 1) trig prep is trivial glue; done outside the kernel.
    rad = current_direct / 180.0 * 3.14159            # matches the PyTorch expression
    direction = jnp.concatenate([jnp.sin(rad), jnp.cos(rad)], axis=1).astype(jnp.float32)

    if h_0 is None or c_0 is None:                    # torch.nn.LSTMCell default state
        h_0 = jnp.zeros((B, H), dtype)
        c_0 = jnp.zeros((B, H), dtype)

    wdt = weight_dtype
    # bf16 weight streaming (halves HBM->VMEM bytes); biases stay f32.
    w_ih = params["w_ih"].astype(wdt)
    w_hh = params["w_hh"].astype(wdt)
    w_attn_in = params["w_attn_in"].astype(wdt)
    w_attn_out = params["w_attn_out"].astype(wdt)
    w_d1 = params["w_d1"].astype(wdt)
    # Lane-dense decoder tail: zero-pad the 32- and 4-wide layers out to 128 lanes.
    w_d2 = _pad_last(params["w_d2"], _LANE).astype(wdt)
    b_d2 = _pad_last(params["b_d2"], _LANE)
    w_d3 = _pad_last(_pad_first(params["w_d3"], _LANE), _LANE).astype(wdt)
    b_d3 = _pad_last(params["b_d3"], _LANE)

    weights = (params["w_dir"], params["b_dir"],
               w_ih, w_hh, params["b_gates"],
               w_attn_in, w_attn_out,
               w_d1, params["b_d1"],
               w_d2, b_d2,
               w_d3, b_d3)

    Bt = _pick_batch_tile(B)
    grid = (B // Bt,)

    batch2 = lambda b: (b, 0)
    batch3 = lambda b: (b, 0, 0)
    const2 = lambda b: (0, 0)

    in_specs = [
        pl.BlockSpec((Bt, 2), batch2),        # direction
        pl.BlockSpec((Bt, S, H), batch3),     # lang_feature (batch-blocked)
        pl.BlockSpec((Bt, H), batch2),        # h_0
        pl.BlockSpec((Bt, H), batch2),        # c_0
    ] + [pl.BlockSpec(w.shape, const2) for w in weights]

    out_specs = [
        pl.BlockSpec((Bt, H), batch2),
        pl.BlockSpec((Bt, H), batch2),
        pl.BlockSpec((Bt, _LANE), batch2),
    ]
    out_shape = [
        jax.ShapeDtypeStruct((B, H), dtype),
        jax.ShapeDtypeStruct((B, H), dtype),
        jax.ShapeDtypeStruct((B, _LANE), dtype),
    ]

    # VMEM budget: weights (x2 buffering slack) + double-buffered per-tile
    # activations/outputs + fixed headroom.  Floor at the scoped default, cap well
    # under v7x's 64 MiB physical VMEM.
    def nbytes(x):
        return int(x.size) * jnp.dtype(x.dtype).itemsize
    itemsize = jnp.dtype(dtype).itemsize
    w_bytes = sum(nbytes(w) for w in weights)
    tile_bytes = (Bt * 2 * 4                      # direction
                  + Bt * S * H * itemsize         # lang tile
                  + 2 * Bt * H * itemsize         # h_0, c_0
                  + (2 * Bt * H + Bt * _LANE) * itemsize)   # outputs
    vmem_limit = int(min(48 * 2**20,
                         max(16 * 2**20, 2 * w_bytes + 2 * tile_bytes + 4 * 2**20)))

    h_1, c_1, act = pl.pallas_call(
        _vln_forward_kernel,
        grid=grid,
        in_specs=in_specs,
        out_specs=out_specs,
        out_shape=out_shape,
        compiler_params=pltpu.CompilerParams(
            # Batch tiles are independent -> "parallel" lets v7x spread them over
            # its 2 TensorCores; single-TC v5e/v6e just runs the (short) loop.
            dimension_semantics=("parallel",),
            vmem_limit_bytes=vmem_limit,
        ),
    )(direction, lang_feature, h_0, c_0, *weights)

    return h_1, c_1, act[:, :4]


# ----------------------------------------------------------------------------------
# Deterministic parameter construction (PyTorch layouts, pre-transposed to (in, out))
# ----------------------------------------------------------------------------------
def init_params(key, hidden, emb, dtype=jnp.float32):
    ks = jax.random.split(key, 14)

    def lin(k, fan_in, fan_out):        # == torch Linear weight.T
        s = 1.0 / math.sqrt(fan_in)
        return jax.random.uniform(k, (fan_in, fan_out), dtype, -s, s)

    def vec(k, fan_in, fan_out):        # bias, kept 2-D (1, out) for the kernel
        s = 1.0 / math.sqrt(fan_in)
        return jax.random.uniform(k, (1, fan_out), dtype, -s, s)

    return {
        "w_dir": lin(ks[0], 2, emb), "b_dir": vec(ks[1], 2, emb),
        "w_ih": lin(ks[2], emb, 4 * hidden), "w_hh": lin(ks[3], hidden, 4 * hidden),
        "b_gates": vec(ks[4], hidden, 4 * hidden) + vec(ks[5], hidden, 4 * hidden),
        "w_attn_in": lin(ks[6], hidden, hidden),
        "w_attn_out": lin(ks[7], 2 * hidden, hidden),
        "w_d1": lin(ks[8], hidden, 256), "b_d1": vec(ks[9], hidden, 256),
        "w_d2": lin(ks[10], 256, 32), "b_d2": vec(ks[11], 256, 32),
        "w_d3": lin(ks[12], 32, 4), "b_d3": vec(ks[13], 32, 4),
    }


def reference_forward(params, current_direct, lang_feature, h_0, c_0):
    """Pure-jnp transcription of the PyTorch forward (eval mode), for checking."""
    H = lang_feature.shape[-1]
    rad = current_direct / 180.0 * 3.14159
    direction = jnp.concatenate([jnp.sin(rad), jnp.cos(rad)], axis=1)
    dir_emb = direction @ params["w_dir"] + params["b_dir"]
    gates = dir_emb @ params["w_ih"] + h_0 @ params["w_hh"] + params["b_gates"]
    i = jax.nn.sigmoid(gates[:, 0 * H:1 * H])
    f = jax.nn.sigmoid(gates[:, 1 * H:2 * H])
    g = jnp.tanh(gates[:, 2 * H:3 * H])
    o = jax.nn.sigmoid(gates[:, 3 * H:4 * H])
    c_1 = f * c_0 + i * g
    h_1 = o * jnp.tanh(c_1)
    target = h_1 @ params["w_attn_in"]
    logits = jnp.einsum("bsd,bd->bs", lang_feature, target)
    attn = jax.nn.softmax(logits, axis=1)
    wctx = jnp.einsum("bs,bsd->bd", attn, lang_feature)
    lang_emb = jnp.tanh(jnp.concatenate([wctx, h_1], axis=1) @ params["w_attn_out"])
    t = jax.nn.relu(lang_emb @ params["w_d1"] + params["b_d1"])
    t = jax.nn.relu(t @ params["w_d2"] + params["b_d2"])
    action = t @ params["w_d3"] + params["b_d3"]
    return h_1, c_1, action


if __name__ == "__main__":
    # Small shapes consistent with the module: batch=2, seq=8, embedding_size=32,
    # hidden_size=256 (constructor arg; kept small and 128-lane aligned for the demo).
    B, S, HIDDEN, EMB = 2, 8, 256, 32

    root = jax.random.PRNGKey(0)
    k_params, k_dir, k_pos, k_lang = jax.random.split(root, 4)
    params = init_params(k_params, HIDDEN, EMB)

    current_direct = jax.random.uniform(k_dir, (B, 1), jnp.float32, 0.0, 360.0)
    pos_input = jax.random.uniform(k_pos, (B, 2), jnp.float32)   # unused by forward
    lang_feature = 0.5 * jax.random.normal(k_lang, (B, S, HIDDEN), jnp.float32)

    # Path 1: default (zero) LSTM state; Path 2: user-provided (h_0, c_0).
    h1, c1, action = vit_lstm_lang_only_forward(
        params, current_direct, pos_input, lang_feature)
    h2, c2, action2 = vit_lstm_lang_only_forward(
        params, current_direct, pos_input, lang_feature, h_0=h1, c_0=c1)
    jax.block_until_ready((h1, c1, action, h2, c2, action2))

    assert h1.shape == (B, HIDDEN) and c1.shape == (B, HIDDEN) and action.shape == (B, 4)
    assert h2.shape == (B, HIDDEN) and c2.shape == (B, HIDDEN) and action2.shape == (B, 4)

    # Reference uses the SAME bf16-quantized matmul weights, so the tolerance only has
    # to absorb in-kernel bf16 activation quantization / MXU rounding, not weight quant.
    q = lambda w: w.astype(jnp.bfloat16).astype(jnp.float32)
    params_q = dict(params)
    for k in ("w_ih", "w_hh", "w_attn_in", "w_attn_out", "w_d1", "w_d2", "w_d3"):
        params_q[k] = q(params[k])

    with jax.default_matmul_precision("float32"):
        zeros = jnp.zeros((B, HIDDEN), jnp.float32)
        r_h1, r_c1, r_a1 = reference_forward(params_q, current_direct, lang_feature, zeros, zeros)
        r_h2, r_c2, r_a2 = reference_forward(params_q, current_direct, lang_feature, r_h1, r_c1)

    checks = ((h1, r_h1, "h_1"), (c1, r_c1, "c_1"), (action, r_a1, "output"),
              (h2, r_h2, "h_1 (step2)"), (c2, r_c2, "c_1 (step2)"),
              (action2, r_a2, "output (step2)"))
    for got, want, name in checks:
        err = float(jnp.max(jnp.abs(got - want)))
        assert err < 1e-2, f"{name} mismatch vs reference: max |diff| = {err}"

    print("KERNEL_OK")
</pallas_src>

<mosaic_0001>
module attributes {stable_mosaic.version = 11 : i64} {
  func.func @_vln_forward_kernel(%arg0: i32, %arg1: memref<2x2xf32, #tpu.memory_space<vmem>>, %arg2: memref<2x8x256xf32, #tpu.memory_space<vmem>>, %arg3: memref<2x256xf32, #tpu.memory_space<vmem>>, %arg4: memref<2x256xf32, #tpu.memory_space<vmem>>, %arg5: memref<2x32xf32, #tpu.memory_space<vmem>>, %arg6: memref<1x32xf32, #tpu.memory_space<vmem>>, %arg7: memref<32x1024xbf16, #tpu.memory_space<vmem>>, %arg8: memref<256x1024xbf16, #tpu.memory_space<vmem>>, %arg9: memref<1x1024xf32, #tpu.memory_space<vmem>>, %arg10: memref<256x256xbf16, #tpu.memory_space<vmem>>, %arg11: memref<512x256xbf16, #tpu.memory_space<vmem>>, %arg12: memref<256x256xbf16, #tpu.memory_space<vmem>>, %arg13: memref<1x256xf32, #tpu.memory_space<vmem>>, %arg14: memref<256x128xbf16, #tpu.memory_space<vmem>>, %arg15: memref<1x128xf32, #tpu.memory_space<vmem>>, %arg16: memref<128x128xbf16, #tpu.memory_space<vmem>>, %arg17: memref<1x128xf32, #tpu.memory_space<vmem>>, %arg18: memref<2x256xf32, #tpu.memory_space<vmem>>, %arg19: memref<2x256xf32, #tpu.memory_space<vmem>>, %arg20: memref<2x128xf32, #tpu.memory_space<vmem>>) attributes {dimension_semantics = [#tpu.dimension_semantics<parallel>], iteration_bounds = array<i64: 1>, scalar_prefetch = 0 : i64, scratch_operands = 0 : i64, tpu.core_type = #tpu.core_type<tc>, window_params = [{transform_indices = @transform_0, window_bounds = array<i64: 2, 2>}, {transform_indices = @transform_1, window_bounds = array<i64: 2, 8, 256>}, {transform_indices = @transform_2, window_bounds = array<i64: 2, 256>}, {transform_indices = @transform_3, window_bounds = array<i64: 2, 256>}, {pipeline_mode = #tpu.pipeline_mode<synchronous>, transform_indices = @transform_4, window_bounds = array<i64: 2, 32>}, {pipeline_mode = #tpu.pipeline_mode<synchronous>, transform_indices = @transform_5, window_bounds = array<i64: 1, 32>}, {pipeline_mode = #tpu.pipeline_mode<synchronous>, transform_indices = @transform_6, window_bounds = array<i64: 32, 1024>}, {pipeline_mode = #tpu.pipeline_mode<synchronous>, transform_indices = @transform_7, window_bounds = array<i64: 256, 1024>}, {pipeline_mode = #tpu.pipeline_mode<synchronous>, transform_indices = @transform_8, window_bounds = array<i64: 1, 1024>}, {pipeline_mode = #tpu.pipeline_mode<synchronous>, transform_indices = @transform_9, window_bounds = array<i64: 256, 256>}, {pipeline_mode = #tpu.pipeline_mode<synchronous>, transform_indices = @transform_10, window_bounds = array<i64: 512, 256>}, {pipeline_mode = #tpu.pipeline_mode<synchronous>, transform_indices = @transform_11, window_bounds = array<i64: 256, 256>}, {pipeline_mode = #tpu.pipeline_mode<synchronous>, transform_indices = @transform_12, window_bounds = array<i64: 1, 256>}, {pipeline_mode = #tpu.pipeline_mode<synchronous>, transform_indices = @transform_13, window_bounds = array<i64: 256, 128>}, {pipeline_mode = #tpu.pipeline_mode<synchronous>, transform_indices = @transform_14, window_bounds = array<i64: 1, 128>}, {pipeline_mode = #tpu.pipeline_mode<synchronous>, transform_indices = @transform_15, window_bounds = array<i64: 128, 128>}, {pipeline_mode = #tpu.pipeline_mode<synchronous>, transform_indices = @transform_16, window_bounds = array<i64: 1, 128>}, {transform_indices = @transform_17, window_bounds = array<i64: 2, 256>}, {transform_indices = @transform_18, window_bounds = array<i64: 2, 256>}, {transform_indices = @transform_19, window_bounds = array<i64: 2, 128>}]} {
    %c0 = arith.constant 0 : index
    %c0_0 = arith.constant 0 : index
    %0 = vector.load %arg1[%c0, %c0_0] : memref<2x2xf32, #tpu.memory_space<vmem>>, vector<2x2xf32>
    %c0_1 = arith.constant 0 : index
    %c0_2 = arith.constant 0 : index
    %1 = vector.load %arg5[%c0_1, %c0_2] : memref<2x32xf32, #tpu.memory_space<vmem>>, vector<2x32xf32>
    %2 = vector.extract_strided_slice %0 {offsets = [0, 0], sizes = [2, 1], strides = [1, 1]} : vector<2x2xf32> to vector<2x1xf32>
    %3 = vector.extract_strided_slice %1 {offsets = [0, 0], sizes = [1, 32], strides = [1, 1]} : vector<2x32xf32> to vector<1x32xf32>
    %4 = vector.broadcast %2 : vector<2x1xf32> to vector<2x32xf32>
    %5 = vector.broadcast %3 : vector<1x32xf32> to vector<2x32xf32>
    %6 = arith.mulf %4, %5 : vector<2x32xf32>
    %7 = vector.extract_strided_slice %0 {offsets = [0, 1], sizes = [2, 1], strides = [1, 1]} : vector<2x2xf32> to vector<2x1xf32>
    %8 = vector.extract_strided_slice %1 {offsets = [1, 0], sizes = [1, 32], strides = [1, 1]} : vector<2x32xf32> to vector<1x32xf32>
    %9 = vector.broadcast %7 : vector<2x1xf32> to vector<2x32xf32>
    %10 = vector.broadcast %8 : vector<1x32xf32> to vector<2x32xf32>
    %11 = arith.mulf %9, %10 : vector<2x32xf32>
    %12 = arith.addf %6, %11 : vector<2x32xf32>
    %c0_3 = arith.constant 0 : index
    %c0_4 = arith.constant 0 : index
    %13 = vector.load %arg6[%c0_3, %c0_4] : memref<1x32xf32, #tpu.memory_space<vmem>>, vector<1x32xf32>
    %14 = vector.broadcast %13 : vector<1x32xf32> to vector<2x32xf32>
    %15 = arith.addf %12, %14 : vector<2x32xf32>
    %c0_5 = arith.constant 0 : index
    %c0_6 = arith.constant 0 : index
    %16 = vector.load %arg3[%c0_5, %c0_6] : memref<2x256xf32, #tpu.memory_space<vmem>>, vector<2x256xf32>
    %c0_7 = arith.constant 0 : index
    %c0_8 = arith.constant 0 : index
    %17 = vector.load %arg4[%c0_7, %c0_8] : memref<2x256xf32, #tpu.memory_space<vmem>>, vector<2x256xf32>
    %18 = arith.truncf %15 : vector<2x32xf32> to vector<2x32xbf16>
    %c0_9 = arith.constant 0 : index
    %c0_10 = arith.constant 0 : index
    %19 = vector.load %arg7[%c0_9, %c0_10] : memref<32x1024xbf16, #tpu.memory_space<vmem>>, vector<32x1024xbf16>
    %cst = arith.constant dense<0.000000e+00> : vector<2x1024xf32>
    %20 = tpu.matmul %18, %19, %cst {dimension_numbers = #tpu.dot_dimension_numbers<[1], [0], [0], [1], [0, 0, 1, 1], [], []>} : vector<2x32xbf16>, vector<32x1024xbf16>, vector<2x1024xf32> -> vector<2x1024xf32>
    %21 = arith.truncf %16 : vector<2x256xf32> to vector<2x256xbf16>
    %c0_11 = arith.constant 0 : index
    %c0_12 = arith.constant 0 : index
    %22 = vector.load %arg8[%c0_11, %c0_12] : memref<256x1024xbf16, #tpu.memory_space<vmem>>, vector<256x1024xbf16>
    %cst_13 = arith.constant dense<0.000000e+00> : vector<2x1024xf32>
    %23 = tpu.matmul %21, %22, %cst_13 {dimension_numbers = #tpu.dot_dimension_numbers<[1], [0], [0], [1], [0, 0, 1, 1], [], []>} : vector<2x256xbf16>, vector<256x1024xbf16>, vector<2x1024xf32> -> vector<2x1024xf32>
    %24 = arith.addf %20, %23 : vector<2x1024xf32>
    %c0_14 = arith.constant 0 : index
    %c0_15 = arith.constant 0 : index
    %25 = vector.load %arg9[%c0_14, %c0_15] : memref<1x1024xf32, #tpu.memory_space<vmem>>, vector<1x1024xf32>
    %26 = vector.broadcast %25 : vector<1x1024xf32> to vector<2x1024xf32>
    %27 = arith.addf %24, %26 : vector<2x1024xf32>
    %28 = vector.extract_strided_slice %27 {offsets = [0, 0], sizes = [2, 256], strides = [1, 1]} : vector<2x1024xf32> to vector<2x256xf32>
    %cst_16 = arith.constant 0.000000e+00 : f32
    %29 = vector.broadcast %cst_16 : f32 to vector<2x256xf32>
    %30 = arith.subf %29, %28 : vector<2x256xf32>
    %31 = math.exp %30 : vector<2x256xf32>
    %cst_17 = arith.constant 1.000000e+00 : f32
    %32 = vector.broadcast %cst_17 : f32 to vector<2x256xf32>
    %33 = arith.addf %32, %31 : vector<2x256xf32>
    %cst_18 = arith.constant 1.000000e+00 : f32
    %34 = vector.broadcast %cst_18 : f32 to vector<2x256xf32>
    %35 = arith.divf %34, %33 : vector<2x256xf32>
    %36 = vector.extract_strided_slice %27 {offsets = [0, 256], sizes = [2, 256], strides = [1, 1]} : vector<2x1024xf32> to vector<2x256xf32>
    %cst_19 = arith.constant 0.000000e+00 : f32
    %37 = vector.broadcast %cst_19 : f32 to vector<2x256xf32>
    %38 = arith.subf %37, %36 : vector<2x256xf32>
    %39 = math.exp %38 : vector<2x256xf32>
    %cst_20 = arith.constant 1.000000e+00 : f32
    %40 = vector.broadcast %cst_20 : f32 to vector<2x256xf32>
    %41 = arith.addf %40, %39 : vector<2x256xf32>
    %cst_21 = arith.constant 1.000000e+00 : f32
    %42 = vector.broadcast %cst_21 : f32 to vector<2x256xf32>
    %43 = arith.divf %42, %41 : vector<2x256xf32>
    %44 = vector.extract_strided_slice %27 {offsets = [0, 512], sizes = [2, 256], strides = [1, 1]} : vector<2x1024xf32> to vector<2x256xf32>
    %45 = math.tanh %44 : vector<2x256xf32>
    %46 = vector.extract_strided_slice %27 {offsets = [0, 768], sizes = [2, 256], strides = [1, 1]} : vector<2x1024xf32> to vector<2x256xf32>
    %cst_22 = arith.constant 0.000000e+00 : f32
    %47 = vector.broadcast %cst_22 : f32 to vector<2x256xf32>
    %48 = arith.subf %47, %46 : vector<2x256xf32>
    %49 = math.exp %48 : vector<2x256xf32>
    %cst_23 = arith.constant 1.000000e+00 : f32
    %50 = vector.broadcast %cst_23 : f32 to vector<2x256xf32>
    %51 = arith.addf %50, %49 : vector<2x256xf32>
    %cst_24 = arith.constant 1.000000e+00 : f32
    %52 = vector.broadcast %cst_24 : f32 to vector<2x256xf32>
    %53 = arith.divf %52, %51 : vector<2x256xf32>
    %54 = arith.mulf %43, %17 : vector<2x256xf32>
    %55 = arith.mulf %35, %45 : vector<2x256xf32>
    %56 = arith.addf %54, %55 : vector<2x256xf32>
    %57 = math.tanh %56 : vector<2x256xf32>
    %58 = arith.mulf %53, %57 : vector<2x256xf32>
    %c0_25 = arith.constant 0 : index
    %c0_26 = arith.constant 0 : index
    %c0_27 = arith.constant 0 : index
    %59 = vector.load %arg2[%c0_25, %c0_26, %c0_27] : memref<2x8x256xf32, #tpu.memory_space<vmem>>, vector<2x8x256xf32>
    %60 = arith.truncf %59 : vector<2x8x256xf32> to vector<2x8x256xbf16>
    %61 = arith.truncf %58 : vector<2x256xf32> to vector<2x256xbf16>
    %c0_28 = arith.constant 0 : index
    %c0_29 = arith.constant 0 : index
    %62 = vector.load %arg10[%c0_28, %c0_29] : memref<256x256xbf16, #tpu.memory_space<vmem>>, vector<256x256xbf16>
    %cst_30 = arith.constant dense<0.000000e+00> : vector<2x256xf32>
    %63 = tpu.matmul %61, %62, %cst_30 {dimension_numbers = #tpu.dot_dimension_numbers<[1], [0], [0], [1], [0, 0, 1, 1], [], []>} : vector<2x256xbf16>, vector<256x256xbf16>, vector<2x256xf32> -> vector<2x256xf32>
    %64 = vector.shape_cast %63 : vector<2x256xf32> to vector<2x1x256xf32>
    %65 = arith.truncf %64 : vector<2x1x256xf32> to vector<2x1x256xbf16>
    "tpu.trace_start"() <{level = 10 : i32, message = "bqd,bkd->bqk"}> : () -> ()
    %cst_31 = arith.constant dense<0.000000e+00> : vector<2x1x8xf32>
    %66 = tpu.matmul %65, %60, %cst_31 {dimension_numbers = #tpu.dot_dimension_numbers<[2], [2], [1], [1], [0, 0, 0, 1, 1, 1], [0], [0]>} : vector<2x1x256xbf16>, vector<2x8x256xbf16>, vector<2x1x8xf32> -> vector<2x1x8xf32>
    "tpu.trace_stop"() : () -> ()
    %67 = vector.shape_cast %66 : vector<2x1x8xf32> to vector<2x8xf32>
    %cst_32 = arith.constant dense<0xFF800000> : vector<2xf32>
    %68 = vector.multi_reduction <maximumf>, %67, %cst_32 [1] : vector<2x8xf32> to vector<2xf32>
    %69 = vector.shape_cast %68 : vector<2xf32> to vector<2x1xf32>
    %70 = vector.broadcast %69 : vector<2x1xf32> to vector<2x8xf32>
    %71 = arith.subf %67, %70 : vector<2x8xf32>
    %72 = math.exp %71 : vector<2x8xf32>
    %cst_33 = arith.constant dense<0.000000e+00> : vector<2xf32>
    %73 = vector.multi_reduction <add>, %72, %cst_33 [1] : vector<2x8xf32> to vector<2xf32>
    %74 = vector.shape_cast %73 : vector<2xf32> to vector<2x1xf32>
    %75 = vector.broadcast %74 : vector<2x1xf32> to vector<2x8xf32>
    %76 = arith.divf %72, %75 : vector<2x8xf32>
    %77 = vector.shape_cast %76 : vector<2x8xf32> to vector<2x1x8xf32>
    %78 = arith.truncf %77 : vector<2x1x8xf32> to vector<2x1x8xbf16>
    "tpu.trace_start"() <{level = 10 : i32, message = "bqk,bkd->bqd"}> : () -> ()
    %cst_34 = arith.constant dense<0.000000e+00> : vector<2x1x256xf32>
    %79 = tpu.matmul %78, %60, %cst_34 {dimension_numbers = #tpu.dot_dimension_numbers<[2], [1], [1], [2], [0, 0, 0, 1, 1, 2], [0], [0]>} : vector<2x1x8xbf16>, vector<2x8x256xbf16>, vector<2x1x256xf32> -> vector<2x1x256xf32>
    "tpu.trace_stop"() : () -> ()
    %80 = vector.shape_cast %79 : vector<2x1x256xf32> to vector<2x256xf32>
    %81 = arith.truncf %80 : vector<2x256xf32> to vector<2x256xbf16>
    %c0_35 = arith.constant 0 : index
    %c0_36 = arith.constant 0 : index
    %82 = vector.load %arg11[%c0_35, %c0_36] : memref<512x256xbf16, #tpu.memory_space<vmem>>, vector<256x256xbf16>
    %cst_37 = arith.constant dense<0.000000e+00> : vector<2x256xf32>
    %83 = tpu.matmul %81, %82, %cst_37 {dimension_numbers = #tpu.dot_dimension_numbers<[1], [0], [0], [1], [0, 0, 1, 1], [], []>} : vector<2x256xbf16>, vector<256x256xbf16>, vector<2x256xf32> -> vector<2x256xf32>
    %c256 = arith.constant 256 : index
    %c0_38 = arith.constant 0 : index
    %84 = vector.load %arg11[%c256, %c0_38] : memref<512x256xbf16, #tpu.memory_space<vmem>>, vector<256x256xbf16>
    %cst_39 = arith.constant dense<0.000000e+00> : vector<2x256xf32>
    %85 = tpu.matmul %61, %84, %cst_39 {dimension_numbers = #tpu.dot_dimension_numbers<[1], [0], [0], [1], [0, 0, 1, 1], [], []>} : vector<2x256xbf16>, vector<256x256xbf16>, vector<2x256xf32> -> vector<2x256xf32>
    %86 = arith.addf %83, %85 : vector<2x256xf32>
    %87 = math.tanh %86 : vector<2x256xf32>
    %88 = arith.truncf %87 : vector<2x256xf32> to vector<2x256xbf16>
    %c0_40 = arith.constant 0 : index
    %c0_41 = arith.constant 0 : index
    %89 = vector.load %arg12[%c0_40, %c0_41] : memref<256x256xbf16, #tpu.memory_space<vmem>>, vector<256x256xbf16>
    %cst_42 = arith.constant dense<0.000000e+00> : vector<2x256xf32>
    %90 = tpu.matmul %88, %89, %cst_42 {dimension_numbers = #tpu.dot_dimension_numbers<[1], [0], [0], [1], [0, 0, 1, 1], [], []>} : vector<2x256xbf16>, vector<256x256xbf16>, vector<2x256xf32> -> vector<2x256xf32>
    %c0_43 = arith.constant 0 : index
    %c0_44 = arith.constant 0 : index
    %91 = vector.load %arg13[%c0_43, %c0_44] : memref<1x256xf32, #tpu.memory_space<vmem>>, vector<1x256xf32>
    %92 = vector.broadcast %91 : vector<1x256xf32> to vector<2x256xf32>
    %93 = arith.addf %90, %92 : vector<2x256xf32>
    %cst_45 = arith.constant 0.000000e+00 : f32
    %94 = vector.broadcast %cst_45 : f32 to vector<2x256xf32>
    %95 = arith.maximumf %93, %94 : vector<2x256xf32>
    %96 = arith.truncf %95 : vector<2x256xf32> to vector<2x256xbf16>
    %c0_46 = arith.constant 0 : index
    %c0_47 = arith.constant 0 : index
    %97 = vector.load %arg14[%c0_46, %c0_47] : memref<256x128xbf16, #tpu.memory_space<vmem>>, vector<256x128xbf16>
    %cst_48 = arith.constant dense<0.000000e+00> : vector<2x128xf32>
    %98 = tpu.matmul %96, %97, %cst_48 {dimension_numbers = #tpu.dot_dimension_numbers<[1], [0], [0], [1], [0, 0, 1, 1], [], []>} : vector<2x256xbf16>, vector<256x128xbf16>, vector<2x128xf32> -> vector<2x128xf32>
    %c0_49 = arith.constant 0 : index
    %c0_50 = arith.constant 0 : index
    %99 = vector.load %arg15[%c0_49, %c0_50] : memref<1x128xf32, #tpu.memory_space<vmem>>, vector<1x128xf32>
    %100 = vector.broadcast %99 : vector<1x128xf32> to vector<2x128xf32>
    %101 = arith.addf %98, %100 : vector<2x128xf32>
    %cst_51 = arith.constant 0.000000e+00 : f32
    %102 = vector.broadcast %cst_51 : f32 to vector<2x128xf32>
    %103 = arith.maximumf %101, %102 : vector<2x128xf32>
    %104 = arith.truncf %103 : vector<2x128xf32> to vector<2x128xbf16>
    %c0_52 = arith.constant 0 : index
    %c0_53 = arith.constant 0 : index
    %105 = vector.load %arg16[%c0_52, %c0_53] : memref<128x128xbf16, #tpu.memory_space<vmem>>, vector<128x128xbf16>
    %cst_54 = arith.constant dense<0.000000e+00> : vector<2x128xf32>
    %106 = tpu.matmul %104, %105, %cst_54 {dimension_numbers = #tpu.dot_dimension_numbers<[1], [0], [0], [1], [0, 0, 1, 1], [], []>} : vector<2x128xbf16>, vector<128x128xbf16>, vector<2x128xf32> -> vector<2x128xf32>
    %c0_55 = arith.constant 0 : index
    %c0_56 = arith.constant 0 : index
    %107 = vector.load %arg17[%c0_55, %c0_56] : memref<1x128xf32, #tpu.memory_space<vmem>>, vector<1x128xf32>
    %108 = vector.broadcast %107 : vector<1x128xf32> to vector<2x128xf32>
    %109 = arith.addf %106, %108 : vector<2x128xf32>
    %c0_57 = arith.constant 0 : index
    %c0_58 = arith.constant 0 : index
    %110 = vector.load %arg18[%c0_57, %c0_58] : memref<2x256xf32, #tpu.memory_space<vmem>>, vector<2x256xf32>
    tpu.vector_store %arg18[%c0_57, %c0_58], %58 {strides = array<i32>} : memref<2x256xf32, #tpu.memory_space<vmem>>, vector<2x256xf32>,
    %c0_59 = arith.constant 0 : index
    %c0_60 = arith.constant 0 : index
    %111 = vector.load %arg19[%c0_59, %c0_60] : memref<2x256xf32, #tpu.memory_space<vmem>>, vector<2x256xf32>
    tpu.vector_store %arg19[%c0_59, %c0_60], %56 {strides = array<i32>} : memref<2x256xf32, #tpu.memory_space<vmem>>, vector<2x256xf32>,
    %c0_61 = arith.constant 0 : index
    %c0_62 = arith.constant 0 : index
    %112 = vector.load %arg20[%c0_61, %c0_62] : memref<2x128xf32, #tpu.memory_space<vmem>>, vector<2x128xf32>
    tpu.vector_store %arg20[%c0_61, %c0_62], %109 {strides = array<i32>} : memref<2x128xf32, #tpu.memory_space<vmem>>, vector<2x128xf32>,
    return
  }
  func.func @transform_0(%arg0: i32) -> (i32, i32) {
    %c0_i32 = arith.constant 0 : i32
    %c0_i32_0 = arith.constant 0 : i32
    return %arg0, %c0_i32 : i32, i32
  }
  func.func @transform_1(%arg0: i32) -> (i32, i32, i32) {
    %c0_i32 = arith.constant 0 : i32
    %c0_i32_0 = arith.constant 0 : i32
    %c0_i32_1 = arith.constant 0 : i32
    return %arg0, %c0_i32, %c0_i32_0 : i32, i32, i32
  }
  func.func @transform_2(%arg0: i32) -> (i32, i32) {
    %c0_i32 = arith.constant 0 : i32
    %c0_i32_0 = arith.constant 0 : i32
    return %arg0, %c0_i32 : i32, i32
  }
  func.func @transform_3(%arg0: i32) -> (i32, i32) {
    %c0_i32 = arith.constant 0 : i32
    %c0_i32_0 = arith.constant 0 : i32
    return %arg0, %c0_i32 : i32, i32
  }
  func.func @transform_4(%arg0: i32) -> (i32, i32) {
    %c0_i32 = arith.constant 0 : i32
    %c0_i32_0 = arith.constant 0 : i32
    %c0_i32_1 = arith.constant 0 : i32
    return %c0_i32, %c0_i32_0 : i32, i32
  }
  func.func @transform_5(%arg0: i32) -> (i32, i32) {
    %c0_i32 = arith.constant 0 : i32
    %c0_i32_0 = arith.constant 0 : i32
    %c0_i32_1 = arith.constant 0 : i32
    return %c0_i32, %c0_i32_0 : i32, i32
  }
  func.func @transform_6(%arg0: i32) -> (i32, i32) {
    %c0_i32 = arith.constant 0 : i32
    %c0_i32_0 = arith.constant 0 : i32
    %c0_i32_1 = arith.constant 0 : i32
    return %c0_i32, %c0_i32_0 : i32, i32
  }
  func.func @transform_7(%arg0: i32) -> (i32, i32) {
    %c0_i32 = arith.constant 0 : i32
    %c0_i32_0 = arith.constant 0 : i32
    %c0_i32_1 = arith.constant 0 : i32
    return %c0_i32, %c0_i32_0 : i32, i32
  }
  func.func @transform_8(%arg0: i32) -> (i32, i32) {
    %c0_i32 = arith.constant 0 : i32
    %c0_i32_0 = arith.constant 0 : i32
    %c0_i32_1 = arith.constant 0 : i32
    return %c0_i32, %c0_i32_0 : i32, i32
  }
  func.func @transform_9(%arg0: i32) -> (i32, i32) {
    %c0_i32 = arith.constant 0 : i32
    %c0_i32_0 = arith.constant 0 : i32
    %c0_i32_1 = arith.constant 0 : i32
    return %c0_i32, %c0_i32_0 : i32, i32
  }
  func.func @transform_10(%arg0: i32) -> (i32, i32) {
    %c0_i32 = arith.constant 0 : i32
    %c0_i32_0 = arith.constant 0 : i32
    %c0_i32_1 = arith.constant 0 : i32
    return %c0_i32, %c0_i32_0 : i32, i32
  }
  func.func @transform_11(%arg0: i32) -> (i32, i32) {
    %c0_i32 = arith.constant 0 : i32
    %c0_i32_0 = arith.constant 0 : i32
    %c0_i32_1 = arith.constant 0 : i32
    return %c0_i32, %c0_i32_0 : i32, i32
  }
  func.func @transform_12(%arg0: i32) -> (i32, i32) {
    %c0_i32 = arith.constant 0 : i32
    %c0_i32_0 = arith.constant 0 : i32
    %c0_i32_1 = arith.constant 0 : i32
    return %c0_i32, %c0_i32_0 : i32, i32
  }
  func.func @transform_13(%arg0: i32) -> (i32, i32) {
    %c0_i32 = arith.constant 0 : i32
    %c0_i32_0 = arith.constant 0 : i32
    %c0_i32_1 = arith.constant 0 : i32
    return %c0_i32, %c0_i32_0 : i32, i32
  }
  func.func @transform_14(%arg0: i32) -> (i32, i32) {
    %c0_i32 = arith.constant 0 : i32
    %c0_i32_0 = arith.constant 0 : i32
    %c0_i32_1 = arith.constant 0 : i32
    return %c0_i32, %c0_i32_0 : i32, i32
  }
  func.func @transform_15(%arg0: i32) -> (i32, i32) {
    %c0_i32 = arith.constant 0 : i32
    %c0_i32_0 = arith.constant 0 : i32
    %c0_i32_1 = arith.constant 0 : i32
    return %c0_i32, %c0_i32_0 : i32, i32
  }
  func.func @transform_16(%arg0: i32) -> (i32, i32) {
    %c0_i32 = arith.constant 0 : i32
    %c0_i32_0 = arith.constant 0 : i32
    %c0_i32_1 = arith.constant 0 : i32
    return %c0_i32, %c0_i32_0 : i32, i32
  }
  func.func @transform_17(%arg0: i32) -> (i32, i32) {
    %c0_i32 = arith.constant 0 : i32
    %c0_i32_0 = arith.constant 0 : i32
    return %arg0, %c0_i32 : i32, i32
  }
  func.func @transform_18(%arg0: i32) -> (i32, i32) {
    %c0_i32 = arith.constant 0 : i32
    %c0_i32_0 = arith.constant 0 : i32
    return %arg0, %c0_i32 : i32, i32
  }
  func.func @transform_19(%arg0: i32) -> (i32, i32) {
    %c0_i32 = arith.constant 0 : i32
    %c0_i32_0 = arith.constant 0 : i32
    return %arg0, %c0_i32 : i32, i32
  }
}

</mosaic_0001>

<llo_original>
// kernel: tpu_custom_call.1
$region0: #{tpu_custom_call.1}
  #allocation0 [shape = 'u32[]', space=smem, size = 0x4, offset = 0x4, fixed_abs, tag = 'smem constant byte address 0x4 - core index']
  #allocation1 [shape = 'u32[72,128]{1,0:T(1,128)}', space=vmem, size = 0x9000, scoped, tag = 'internal scratch']
  %s0 = inlined_call_operand.hbm [shape: f32[2,2], index: 0, kind: input, shape index: {}]
  %s1 = inlined_call_operand.hbm [shape: f32[2,8,256], index: 1, kind: input, shape index: {}]
  %s2 = inlined_call_operand.hbm [shape: f32[2,256], index: 2, kind: input, shape index: {}]
  %s3 = inlined_call_operand.hbm [shape: f32[2,256], index: 3, kind: input, shape index: {}]
  %s4 = inlined_call_operand.vmem [shape: f32[2,32], index: 4, kind: input, shape index: {}]
  %s5 = inlined_call_operand.hbm [shape: f32[1,32], index: 5, kind: input, shape index: {}]
  %s6 = inlined_call_operand.hbm [shape: bf16[32,1024], index: 6, kind: input, shape index: {}]
  %s7 = inlined_call_operand.hbm [shape: bf16[256,1024], index: 7, kind: input, shape index: {}]
  %s8 = inlined_call_operand.hbm [shape: f32[1,1024], index: 8, kind: input, shape index: {}]
  %s9 = inlined_call_operand.hbm [shape: bf16[256,256], index: 9, kind: input, shape index: {}]
  %s10 = inlined_call_operand.hbm [shape: bf16[512,256], index: 10, kind: input, shape index: {}]
  %s11 = inlined_call_operand.hbm [shape: bf16[256,256], index: 11, kind: input, shape index: {}]
  %s12 = inlined_call_operand.vmem [shape: f32[1,256], index: 12, kind: input, shape index: {}]
  %s13 = inlined_call_operand.hbm [shape: bf16[256,128], index: 13, kind: input, shape index: {}]
  %s14 = inlined_call_operand.vmem [shape: f32[1,128], index: 14, kind: input, shape index: {}]
  %s15 = inlined_call_operand.hbm [shape: bf16[128,128], index: 15, kind: input, shape index: {}]
  %s16 = inlined_call_operand.vmem [shape: f32[1,128], index: 16, kind: input, shape index: {}]
  %s17 = inlined_call_operand.hbm [shape: f32[2,256], index: 17, kind: output, shape index: {0}]
  %s18 = inlined_call_operand.hbm [shape: f32[2,256], index: 18, kind: output, shape index: {1}]
  %s19 = inlined_call_operand.hbm [shape: f32[2,128], index: 19, kind: output, shape index: {2}]
  %20 = xla_tuple %s17, %s18, %s19
  %s21 = sld [smem:[#allocation0]]
  $region146: #{tpu_custom_call.1} parent=0
    _
  %s23 = ssub.s32 1, %s21
  %s24 = scalar_select 0, %s23, %s21
  $region1: #{tpu_custom_call.1} parent=0
    #allocation2 [shape = 'u8[1024]{0}', space=vmem, size = 0x400, scoped, tag = 'input window, operand 0, single buffered']
    #allocation3 [shape = 's32[1]{0}', space=sflag, size = 0x4, scoped, tag = 'scoped memory for tpu_custom_call.1']
    #allocation4 [shape = 's32[1]{0}', space=sflag, size = 0x4, scoped, tag = 'scoped memory for tpu_custom_call.1']
    #allocation5 [shape = 'u8[16384]{0}', space=vmem, size = 0x4000, scoped, tag = 'input window, operand 1, single buffered']
    #allocation6 [shape = 's32[1]{0}', space=sflag, size = 0x4, scoped, tag = 'scoped memory for tpu_custom_call.1']
    #allocation7 [shape = 'u8[2048]{0}', space=vmem, size = 0x800, scoped, tag = 'input window, operand 2, single buffered']
    #allocation8 [shape = 'u8[2048]{0}', space=vmem, size = 0x800, scoped, tag = 'input window, operand 3, single buffered']
    #allocation9 [shape = 's32[1]{0}', space=sflag, size = 0x4, scoped, tag = 'scoped memory for tpu_custom_call.1']
    #allocation10 [shape = 'u8[512]{0}', space=vmem, size = 0x400, scoped, tag = 'input window, operand 5, single buffered']
    #allocation11 [shape = 'u8[65536]{0}', space=vmem, size = 0x10000, scoped, tag = 'input window, operand 6, single buffered']
    #allocation12 [shape = 's32[1]{0}', space=sflag, size = 0x4, scoped, tag = 'scoped memory for tpu_custom_call.1']
    #allocation13 [shape = 'u8[524288]{0}', space=vmem, size = 0x80000, scoped, tag = 'input window, operand 7, single buffered']
    #allocation14 [shape = 'u8[4096]{0}', space=vmem, size = 0x1000, scoped, tag = 'input window, operand 8, single buffered']
    #allocation15 [shape = 's32[1]{0}', space=sflag, size = 0x4, scoped, tag = 'scoped memory for tpu_custom_call.1']
    #allocation16 [shape = 'u8[131072]{0}', space=vmem, size = 0x20000, scoped, tag = 'input window, operand 9, single buffered']
    #allocation17 [shape = 'u8[262144]{0}', space=vmem, size = 0x40000, scoped, tag = 'input window, operand 10, single buffered']
    #allocation18 [shape = 's32[1]{0}', space=sflag, size = 0x4, scoped, tag = 'scoped memory for tpu_custom_call.1']
    #allocation19 [shape = 'u8[131072]{0}', space=vmem, size = 0x20000, scoped, tag = 'input window, operand 11, single buffered']
    #allocation20 [shape = 'u8[65536]{0}', space=vmem, size = 0x10000, scoped, tag = 'input window, operand 13, single buffered']
    #allocation21 [shape = 's32[1]{0}', space=sflag, size = 0x4, scoped, tag = 'scoped memory for tpu_custom_call.1']
    #allocation22 [shape = 'u8[32768]{0}', space=vmem, size = 0x8000, scoped, tag = 'input window, operand 15, single buffered']
    #allocation23 [shape = 'u8[2048]{0}', space=vmem, size = 0x800, scoped, tag = 'output window, operand 0, single buffered']
    #allocation24 [shape = 'u8[2048]{0}', space=vmem, size = 0x800, scoped, tag = 'output window, operand 1, single buffered']
    #allocation25 [shape = 's32[1]{0}', space=sflag, size = 0x4, scoped, tag = 'scoped memory for tpu_custom_call.1']
    #allocation26 [shape = 'u8[1024]{0}', space=vmem, size = 0x400, scoped, tag = 'output window, operand 2, single buffered']
    %25 = vsyncpa [#allocation3], 0
    %26 = vsyncpa [#allocation6], 0
    %27 = vsyncpa [#allocation9], 0
    %28 = vsyncpa [#allocation12], 0
    %29 = vsyncpa [#allocation15], 0
    %30 = vsyncpa [#allocation18], 0
    %31 = vsyncpa [#allocation21], 0
    %32 = vsyncpa [#allocation4], 0
    %33 = vsyncpa [#allocation25], 0
    // Predicated region
    $region2: #{tpu_custom_call.1} parent=1 // pred_check
      _
    $region3: #{tpu_custom_call.1} parent=1 // pred_check_branch
      %35 = sbr.rel (0) target = $region5
    $region4: #{tpu_custom_call.1} parent=1 // pred_region
      %37 = vsyncadd [#allocation3], 0
      %s39 = sshll.u32 %s0, 4
      %s40 = int_to_ptr.hbm [resolvable:$true] %s39
      %s41 = sshll.u32 [#allocation2], 4
      %s42 = int_to_ptr.vmem [resolvable:$true] %s41
      %44 = dma.hbm_to_vmem [thread:$0]  %s40, 32, %s42, [#allocation3]
    $region5: #{tpu_custom_call.1} parent=1 // pred_fallthru
      _
    // Predicated region
    $region6: #{tpu_custom_call.1} parent=1 // pred_check
      _
    $region7: #{tpu_custom_call.1} parent=1 // pred_check_branch
      %46 = sbr.rel (0) target = $region9
    $region8: #{tpu_custom_call.1} parent=1 // pred_region
      %48 = vsyncadd [#allocation6], 0
      %s49 = sshll.u32 %s1, 4
      %s50 = int_to_ptr.hbm [resolvable:$true] %s49
      %s51 = sshll.u32 [#allocation5], 4
      %s52 = int_to_ptr.vmem [resolvable:$true] %s51
      %57 = dma.hbm_to_vmem [thread:$0]  %s50, 512, %s52, [#allocation6], 256, 256, 16
    $region9: #{tpu_custom_call.1} parent=1 // pred_fallthru
      _
    // Predicated region
    $region10: #{tpu_custom_call.1} parent=1 // pred_check
      _
    $region11: #{tpu_custom_call.1} parent=1 // pred_check_branch
      %59 = sbr.rel (0) target = $region13
    $region12: #{tpu_custom_call.1} parent=1 // pred_region
      %61 = vsyncadd [#allocation6], 0
      %s63 = sshll.u32 %s2, 4
      %s64 = int_to_ptr.hbm [resolvable:$true] %s63
      %s65 = sshll.u32 [#allocation7], 4
      %s66 = int_to_ptr.vmem [resolvable:$true] %s65
      %68 = dma.hbm_to_vmem [thread:$0]  %s64, 64, %s66, [#allocation6]
    $region13: #{tpu_custom_call.1} parent=1 // pred_fallthru
      _
    // Predicated region
    $region14: #{tpu_custom_call.1} parent=1 // pred_check
      _
    $region15: #{tpu_custom_call.1} parent=1 // pred_check_branch
      %70 = sbr.rel (0) target = $region17
    $region16: #{tpu_custom_call.1} parent=1 // pred_region
      %72 = vsyncadd [#allocation9], 0
      %s74 = sshll.u32 %s3, 4
      %s75 = int_to_ptr.hbm [resolvable:$true] %s74
      %s76 = sshll.u32 [#allocation8], 4
      %s77 = int_to_ptr.vmem [resolvable:$true] %s76
      %79 = dma.hbm_to_vmem [thread:$0]  %s75, 64, %s77, [#allocation9]
    $region17: #{tpu_custom_call.1} parent=1 // pred_fallthru
      _
    // Predicated region
    $region18: #{tpu_custom_call.1} parent=1 // pred_check
      _
    $region19: #{tpu_custom_call.1} parent=1 // pred_check_branch
      %81 = sbr.rel (0) target = $region21
    $region20: #{tpu_custom_call.1} parent=1 // pred_region
      _
    $region21: #{tpu_custom_call.1} parent=1 // pred_fallthru
      _
    // Predicated region
    $region22: #{tpu_custom_call.1} parent=1 // pred_check
      _
    $region23: #{tpu_custom_call.1} parent=1 // pred_check_branch
      %83 = sbr.rel (0) target = $region25
    $region24: #{tpu_custom_call.1} parent=1 // pred_region
      %85 = vsyncadd [#allocation9], 0
      %s87 = sshll.u32 %s5, 4
      %s88 = int_to_ptr.hbm [resolvable:$true] %s87
      %s89 = sshll.u32 [#allocation10], 4
      %s90 = int_to_ptr.vmem [resolvable:$true] %s89
      %92 = dma.hbm_to_vmem [thread:$0]  %s88, 16, %s90, [#allocation9]
    $region25: #{tpu_custom_call.1} parent=1 // pred_fallthru
      _
    // Predicated region
    $region26: #{tpu_custom_call.1} parent=1 // pred_check
      _
    $region27: #{tpu_custom_call.1} parent=1 // pred_check_branch
      %94 = sbr.rel (0) target = $region29
    $region28: #{tpu_custom_call.1} parent=1 // pred_region
      %96 = vsyncadd [#allocation12], 0
      %s97 = sshll.u32 %s6, 4
      %s98 = int_to_ptr.hbm [resolvable:$true] %s97
      %s99 = sshll.u32 [#allocation11], 4
      %s100 = int_to_ptr.vmem [resolvable:$true] %s99
      %105 = dma.hbm_to_vmem [thread:$0]  %s98, 2048, %s100, [#allocation12], 512, 512, 32
    $region29: #{tpu_custom_call.1} parent=1 // pred_fallthru
      _
    // Predicated region
    $region30: #{tpu_custom_call.1} parent=1 // pred_check
      _
    $region31: #{tpu_custom_call.1} parent=1 // pred_check_branch
      %107 = sbr.rel (0) target = $region33
    $region32: #{tpu_custom_call.1} parent=1 // pred_region
      %109 = vsyncadd [#allocation12], 0
      %s110 = sshll.u32 %s7, 4
      %s111 = int_to_ptr.hbm [resolvable:$true] %s110
      %s112 = sshll.u32 [#allocation13], 4
      %s113 = int_to_ptr.vmem [resolvable:$true] %s112
      %118 = dma.hbm_to_vmem [thread:$0]  %s111, 16384, %s113, [#allocation12], 512, 512, 32
    $region33: #{tpu_custom_call.1} parent=1 // pred_fallthru
      _
    // Predicated region
    $region34: #{tpu_custom_call.1} parent=1 // pred_check
      _
    $region35: #{tpu_custom_call.1} parent=1 // pred_check_branch
      %120 = sbr.rel (0) target = $region37
    $region36: #{tpu_custom_call.1} parent=1 // pred_region
      %122 = vsyncadd [#allocation15], 0
      %s124 = sshll.u32 %s8, 4
      %s125 = int_to_ptr.hbm [resolvable:$true] %s124
      %s126 = sshll.u32 [#allocation14], 4
      %s127 = int_to_ptr.vmem [resolvable:$true] %s126
      %129 = dma.hbm_to_vmem [thread:$0]  %s125, 128, %s127, [#allocation15]
    $region37: #{tpu_custom_call.1} parent=1 // pred_fallthru
      _
    // Predicated region
    $region38: #{tpu_custom_call.1} parent=1 // pred_check
      _
    $region39: #{tpu_custom_call.1} parent=1 // pred_check_branch
      %131 = sbr.rel (0) target = $region41
    $region40: #{tpu_custom_call.1} parent=1 // pred_region
      %133 = vsyncadd [#allocation15], 0
      %s134 = sshll.u32 %s9, 4
      %s135 = int_to_ptr.hbm [resolvable:$true] %s134
      %s136 = sshll.u32 [#allocation16], 4
      %s137 = int_to_ptr.vmem [resolvable:$true] %s136
      %142 = dma.hbm_to_vmem [thread:$0]  %s135, 4096, %s137, [#allocation15], 128, 128, 8
    $region41: #{tpu_custom_call.1} parent=1 // pred_fallthru
      _
    // Predicated region
    $region42: #{tpu_custom_call.1} parent=1 // pred_check
      _
    $region43: #{tpu_custom_call.1} parent=1 // pred_check_branch
      %144 = sbr.rel (0) target = $region45
    $region44: #{tpu_custom_call.1} parent=1 // pred_region
      %146 = vsyncadd [#allocation18], 0
      %s147 = sshll.u32 %s10, 4
      %s148 = int_to_ptr.hbm [resolvable:$true] %s147
      %s149 = sshll.u32 [#allocation17], 4
      %s150 = int_to_ptr.vmem [resolvable:$true] %s149
      %155 = dma.hbm_to_vmem [thread:$0]  %s148, 8192, %s150, [#allocation18], 128, 128, 8
    $region45: #{tpu_custom_call.1} parent=1 // pred_fallthru
      _
    // Predicated region
    $region46: #{tpu_custom_call.1} parent=1 // pred_check
      _
    $region47: #{tpu_custom_call.1} parent=1 // pred_check_branch
      %157 = sbr.rel (0) target = $region49
    $region48: #{tpu_custom_call.1} parent=1 // pred_region
      %159 = vsyncadd [#allocation18], 0
      %s160 = sshll.u32 %s11, 4
      %s161 = int_to_ptr.hbm [resolvable:$true] %s160
      %s162 = sshll.u32 [#allocation19], 4
      %s163 = int_to_ptr.vmem [resolvable:$true] %s162
      %168 = dma.hbm_to_vmem [thread:$0]  %s161, 4096, %s163, [#allocation18], 128, 128, 8
    $region49: #{tpu_custom_call.1} parent=1 // pred_fallthru
      _
    // Predicated region
    $region50: #{tpu_custom_call.1} parent=1 // pred_check
      _
    $region51: #{tpu_custom_call.1} parent=1 // pred_check_branch
      %170 = sbr.rel (0) target = $region53
    $region52: #{tpu_custom_call.1} parent=1 // pred_region
      _
    $region53: #{tpu_custom_call.1} parent=1 // pred_fallthru
      _
    // Predicated region
    $region54: #{tpu_custom_call.1} parent=1 // pred_check
      _
    $region55: #{tpu_custom_call.1} parent=1 // pred_check_branch
      %172 = sbr.rel (0) target = $region57
    $region56: #{tpu_custom_call.1} parent=1 // pred_region
      %174 = vsyncadd [#allocation21], 0
      %s175 = sshll.u32 %s13, 4
      %s176 = int_to_ptr.hbm [resolvable:$true] %s175
      %s177 = sshll.u32 [#allocation20], 4
      %s178 = int_to_ptr.vmem [resolvable:$true] %s177
      %183 = dma.hbm_to_vmem [thread:$0]  %s176, 2048, %s178, [#allocation21], 64, 64, 4
    $region57: #{tpu_custom_call.1} parent=1 // pred_fallthru
      _
    // Predicated region
    $region58: #{tpu_custom_call.1} parent=1 // pred_check
      _
    $region59: #{tpu_custom_call.1} parent=1 // pred_check_branch
      %185 = sbr.rel (0) target = $region61
    $region60: #{tpu_custom_call.1} parent=1 // pred_region
      _
    $region61: #{tpu_custom_call.1} parent=1 // pred_fallthru
      _
    // Predicated region
    $region62: #{tpu_custom_call.1} parent=1 // pred_check
      _
    $region63: #{tpu_custom_call.1} parent=1 // pred_check_branch
      %187 = sbr.rel (0) target = $region65
    $region64: #{tpu_custom_call.1} parent=1 // pred_region
      %189 = vsyncadd [#allocation21], 0
      %s190 = sshll.u32 %s15, 4
      %s191 = int_to_ptr.hbm [resolvable:$true] %s190
      %s192 = sshll.u32 [#allocation22], 4
      %s193 = int_to_ptr.vmem [resolvable:$true] %s192
      %198 = dma.hbm_to_vmem [thread:$0]  %s191, 1024, %s193, [#allocation21], 64, 64, 4
    $region65: #{tpu_custom_call.1} parent=1 // pred_fallthru
      _
    // Predicated region
    $region66: #{tpu_custom_call.1} parent=1 // pred_check
      _
    $region67: #{tpu_custom_call.1} parent=1 // pred_check_branch
      %200 = sbr.rel (0) target = $region69
    $region68: #{tpu_custom_call.1} parent=1 // pred_region
      _
    $region69: #{tpu_custom_call.1} parent=1 // pred_fallthru
      _
    // Predicated region
    $region70: #{tpu_custom_call.1} parent=1 // pred_check
      _
    $region71: #{tpu_custom_call.1} parent=1 // pred_check_branch
      %202 = sbr.rel (0) target = $region73
    $region72: #{tpu_custom_call.1} parent=1 // pred_region
      %204 = dma.done [#allocation3], 32
    $region73: #{tpu_custom_call.1} parent=1 // pred_fallthru
      _
    // Predicated region
    $region74: #{tpu_custom_call.1} parent=1 // pred_check
      _
    $region75: #{tpu_custom_call.1} parent=1 // pred_check_branch
      %206 = sbr.rel (0) target = $region77
    $region76: #{tpu_custom_call.1} parent=1 // pred_region
      %208 = dma.done [#allocation6], 512
    $region77: #{tpu_custom_call.1} parent=1 // pred_fallthru
      _
    // Predicated region
    $region78: #{tpu_custom_call.1} parent=1 // pred_check
      _
    $region79: #{tpu_custom_call.1} parent=1 // pred_check_branch
      %210 = sbr.rel (0) target = $region81
    $region80: #{tpu_custom_call.1} parent=1 // pred_region
      %212 = dma.done [#allocation6], 64
    $region81: #{tpu_custom_call.1} parent=1 // pred_fallthru
      _
    // Predicated region
    $region82: #{tpu_custom_call.1} parent=1 // pred_check
      _
    $region83: #{tpu_custom_call.1} parent=1 // pred_check_branch
      %214 = sbr.rel (0) target = $region85
    $region84: #{tpu_custom_call.1} parent=1 // pred_region
      %216 = dma.done [#allocation9], 64
    $region85: #{tpu_custom_call.1} parent=1 // pred_fallthru
      _
    // Predicated region
    $region86: #{tpu_custom_call.1} parent=1 // pred_check
      _
    $region87: #{tpu_custom_call.1} parent=1 // pred_check_branch
      %218 = sbr.rel (0) target = $region89
    $region88: #{tpu_custom_call.1} parent=1 // pred_region
      %220 = dma.done [#allocation9], 16
    $region89: #{tpu_custom_call.1} parent=1 // pred_fallthru
      _
    // Predicated region
    $region90: #{tpu_custom_call.1} parent=1 // pred_check
      _
    $region91: #{tpu_custom_call.1} parent=1 // pred_check_branch
      %222 = sbr.rel (0) target = $region93
    $region92: #{tpu_custom_call.1} parent=1 // pred_region
      %224 = dma.done [#allocation12], 2048
    $region93: #{tpu_custom_call.1} parent=1 // pred_fallthru
      _
    // Predicated region
    $region94: #{tpu_custom_call.1} parent=1 // pred_check
      _
    $region95: #{tpu_custom_call.1} parent=1 // pred_check_branch
      %226 = sbr.rel (0) target = $region97
    $region96: #{tpu_custom_call.1} parent=1 // pred_region
      %228 = dma.done [#allocation12], 16384
    $region97: #{tpu_custom_call.1} parent=1 // pred_fallthru
      _
    // Predicated region
    $region98: #{tpu_custom_call.1} parent=1 // pred_check
      _
    $region99: #{tpu_custom_call.1} parent=1 // pred_check_branch
      %230 = sbr.rel (0) target = $region101
    $region100: #{tpu_custom_call.1} parent=1 // pred_region
      %232 = dma.done [#allocation15], 128
    $region101: #{tpu_custom_call.1} parent=1 // pred_fallthru
      _
    // Predicated region
    $region102: #{tpu_custom_call.1} parent=1 // pred_check
      _
    $region103: #{tpu_custom_call.1} parent=1 // pred_check_branch
      %234 = sbr.rel (0) target = $region105
    $region104: #{tpu_custom_call.1} parent=1 // pred_region
      %236 = dma.done [#allocation15], 4096
    $region105: #{tpu_custom_call.1} parent=1 // pred_fallthru
      _
    // Predicated region
    $region106: #{tpu_custom_call.1} parent=1 // pred_check
      _
    $region107: #{tpu_custom_call.1} parent=1 // pred_check_branch
      %238 = sbr.rel (0) target = $region109
    $region108: #{tpu_custom_call.1} parent=1 // pred_region
      %240 = dma.done [#allocation18], 8192
    $region109: #{tpu_custom_call.1} parent=1 // pred_fallthru
      _
    // Predicated region
    $region110: #{tpu_custom_call.1} parent=1 // pred_check
      _
    $region111: #{tpu_custom_call.1} parent=1 // pred_check_branch
      %242 = sbr.rel (0) target = $region113
    $region112: #{tpu_custom_call.1} parent=1 // pred_region
      %244 = dma.done [#allocation18], 4096
    $region113: #{tpu_custom_call.1} parent=1 // pred_fallthru
      _
    // Predicated region
    $region114: #{tpu_custom_call.1} parent=1 // pred_check
      _
    $region115: #{tpu_custom_call.1} parent=1 // pred_check_branch
      %246 = sbr.rel (0) target = $region117
    $region116: #{tpu_custom_call.1} parent=1 // pred_region
      %248 = dma.done [#allocation21], 2048
    $region117: #{tpu_custom_call.1} parent=1 // pred_fallthru
      _
    // Predicated region
    $region118: #{tpu_custom_call.1} parent=1 // pred_check
      _
    $region119: #{tpu_custom_call.1} parent=1 // pred_check_branch
      %250 = sbr.rel (0) target = $region121
    $region120: #{tpu_custom_call.1} parent=1 // pred_region
      %252 = dma.done [#allocation21], 1024
    $region121: #{tpu_custom_call.1} parent=1 // pred_fallthru
      _
    %v254 = vld [vmem:[#allocation2] sm:$0x3]
    %v255 = vld [vmem:[%s4] sm:$0x3]
    %257 = vset.pattern.permute.xlu0 0
    %258 = vperm.xlu0 %257, %v254
    %v259 = vpop.permute.xlu0 %258
    %v261 = vperm.slane %v255, 0
    %v262 = vmul.f32 %v259, %v261
    %263 = vset.pattern.permute.xlu0 1
    %264 = vperm.xlu0 %263, %v254
    %v265 = vpop.permute.xlu0 %264
    %v267 = vperm.slane %v255, 1
    %v268 = vmul.f32 %v265, %v267
    %v269 = vadd.f32 %v262, %v268
    %v270 = vld [vmem:[#allocation10] sm:$0x1]
    %v272 = vperm.slane %v270, 0
    %v274 = vadd.f32 %v269, %v272
    %v275 = vld [vmem:[#allocation7] sm:$0xf]
    %v276 = vld [vmem:[#allocation8] sm:$0xf]
    %v277 = vpack.c.bf16 %v274, %v274
    %v278 = vld [vmem:[#allocation11] sm:$0xff]
    %v279 = vld [vmem:[#allocation11 + $0x8] sm:$0xff]
    %v280 = vld [vmem:[#allocation11 + $0x10] sm:$0xff]
    %v281 = vld [vmem:[#allocation11 + $0x18] sm:$0xff]
    %v282 = vld [vmem:[#allocation11 + $0x20] sm:$0xff]
    %v283 = vld [vmem:[#allocation11 + $0x28] sm:$0xff]
    %v284 = vld [vmem:[#allocation11 + $0x30] sm:$0xff]
    %v285 = vld [vmem:[#allocation11 + $0x38] sm:$0xff]
    %v286 = vld [vmem:[#allocation11 + $0x40] sm:$0xff]
    %v287 = vld [vmem:[#allocation11 + $0x48] sm:$0xff]
    %v288 = vld [vmem:[#allocation11 + $0x50] sm:$0xff]
    %v289 = vld [vmem:[#allocation11 + $0x58] sm:$0xff]
    %v290 = vld [vmem:[#allocation11 + $0x60] sm:$0xff]
    %v291 = vld [vmem:[#allocation11 + $0x68] sm:$0xff]
    %v292 = vld [vmem:[#allocation11 + $0x70] sm:$0xff]
    %v293 = vld [vmem:[#allocation11 + $0x78] sm:$0xff]
    %295 = vst [vmem:[#allocation1] ss:$4 sm:$0xff] %v275
    %v296 = vld.sshfl [vmem:[#allocation1] sm:$0xff pattern:$0x73625140]
    %v297 = vld.sshfl [vmem:[#allocation1 + $0x8] sm:$0xff pattern:$0x73625140]
    %v300 = vpack.c.bf16 %v296, %v296
    %v301 = vpack.c.bf16 %v297, %v297
    %v302 = vld [vmem:[#allocation13] sm:$0xff]
    %v303 = vld [vmem:[#allocation13 + $0x8] sm:$0xff]
    %v304 = vld [vmem:[#allocation13 + $0x10] sm:$0xff]
    %v305 = vld [vmem:[#allocation13 + $0x18] sm:$0xff]
    %v306 = vld [vmem:[#allocation13 + $0x20] sm:$0xff]
    %v307 = vld [vmem:[#allocation13 + $0x28] sm:$0xff]
    %v308 = vld [vmem:[#allocation13 + $0x30] sm:$0xff]
    %v309 = vld [vmem:[#allocation13 + $0x38] sm:$0xff]
    %v310 = vld [vmem:[#allocation13 + $0x40] sm:$0xff]
    %v311 = vld [vmem:[#allocation13 + $0x48] sm:$0xff]
    %v312 = vld [vmem:[#allocation13 + $0x50] sm:$0xff]
    %v313 = vld [vmem:[#allocation13 + $0x58] sm:$0xff]
    %v314 = vld [vmem:[#allocation13 + $0x60] sm:$0xff]
    %v315 = vld [vmem:[#allocation13 + $0x68] sm:$0xff]
    %v316 = vld [vmem:[#allocation13 + $0x70] sm:$0xff]
    %v317 = vld [vmem:[#allocation13 + $0x78] sm:$0xff]
    %v318 = vld [vmem:[#allocation13 + $0x80] sm:$0xff]
    %v319 = vld [vmem:[#allocation13 + $0x88] sm:$0xff]
    %v320 = vld [vmem:[#allocation13 + $0x90] sm:$0xff]
    %v321 = vld [vmem:[#allocation13 + $0x98] sm:$0xff]
    %v322 = vld [vmem:[#allocation13 + $0xa0] sm:$0xff]
    %v323 = vld [vmem:[#allocation13 + $0xa8] sm:$0xff]
    %v324 = vld [vmem:[#allocation13 + $0xb0] sm:$0xff]
    %v325 = vld [vmem:[#allocation13 + $0xb8] sm:$0xff]
    %v326 = vld [vmem:[#allocation13 + $0xc0] sm:$0xff]
    %v327 = vld [vmem:[#allocation13 + $0xc8] sm:$0xff]
    %v328 = vld [vmem:[#allocation13 + $0xd0] sm:$0xff]
    %v329 = vld [vmem:[#allocation13 + $0xd8] sm:$0xff]
    %v330 = vld [vmem:[#allocation13 + $0xe0] sm:$0xff]
    %v331 = vld [vmem:[#allocation13 + $0xe8] sm:$0xff]
    %v332 = vld [vmem:[#allocation13 + $0xf0] sm:$0xff]
    %v333 = vld [vmem:[#allocation13 + $0xf8] sm:$0xff]
    %v334 = vld [vmem:[#allocation13 + $0x100] sm:$0xff]
    %v335 = vld [vmem:[#allocation13 + $0x108] sm:$0xff]
    %v336 = vld [vmem:[#allocation13 + $0x110] sm:$0xff]
    %v337 = vld [vmem:[#allocation13 + $0x118] sm:$0xff]
    %v338 = vld [vmem:[#allocation13 + $0x120] sm:$0xff]
    %v339 = vld [vmem:[#allocation13 + $0x128] sm:$0xff]
    %v340 = vld [vmem:[#allocation13 + $0x130] sm:$0xff]
    %v341 = vld [vmem:[#allocation13 + $0x138] sm:$0xff]
    %v342 = vld [vmem:[#allocation13 + $0x140] sm:$0xff]
    %v343 = vld [vmem:[#allocation13 + $0x148] sm:$0xff]
    %v344 = vld [vmem:[#allocation13 + $0x150] sm:$0xff]
    %v345 = vld [vmem:[#allocation13 + $0x158] sm:$0xff]
    %v346 = vld [vmem:[#allocation13 + $0x160] sm:$0xff]
    %v347 = vld [vmem:[#allocation13 + $0x168] sm:$0xff]
    %v348 = vld [vmem:[#allocation13 + $0x170] sm:$0xff]
    %v349 = vld [vmem:[#allocation13 + $0x178] sm:$0xff]
    %v350 = vld [vmem:[#allocation13 + $0x180] sm:$0xff]
    %v351 = vld [vmem:[#allocation13 + $0x188] sm:$0xff]
    %v352 = vld [vmem:[#allocation13 + $0x190] sm:$0xff]
    %v353 = vld [vmem:[#allocation13 + $0x198] sm:$0xff]
    %v354 = vld [vmem:[#allocation13 + $0x1a0] sm:$0xff]
    %v355 = vld [vmem:[#allocation13 + $0x1a8] sm:$0xff]
    %v356 = vld [vmem:[#allocation13 + $0x1b0] sm:$0xff]
    %v357 = vld [vmem:[#allocation13 + $0x1b8] sm:$0xff]
    %v358 = vld [vmem:[#allocation13 + $0x1c0] sm:$0xff]
    %v359 = vld [vmem:[#allocation13 + $0x1c8] sm:$0xff]
    %v360 = vld [vmem:[#allocation13 + $0x1d0] sm:$0xff]
    %v361 = vld [vmem:[#allocation13 + $0x1d8] sm:$0xff]
    %v362 = vld [vmem:[#allocation13 + $0x1e0] sm:$0xff]
    %v363 = vld [vmem:[#allocation13 + $0x1e8] sm:$0xff]
    %v364 = vld [vmem:[#allocation13 + $0x1f0] sm:$0xff]
    %v365 = vld [vmem:[#allocation13 + $0x1f8] sm:$0xff]
    %v366 = vld [vmem:[#allocation13 + $0x200] sm:$0xff]
    %v367 = vld [vmem:[#allocation13 + $0x208] sm:$0xff]
    %v368 = vld [vmem:[#allocation13 + $0x210] sm:$0xff]
    %v369 = vld [vmem:[#allocation13 + $0x218] sm:$0xff]
    %v370 = vld [vmem:[#allocation13 + $0x220] sm:$0xff]
    %v371 = vld [vmem:[#allocation13 + $0x228] sm:$0xff]
    %v372 = vld [vmem:[#allocation13 + $0x230] sm:$0xff]
    %v373 = vld [vmem:[#allocation13 + $0x238] sm:$0xff]
    %v374 = vld [vmem:[#allocation13 + $0x240] sm:$0xff]
    %v375 = vld [vmem:[#allocation13 + $0x248] sm:$0xff]
    %v376 = vld [vmem:[#allocation13 + $0x250] sm:$0xff]
    %v377 = vld [vmem:[#allocation13 + $0x258] sm:$0xff]
    %v378 = vld [vmem:[#allocation13 + $0x260] sm:$0xff]
    %v379 = vld [vmem:[#allocation13 + $0x268] sm:$0xff]
    %v380 = vld [vmem:[#allocation13 + $0x270] sm:$0xff]
    %v381 = vld [vmem:[#allocation13 + $0x278] sm:$0xff]
    %v382 = vld [vmem:[#allocation13 + $0x280] sm:$0xff]
    %v383 = vld [vmem:[#allocation13 + $0x288] sm:$0xff]
    %v384 = vld [vmem:[#allocation13 + $0x290] sm:$0xff]
    %v385 = vld [vmem:[#allocation13 + $0x298] sm:$0xff]
    %v386 = vld [vmem:[#allocation13 + $0x2a0] sm:$0xff]
    %v387 = vld [vmem:[#allocation13 + $0x2a8] sm:$0xff]
    %v388 = vld [vmem:[#allocation13 + $0x2b0] sm:$0xff]
    %v389 = vld [vmem:[#allocation13 + $0x2b8] sm:$0xff]
    %v390 = vld [vmem:[#allocation13 + $0x2c0] sm:$0xff]
    %v391 = vld [vmem:[#allocation13 + $0x2c8] sm:$0xff]
    %v392 = vld [vmem:[#allocation13 + $0x2d0] sm:$0xff]
    %v393 = vld [vmem:[#allocation13 + $0x2d8] sm:$0xff]
    %v394 = vld [vmem:[#allocation13 + $0x2e0] sm:$0xff]
    %v395 = vld [vmem:[#allocation13 + $0x2e8] sm:$0xff]
    %v396 = vld [vmem:[#allocation13 + $0x2f0] sm:$0xff]
    %v397 = vld [vmem:[#allocation13 + $0x2f8] sm:$0xff]
    %v398 = vld [vmem:[#allocation13 + $0x300] sm:$0xff]
    %v399 = vld [vmem:[#allocation13 + $0x308] sm:$0xff]
    %v400 = vld [vmem:[#allocation13 + $0x310] sm:$0xff]
    %v401 = vld [vmem:[#allocation13 + $0x318] sm:$0xff]
    %v402 = vld [vmem:[#allocation13 + $0x320] sm:$0xff]
    %v403 = vld [vmem:[#allocation13 + $0x328] sm:$0xff]
    %v404 = vld [vmem:[#allocation13 + $0x330] sm:$0xff]
    %v405 = vld [vmem:[#allocation13 + $0x338] sm:$0xff]
    %v406 = vld [vmem:[#allocation13 + $0x340] sm:$0xff]
    %v407 = vld [vmem:[#allocation13 + $0x348] sm:$0xff]
    %v408 = vld [vmem:[#allocation13 + $0x350] sm:$0xff]
    %v409 = vld [vmem:[#allocation13 + $0x358] sm:$0xff]
    %v410 = vld [vmem:[#allocation13 + $0x360] sm:$0xff]
    %v411 = vld [vmem:[#allocation13 + $0x368] sm:$0xff]
    %v412 = vld [vmem:[#allocation13 + $0x370] sm:$0xff]
    %v413 = vld [vmem:[#allocation13 + $0x378] sm:$0xff]
    %v414 = vld [vmem:[#allocation13 + $0x380] sm:$0xff]
    %v415 = vld [vmem:[#allocation13 + $0x388] sm:$0xff]
    %v416 = vld [vmem:[#allocation13 + $0x390] sm:$0xff]
    %v417 = vld [vmem:[#allocation13 + $0x398] sm:$0xff]
    %v418 = vld [vmem:[#allocation13 + $0x3a0] sm:$0xff]
    %v419 = vld [vmem:[#allocation13 + $0x3a8] sm:$0xff]
    %v420 = vld [vmem:[#allocation13 + $0x3b0] sm:$0xff]
    %v421 = vld [vmem:[#allocation13 + $0x3b8] sm:$0xff]
    %v422 = vld [vmem:[#allocation13 + $0x3c0] sm:$0xff]
    %v423 = vld [vmem:[#allocation13 + $0x3c8] sm:$0xff]
    %v424 = vld [vmem:[#allocation13 + $0x3d0] sm:$0xff]
    %v425 = vld [vmem:[#allocation13 + $0x3d8] sm:$0xff]
    %v426 = vld [vmem:[#allocation13 + $0x3e0] sm:$0xff]
    %v427 = vld [vmem:[#allocation13 + $0x3e8] sm:$0xff]
    %v428 = vld [vmem:[#allocation13 + $0x3f0] sm:$0xff]
    %v429 = vld [vmem:[#allocation13 + $0x3f8] sm:$0xff]
    %v558 = vunpack.c.l.b16 %v302
    %v559 = vunpack.c.h.b16 %v302
    %v560 = vunpack.c.l.b16 %v303
    %v561 = vunpack.c.h.b16 %v303
    %v562 = vunpack.c.l.b16 %v304
    %v563 = vunpack.c.h.b16 %v304
    %v564 = vunpack.c.l.b16 %v305
    %v565 = vunpack.c.h.b16 %v305
    %v566 = vunpack.c.l.b16 %v306
    %v567 = vunpack.c.h.b16 %v306
    %v568 = vunpack.c.l.b16 %v307
    %v569 = vunpack.c.h.b16 %v307
    %v570 = vunpack.c.l.b16 %v308
    %v571 = vunpack.c.h.b16 %v308
    %v572 = vunpack.c.l.b16 %v309
    %v573 = vunpack.c.h.b16 %v309
    %v574 = vunpack.c.l.b16 %v310
    %v575 = vunpack.c.h.b16 %v310
    %v576 = vunpack.c.l.b16 %v311
    %v577 = vunpack.c.h.b16 %v311
    %v578 = vunpack.c.l.b16 %v312
    %v579 = vunpack.c.h.b16 %v312
    %v580 = vunpack.c.l.b16 %v313
    %v581 = vunpack.c.h.b16 %v313
    %v582 = vunpack.c.l.b16 %v314
    %v583 = vunpack.c.h.b16 %v314
    %v584 = vunpack.c.l.b16 %v315
    %v585 = vunpack.c.h.b16 %v315
    %v586 = vunpack.c.l.b16 %v316
    %v587 = vunpack.c.h.b16 %v316
    %v588 = vunpack.c.l.b16 %v317
    %v589 = vunpack.c.h.b16 %v317
    %v590 = vunpack.c.l.b16 %v318
    %v591 = vunpack.c.h.b16 %v318
    %v592 = vunpack.c.l.b16 %v319
    %v593 = vunpack.c.h.b16 %v319
    %v594 = vunpack.c.l.b16 %v320
    %v595 = vunpack.c.h.b16 %v320
    %v596 = vunpack.c.l.b16 %v321
    %v597 = vunpack.c.h.b16 %v321
    %v598 = vunpack.c.l.b16 %v322
    %v599 = vunpack.c.h.b16 %v322
    %v600 = vunpack.c.l.b16 %v323
    %v601 = vunpack.c.h.b16 %v323
    %v602 = vunpack.c.l.b16 %v324
    %v603 = vunpack.c.h.b16 %v324
    %v604 = vunpack.c.l.b16 %v325
    %v605 = vunpack.c.h.b16 %v325
    %v606 = vunpack.c.l.b16 %v326
    %v607 = vunpack.c.h.b16 %v326
    %v608 = vunpack.c.l.b16 %v327
    %v609 = vunpack.c.h.b16 %v327
    %v610 = vunpack.c.l.b16 %v328
    %v611 = vunpack.c.h.b16 %v328
    %v612 = vunpack.c.l.b16 %v329
    %v613 = vunpack.c.h.b16 %v329
    %v614 = vunpack.c.l.b16 %v330
    %v615 = vunpack.c.h.b16 %v330
    %v616 = vunpack.c.l.b16 %v331
    %v617 = vunpack.c.h.b16 %v331
    %v618 = vunpack.c.l.b16 %v332
    %v619 = vunpack.c.h.b16 %v332
    %v620 = vunpack.c.l.b16 %v333
    %v621 = vunpack.c.h.b16 %v333
    %v622 = vunpack.c.l.b16 %v334
    %v623 = vunpack.c.h.b16 %v334
    %v624 = vunpack.c.l.b16 %v335
    %v625 = vunpack.c.h.b16 %v335
    %v626 = vunpack.c.l.b16 %v336
    %v627 = vunpack.c.h.b16 %v336
    %v628 = vunpack.c.l.b16 %v337
    %v629 = vunpack.c.h.b16 %v337
    %v630 = vunpack.c.l.b16 %v338
    %v631 = vunpack.c.h.b16 %v338
    %v632 = vunpack.c.l.b16 %v339
    %v633 = vunpack.c.h.b16 %v339
    %v634 = vunpack.c.l.b16 %v340
    %v635 = vunpack.c.h.b16 %v340
    %v636 = vunpack.c.l.b16 %v341
    %v637 = vunpack.c.h.b16 %v341
    %v638 = vunpack.c.l.b16 %v342
    %v639 = vunpack.c.h.b16 %v342
    %v640 = vunpack.c.l.b16 %v343
    %v641 = vunpack.c.h.b16 %v343
    %v642 = vunpack.c.l.b16 %v344
    %v643 = vunpack.c.h.b16 %v344
    %v644 = vunpack.c.l.b16 %v345
    %v645 = vunpack.c.h.b16 %v345
    %v646 = vunpack.c.l.b16 %v346
    %v647 = vunpack.c.h.b16 %v346
    %v648 = vunpack.c.l.b16 %v347
    %v649 = vunpack.c.h.b16 %v347
    %v650 = vunpack.c.l.b16 %v348
    %v651 = vunpack.c.h.b16 %v348
    %v652 = vunpack.c.l.b16 %v349
    %v653 = vunpack.c.h.b16 %v349
    %v654 = vunpack.c.l.b16 %v350
    %v655 = vunpack.c.h.b16 %v350
    %v656 = vunpack.c.l.b16 %v351
    %v657 = vunpack.c.h.b16 %v351
    %v658 = vunpack.c.l.b16 %v352
    %v659 = vunpack.c.h.b16 %v352
    %v660 = vunpack.c.l.b16 %v353
    %v661 = vunpack.c.h.b16 %v353
    %v662 = vunpack.c.l.b16 %v354
    %v663 = vunpack.c.h.b16 %v354
    %v664 = vunpack.c.l.b16 %v355
    %v665 = vunpack.c.h.b16 %v355
    %v666 = vunpack.c.l.b16 %v356
    %v667 = vunpack.c.h.b16 %v356
    %v668 = vunpack.c.l.b16 %v357
    %v669 = vunpack.c.h.b16 %v357
    %v670 = vunpack.c.l.b16 %v358
    %v671 = vunpack.c.h.b16 %v358
    %v672 = vunpack.c.l.b16 %v359
    %v673 = vunpack.c.h.b16 %v359
    %v674 = vunpack.c.l.b16 %v360
    %v675 = vunpack.c.h.b16 %v360
    %v676 = vunpack.c.l.b16 %v361
    %v677 = vunpack.c.h.b16 %v361
    %v678 = vunpack.c.l.b16 %v362
    %v679 = vunpack.c.h.b16 %v362
    %v680 = vunpack.c.l.b16 %v363
    %v681 = vunpack.c.h.b16 %v363
    %v682 = vunpack.c.l.b16 %v364
    %v683 = vunpack.c.h.b16 %v364
    %v684 = vunpack.c.l.b16 %v365
    %v685 = vunpack.c.h.b16 %v365
    %v686 = vunpack.c.l.b16 %v366
    %v687 = vunpack.c.h.b16 %v366
    %v688 = vunpack.c.l.b16 %v367
    %v689 = vunpack.c.h.b16 %v367
    %v690 = vunpack.c.l.b16 %v368
    %v691 = vunpack.c.h.b16 %v368
    %v692 = vunpack.c.l.b16 %v369
    %v693 = vunpack.c.h.b16 %v369
    %v694 = vunpack.c.l.b16 %v370
    %v695 = vunpack.c.h.b16 %v370
    %v696 = vunpack.c.l.b16 %v371
    %v697 = vunpack.c.h.b16 %v371
    %v698 = vunpack.c.l.b16 %v372
    %v699 = vunpack.c.h.b16 %v372
    %v700 = vunpack.c.l.b16 %v373
    %v701 = vunpack.c.h.b16 %v373
    %v702 = vunpack.c.l.b16 %v374
    %v703 = vunpack.c.h.b16 %v374
    %v704 = vunpack.c.l.b16 %v375
    %v705 = vunpack.c.h.b16 %v375
    %v706 = vunpack.c.l.b16 %v376
    %v707 = vunpack.c.h.b16 %v376
    %v708 = vunpack.c.l.b16 %v377
    %v709 = vunpack.c.h.b16 %v377
    %v710 = vunpack.c.l.b16 %v378
    %v711 = vunpack.c.h.b16 %v378
    %v712 = vunpack.c.l.b16 %v379
    %v713 = vunpack.c.h.b16 %v379
    %v714 = vunpack.c.l.b16 %v380
    %v715 = vunpack.c.h.b16 %v380
    %v716 = vunpack.c.l.b16 %v381
    %v717 = vunpack.c.h.b16 %v381
    %v718 = vunpack.c.l.b16 %v382
    %v719 = vunpack.c.h.b16 %v382
    %v720 = vunpack.c.l.b16 %v383
    %v721 = vunpack.c.h.b16 %v383
    %v722 = vunpack.c.l.b16 %v384
    %v723 = vunpack.c.h.b16 %v384
    %v724 = vunpack.c.l.b16 %v385
    %v725 = vunpack.c.h.b16 %v385
    %v726 = vunpack.c.l.b16 %v386
    %v727 = vunpack.c.h.b16 %v386
    %v728 = vunpack.c.l.b16 %v387
    %v729 = vunpack.c.h.b16 %v387
    %v730 = vunpack.c.l.b16 %v388
    %v731 = vunpack.c.h.b16 %v388
    %v732 = vunpack.c.l.b16 %v389
    %v733 = vunpack.c.h.b16 %v389
    %v734 = vunpack.c.l.b16 %v390
    %v735 = vunpack.c.h.b16 %v390
    %v736 = vunpack.c.l.b16 %v391
    %v737 = vunpack.c.h.b16 %v391
    %v738 = vunpack.c.l.b16 %v392
    %v739 = vunpack.c.h.b16 %v392
    %v740 = vunpack.c.l.b16 %v393
    %v741 = vunpack.c.h.b16 %v393
    %v742 = vunpack.c.l.b16 %v394
    %v743 = vunpack.c.h.b16 %v394
    %v744 = vunpack.c.l.b16 %v395
    %v745 = vunpack.c.h.b16 %v395
    %v746 = vunpack.c.l.b16 %v396
    %v747 = vunpack.c.h.b16 %v396
    %v748 = vunpack.c.l.b16 %v397
    %v749 = vunpack.c.h.b16 %v397
    %v750 = vunpack.c.l.b16 %v398
    %v751 = vunpack.c.h.b16 %v398
    %v752 = vunpack.c.l.b16 %v399
    %v753 = vunpack.c.h.b16 %v399
    %v754 = vunpack.c.l.b16 %v400
    %v755 = vunpack.c.h.b16 %v400
    %v756 = vunpack.c.l.b16 %v401
    %v757 = vunpack.c.h.b16 %v401
    %v758 = vunpack.c.l.b16 %v402
    %v759 = vunpack.c.h.b16 %v402
    %v760 = vunpack.c.l.b16 %v403
    %v761 = vunpack.c.h.b16 %v403
    %v762 = vunpack.c.l.b16 %v404
    %v763 = vunpack.c.h.b16 %v404
    %v764 = vunpack.c.l.b16 %v405
    %v765 = vunpack.c.h.b16 %v405
    %v766 = vunpack.c.l.b16 %v406
    %v767 = vunpack.c.h.b16 %v406
    %v768 = vunpack.c.l.b16 %v407
    %v769 = vunpack.c.h.b16 %v407
    %v770 = vunpack.c.l.b16 %v408
    %v771 = vunpack.c.h.b16 %v408
    %v772 = vunpack.c.l.b16 %v409
    %v773 = vunpack.c.h.b16 %v409
    %v774 = vunpack.c.l.b16 %v410
    %v775 = vunpack.c.h.b16 %v410
    %v776 = vunpack.c.l.b16 %v411
    %v777 = vunpack.c.h.b16 %v411
    %v778 = vunpack.c.l.b16 %v412
    %v779 = vunpack.c.h.b16 %v412
    %v780 = vunpack.c.l.b16 %v413
    %v781 = vunpack.c.h.b16 %v413
    %v782 = vunpack.c.l.b16 %v414
    %v783 = vunpack.c.h.b16 %v414
    %v784 = vunpack.c.l.b16 %v415
    %v785 = vunpack.c.h.b16 %v415
    %v786 = vunpack.c.l.b16 %v416
    %v787 = vunpack.c.h.b16 %v416
    %v788 = vunpack.c.l.b16 %v417
    %v789 = vunpack.c.h.b16 %v417
    %v790 = vunpack.c.l.b16 %v418
    %v791 = vunpack.c.h.b16 %v418
    %v792 = vunpack.c.l.b16 %v419
    %v793 = vunpack.c.h.b16 %v419
    %v794 = vunpack.c.l.b16 %v420
    %v795 = vunpack.c.h.b16 %v420
    %v796 = vunpack.c.l.b16 %v421
    %v797 = vunpack.c.h.b16 %v421
    %v798 = vunpack.c.l.b16 %v422
    %v799 = vunpack.c.h.b16 %v422
    %v800 = vunpack.c.l.b16 %v423
    %v801 = vunpack.c.h.b16 %v423
    %v802 = vunpack.c.l.b16 %v424
    %v803 = vunpack.c.h.b16 %v424
    %v804 = vunpack.c.l.b16 %v425
    %v805 = vunpack.c.h.b16 %v425
    %v806 = vunpack.c.l.b16 %v426
    %v807 = vunpack.c.h.b16 %v426
    %v808 = vunpack.c.l.b16 %v427
    %v809 = vunpack.c.h.b16 %v427
    %v810 = vunpack.c.l.b16 %v428
    %v811 = vunpack.c.h.b16 %v428
    %v812 = vunpack.c.l.b16 %v429
    %v813 = vunpack.c.h.b16 %v429
    %v814 = vpack.c.b16 %v566, %v558
    %v815 = vpack.c.b16 %v567, %v559
    %v816 = vpack.c.b16 %v568, %v560
    %v817 = vpack.c.b16 %v569, %v561
    %v818 = vpack.c.b16 %v570, %v562
    %v819 = vpack.c.b16 %v571, %v563
    %v820 = vpack.c.b16 %v572, %v564
    %v821 = vpack.c.b16 %v573, %v565
    %v822 = vpack.c.b16 %v582, %v574
    %v823 = vpack.c.b16 %v583, %v575
    %v824 = vpack.c.b16 %v584, %v576
    %v825 = vpack.c.b16 %v585, %v577
    %v826 = vpack.c.b16 %v586, %v578
    %v827 = vpack.c.b16 %v587, %v579
    %v828 = vpack.c.b16 %v588, %v580
    %v829 = vpack.c.b16 %v589, %v581
    %v830 = vpack.c.b16 %v598, %v590
    %v831 = vpack.c.b16 %v599, %v591
    %v832 = vpack.c.b16 %v600, %v592
    %v833 = vpack.c.b16 %v601, %v593
    %v834 = vpack.c.b16 %v602, %v594
    %v835 = vpack.c.b16 %v603, %v595
    %v836 = vpack.c.b16 %v604, %v596
    %v837 = vpack.c.b16 %v605, %v597
    %v838 = vpack.c.b16 %v614, %v606
    %v839 = vpack.c.b16 %v615, %v607
    %v840 = vpack.c.b16 %v616, %v608
    %v841 = vpack.c.b16 %v617, %v609
    %v842 = vpack.c.b16 %v618, %v610
    %v843 = vpack.c.b16 %v619, %v611
    %v844 = vpack.c.b16 %v620, %v612
    %v845 = vpack.c.b16 %v621, %v613
    %v846 = vpack.c.b16 %v630, %v622
    %v847 = vpack.c.b16 %v631, %v623
    %v848 = vpack.c.b16 %v632, %v624
    %v849 = vpack.c.b16 %v633, %v625
    %v850 = vpack.c.b16 %v634, %v626
    %v851 = vpack.c.b16 %v635, %v627
    %v852 = vpack.c.b16 %v636, %v628
    %v853 = vpack.c.b16 %v637, %v629
    %v854 = vpack.c.b16 %v646, %v638
    %v855 = vpack.c.b16 %v647, %v639
    %v856 = vpack.c.b16 %v648, %v640
    %v857 = vpack.c.b16 %v649, %v641
    %v858 = vpack.c.b16 %v650, %v642
    %v859 = vpack.c.b16 %v651, %v643
    %v860 = vpack.c.b16 %v652, %v644
    %v861 = vpack.c.b16 %v653, %v645
    %v862 = vpack.c.b16 %v662, %v654
    %v863 = vpack.c.b16 %v663, %v655
    %v864 = vpack.c.b16 %v664, %v656
    %v865 = vpack.c.b16 %v665, %v657
    %v866 = vpack.c.b16 %v666, %v658
    %v867 = vpack.c.b16 %v667, %v659
    %v868 = vpack.c.b16 %v668, %v660
    %v869 = vpack.c.b16 %v669, %v661
    %v870 = vpack.c.b16 %v678, %v670
    %v871 = vpack.c.b16 %v679, %v671
    %v872 = vpack.c.b16 %v680, %v672
    %v873 = vpack.c.b16 %v681, %v673
    %v874 = vpack.c.b16 %v682, %v674
    %v875 = vpack.c.b16 %v683, %v675
    %v876 = vpack.c.b16 %v684, %v676
    %v877 = vpack.c.b16 %v685, %v677
    %v878 = vpack.c.b16 %v694, %v686
    %v879 = vpack.c.b16 %v695, %v687
    %v880 = vpack.c.b16 %v696, %v688
    %v881 = vpack.c.b16 %v697, %v689
    %v882 = vpack.c.b16 %v698, %v690
    %v883 = vpack.c.b16 %v699, %v691
    %v884 = vpack.c.b16 %v700, %v692
    %v885 = vpack.c.b16 %v701, %v693
    %v886 = vpack.c.b16 %v710, %v702
    %v887 = vpack.c.b16 %v711, %v703
    %v888 = vpack.c.b16 %v712, %v704
    %v889 = vpack.c.b16 %v713, %v705
    %v890 = vpack.c.b16 %v714, %v706
    %v891 = vpack.c.b16 %v715, %v707
    %v892 = vpack.c.b16 %v716, %v708
    %v893 = vpack.c.b16 %v717, %v709
    %v894 = vpack.c.b16 %v726, %v718
    %v895 = vpack.c.b16 %v727, %v719
    %v896 = vpack.c.b16 %v728, %v720
    %v897 = vpack.c.b16 %v729, %v721
    %v898 = vpack.c.b16 %v730, %v722
    %v899 = vpack.c.b16 %v731, %v723
    %v900 = vpack.c.b16 %v732, %v724
    %v901 = vpack.c.b16 %v733, %v725
    %v902 = vpack.c.b16 %v742, %v734
    %v903 = vpack.c.b16 %v743, %v735
    %v904 = vpack.c.b16 %v744, %v736
    %v905 = vpack.c.b16 %v745, %v737
    %v906 = vpack.c.b16 %v746, %v738
    %v907 = vpack.c.b16 %v747, %v739
    %v908 = vpack.c.b16 %v748, %v740
    %v909 = vpack.c.b16 %v749, %v741
    %v910 = vpack.c.b16 %v758, %v750
    %v911 = vpack.c.b16 %v759, %v751
    %v912 = vpack.c.b16 %v760, %v752
    %v913 = vpack.c.b16 %v761, %v753
    %v914 = vpack.c.b16 %v762, %v754
    %v915 = vpack.c.b16 %v763, %v755
    %v916 = vpack.c.b16 %v764, %v756
    %v917 = vpack.c.b16 %v765, %v757
    %v918 = vpack.c.b16 %v774, %v766
    %v919 = vpack.c.b16 %v775, %v767
    %v920 = vpack.c.b16 %v776, %v768
    %v921 = vpack.c.b16 %v777, %v769
    %v922 = vpack.c.b16 %v778, %v770
    %v923 = vpack.c.b16 %v779, %v771
    %v924 = vpack.c.b16 %v780, %v772
    %v925 = vpack.c.b16 %v781, %v773
    %v926 = vpack.c.b16 %v790, %v782
    %v927 = vpack.c.b16 %v791, %v783
    %v928 = vpack.c.b16 %v792, %v784
    %v929 = vpack.c.b16 %v793, %v785
    %v930 = vpack.c.b16 %v794, %v786
    %v931 = vpack.c.b16 %v795, %v787
    %v932 = vpack.c.b16 %v796, %v788
    %v933 = vpack.c.b16 %v797, %v789
    %v934 = vpack.c.b16 %v806, %v798
    %v935 = vpack.c.b16 %v807, %v799
    %v936 = vpack.c.b16 %v808, %v800
    %v937 = vpack.c.b16 %v809, %v801
    %v938 = vpack.c.b16 %v810, %v802
    %v939 = vpack.c.b16 %v811, %v803
    %v940 = vpack.c.b16 %v812, %v804
    %v941 = vpack.c.b16 %v813, %v805
    %1070 = vmatpush.bf16.msra.mxu0 %v870
    %1071 = vmatpush.bf16.msra.mxu0 %v862
    %1072 = vmatpush.bf16.msra.mxu0 %v854
    %1073 = vmatpush.bf16.msra.mxu0 %v846
    %1074 = vmatpush.bf16.msra.mxu0 %v838
    %1075 = vmatpush.bf16.msra.mxu0 %v830
    %1076 = vmatpush.bf16.msra.mxu0 %v822
    %1077 = vmatpush.bf16.msra.mxu0 %v814
    %1078 = vmatmul.bf16.gmra.mxu0 %v300
    %v1079 = vpop.f32.mrf.mxu0
    %v1080 = vadd.f32 0.0, %v1079
    %v1081 = vpop.f32.mrf.mxu0
    %1082 = vdwg.mxu0
    %1083 = vmatpush.bf16.msra.mxu0 %v934
    %1084 = vmatpush.bf16.msra.mxu0 %v926
    %1085 = vmatpush.bf16.msra.mxu0 %v918
    %1086 = vmatpush.bf16.msra.mxu0 %v910
    %1087 = vmatpush.bf16.msra.mxu0 %v902
    %1088 = vmatpush.bf16.msra.mxu0 %v894
    %1089 = vmatpush.bf16.msra.mxu0 %v886
    %1090 = vmatpush.bf16.msra.mxu0 %v878
    %1091 = vmatmul.bf16.gmra.mxu0 %v301
    %v1092 = vpop.f32.mrf.mxu0
    %v1093 = vadd.f32 %v1080, %v1092
    %v1094 = vpop.f32.mrf.mxu0
    %1095 = vdwg.mxu0
    %1096 = vmatpush.bf16.msra.mxu0 %v871
    %1097 = vmatpush.bf16.msra.mxu0 %v863
    %1098 = vmatpush.bf16.msra.mxu0 %v855
    %1099 = vmatpush.bf16.msra.mxu0 %v847
    %1100 = vmatpush.bf16.msra.mxu0 %v839
    %1101 = vmatpush.bf16.msra.mxu0 %v831
    %1102 = vmatpush.bf16.msra.mxu0 %v823
    %1103 = vmatpush.bf16.msra.mxu0 %v815
    %1104 = vmatmul.bf16.gmra.mxu0 %v300
    %v1105 = vpop.f32.mrf.mxu0
    %v1106 = vadd.f32 0.0, %v1105
    %v1107 = vpop.f32.mrf.mxu0
    %1108 = vdwg.mxu0
    %1109 = vmatpush.bf16.msra.mxu0 %v935
    %1110 = vmatpush.bf16.msra.mxu0 %v927
    %1111 = vmatpush.bf16.msra.mxu0 %v919
    %1112 = vmatpush.bf16.msra.mxu0 %v911
    %1113 = vmatpush.bf16.msra.mxu0 %v903
    %1114 = vmatpush.bf16.msra.mxu0 %v895
    %1115 = vmatpush.bf16.msra.mxu0 %v887
    %1116 = vmatpush.bf16.msra.mxu0 %v879
    %1117 = vmatmul.bf16.gmra.mxu0 %v301
    %v1118 = vpop.f32.mrf.mxu0
    %v1119 = vadd.f32 %v1106, %v1118
    %v1120 = vpop.f32.mrf.mxu0
    %1121 = vdwg.mxu0
    %1122 = vmatpush.bf16.msra.mxu0 %v872
    %1123 = vmatpush.bf16.msra.mxu0 %v864
    %1124 = vmatpush.bf16.msra.mxu0 %v856
    %1125 = vmatpush.bf16.msra.mxu0 %v848
    %1126 = vmatpush.bf16.msra.mxu0 %v840
    %1127 = vmatpush.bf16.msra.mxu0 %v832
    %1128 = vmatpush.bf16.msra.mxu0 %v824
    %1129 = vmatpush.bf16.msra.mxu0 %v816
    %1130 = vmatmul.bf16.gmra.mxu0 %v300
    %v1131 = vpop.f32.mrf.mxu0
    %v1132 = vadd.f32 0.0, %v1131
    %v1133 = vpop.f32.mrf.mxu0
    %1134 = vdwg.mxu0
    %1135 = vmatpush.bf16.msra.mxu0 %v936
    %1136 = vmatpush.bf16.msra.mxu0 %v928
    %1137 = vmatpush.bf16.msra.mxu0 %v920
    %1138 = vmatpush.bf16.msra.mxu0 %v912
    %1139 = vmatpush.bf16.msra.mxu0 %v904
    %1140 = vmatpush.bf16.msra.mxu0 %v896
    %1141 = vmatpush.bf16.msra.mxu0 %v888
    %1142 = vmatpush.bf16.msra.mxu0 %v880
    %1143 = vmatmul.bf16.gmra.mxu0 %v301
    %v1144 = vpop.f32.mrf.mxu0
    %v1145 = vadd.f32 %v1132, %v1144
    %v1146 = vpop.f32.mrf.mxu0
    %1147 = vdwg.mxu0
    %1148 = vmatpush.bf16.msra.mxu0 %v873
    %1149 = vmatpush.bf16.msra.mxu0 %v865
    %1150 = vmatpush.bf16.msra.mxu0 %v857
    %1151 = vmatpush.bf16.msra.mxu0 %v849
    %1152 = vmatpush.bf16.msra.mxu0 %v841
    %1153 = vmatpush.bf16.msra.mxu0 %v833
    %1154 = vmatpush.bf16.msra.mxu0 %v825
    %1155 = vmatpush.bf16.msra.mxu0 %v817
    %1156 = vmatmul.bf16.gmra.mxu0 %v300
    %v1157 = vpop.f32.mrf.mxu0
    %v1158 = vadd.f32 0.0, %v1157
    %v1159 = vpop.f32.mrf.mxu0
    %1160 = vdwg.mxu0
    %1161 = vmatpush.bf16.msra.mxu0 %v937
    %1162 = vmatpush.bf16.msra.mxu0 %v929
    %1163 = vmatpush.bf16.msra.mxu0 %v921
    %1164 = vmatpush.bf16.msra.mxu0 %v913
    %1165 = vmatpush.bf16.msra.mxu0 %v905
    %1166 = vmatpush.bf16.msra.mxu0 %v897
    %1167 = vmatpush.bf16.msra.mxu0 %v889
    %1168 = vmatpush.bf16.msra.mxu0 %v881
    %1169 = vmatmul.bf16.gmra.mxu0 %v301
    %v1170 = vpop.f32.mrf.mxu0
    %v1171 = vadd.f32 %v1158, %v1170
    %v1172 = vpop.f32.mrf.mxu0
    %1173 = vdwg.mxu0
    %1174 = vmatpush.bf16.msra.mxu0 %v874
    %1175 = vmatpush.bf16.msra.mxu0 %v866
    %1176 = vmatpush.bf16.msra.mxu0 %v858
    %1177 = vmatpush.bf16.msra.mxu0 %v850
    %1178 = vmatpush.bf16.msra.mxu0 %v842
    %1179 = vmatpush.bf16.msra.mxu0 %v834
    %1180 = vmatpush.bf16.msra.mxu0 %v826
    %1181 = vmatpush.bf16.msra.mxu0 %v818
    %1182 = vmatmul.bf16.gmra.mxu0 %v300
    %v1183 = vpop.f32.mrf.mxu0
    %v1184 = vadd.f32 0.0, %v1183
    %v1185 = vpop.f32.mrf.mxu0
    %1186 = vdwg.mxu0
    %1187 = vmatpush.bf16.msra.mxu0 %v938
    %1188 = vmatpush.bf16.msra.mxu0 %v930
    %1189 = vmatpush.bf16.msra.mxu0 %v922
    %1190 = vmatpush.bf16.msra.mxu0 %v914
    %1191 = vmatpush.bf16.msra.mxu0 %v906
    %1192 = vmatpush.bf16.msra.mxu0 %v898
    %1193 = vmatpush.bf16.msra.mxu0 %v890
    %1194 = vmatpush.bf16.msra.mxu0 %v882
    %1195 = vmatmul.bf16.gmra.mxu0 %v301
    %v1196 = vpop.f32.mrf.mxu0
    %v1197 = vadd.f32 %v1184, %v1196
    %v1198 = vpop.f32.mrf.mxu0
    %1199 = vdwg.mxu0
    %1200 = vmatpush.bf16.msra.mxu0 %v875
    %1201 = vmatpush.bf16.msra.mxu0 %v867
    %1202 = vmatpush.bf16.msra.mxu0 %v859
    %1203 = vmatpush.bf16.msra.mxu0 %v851
    %1204 = vmatpush.bf16.msra.mxu0 %v843
    %1205 = vmatpush.bf16.msra.mxu0 %v835
    %1206 = vmatpush.bf16.msra.mxu0 %v827
    %1207 = vmatpush.bf16.msra.mxu0 %v819
    %1208 = vmatmul.bf16.gmra.mxu0 %v300
    %v1209 = vpop.f32.mrf.mxu0
    %v1210 = vadd.f32 0.0, %v1209
    %v1211 = vpop.f32.mrf.mxu0
    %1212 = vdwg.mxu0
    %1213 = vmatpush.bf16.msra.mxu0 %v939
    %1214 = vmatpush.bf16.msra.mxu0 %v931
    %1215 = vmatpush.bf16.msra.mxu0 %v923
    %1216 = vmatpush.bf16.msra.mxu0 %v915
    %1217 = vmatpush.bf16.msra.mxu0 %v907
    %1218 = vmatpush.bf16.msra.mxu0 %v899
    %1219 = vmatpush.bf16.msra.mxu0 %v891
    %1220 = vmatpush.bf16.msra.mxu0 %v883
    %1221 = vmatmul.bf16.gmra.mxu0 %v301
    %v1222 = vpop.f32.mrf.mxu0
    %v1223 = vadd.f32 %v1210, %v1222
    %v1224 = vpop.f32.mrf.mxu0
    %1225 = vdwg.mxu0
    %1226 = vmatpush.bf16.msra.mxu0 %v876
    %1227 = vmatpush.bf16.msra.mxu0 %v868
    %1228 = vmatpush.bf16.msra.mxu0 %v860
    %1229 = vmatpush.bf16.msra.mxu0 %v852
    %1230 = vmatpush.bf16.msra.mxu0 %v844
    %1231 = vmatpush.bf16.msra.mxu0 %v836
    %1232 = vmatpush.bf16.msra.mxu0 %v828
    %1233 = vmatpush.bf16.msra.mxu0 %v820
    %1234 = vmatmul.bf16.gmra.mxu0 %v300
    %v1235 = vpop.f32.mrf.mxu0
    %v1236 = vadd.f32 0.0, %v1235
    %v1237 = vpop.f32.mrf.mxu0
    %1238 = vdwg.mxu0
    %1239 = vmatpush.bf16.msra.mxu0 %v940
    %1240 = vmatpush.bf16.msra.mxu0 %v932
    %1241 = vmatpush.bf16.msra.mxu0 %v924
    %1242 = vmatpush.bf16.msra.mxu0 %v916
    %1243 = vmatpush.bf16.msra.mxu0 %v908
    %1244 = vmatpush.bf16.msra.mxu0 %v900
    %1245 = vmatpush.bf16.msra.mxu0 %v892
    %1246 = vmatpush.bf16.msra.mxu0 %v884
    %1247 = vmatmul.bf16.gmra.mxu0 %v301
    %v1248 = vpop.f32.mrf.mxu0
    %v1249 = vadd.f32 %v1236, %v1248
    %v1250 = vpop.f32.mrf.mxu0
    %1251 = vdwg.mxu0
    %1252 = vmatpush.bf16.msra.mxu0 %v877
    %1253 = vmatpush.bf16.msra.mxu0 %v869
    %1254 = vmatpush.bf16.msra.mxu0 %v861
    %1255 = vmatpush.bf16.msra.mxu0 %v853
    %1256 = vmatpush.bf16.msra.mxu0 %v845
    %1257 = vmatpush.bf16.msra.mxu0 %v837
    %1258 = vmatpush.bf16.msra.mxu0 %v829
    %1259 = vmatpush.bf16.msra.mxu0 %v821
    %1260 = vmatmul.bf16.gmra.mxu0 %v300
    %v1261 = vpop.f32.mrf.mxu0
    %v1262 = vadd.f32 0.0, %v1261
    %v1263 = vpop.f32.mrf.mxu0
    %1264 = vdwg.mxu0
    %1265 = vmatpush.bf16.msra.mxu0 %v941
    %1266 = vmatpush.bf16.msra.mxu0 %v933
    %1267 = vmatpush.bf16.msra.mxu0 %v925
    %1268 = vmatpush.bf16.msra.mxu0 %v917
    %1269 = vmatpush.bf16.msra.mxu0 %v909
    %1270 = vmatpush.bf16.msra.mxu0 %v901
    %1271 = vmatpush.bf16.msra.mxu0 %v893
    %1272 = vmatpush.bf16.msra.mxu0 %v885
    %1273 = vmatmul.bf16.gmra.mxu0 %v301
    %v1274 = vpop.f32.mrf.mxu0
    %v1275 = vadd.f32 %v1262, %v1274
    %v1276 = vpop.f32.mrf.mxu0
    %1277 = vdwg.mxu0
    %v1294 = vunpack.c.l.b16 %v278
    %v1295 = vunpack.c.h.b16 %v278
    %v1296 = vunpack.c.l.b16 %v279
    %v1297 = vunpack.c.h.b16 %v279
    %v1298 = vunpack.c.l.b16 %v280
    %v1299 = vunpack.c.h.b16 %v280
    %v1300 = vunpack.c.l.b16 %v281
    %v1301 = vunpack.c.h.b16 %v281
    %v1302 = vunpack.c.l.b16 %v282
    %v1303 = vunpack.c.h.b16 %v282
    %v1304 = vunpack.c.l.b16 %v283
    %v1305 = vunpack.c.h.b16 %v283
    %v1306 = vunpack.c.l.b16 %v284
    %v1307 = vunpack.c.h.b16 %v284
    %v1308 = vunpack.c.l.b16 %v285
    %v1309 = vunpack.c.h.b16 %v285
    %v1310 = vunpack.c.l.b16 %v286
    %v1311 = vunpack.c.h.b16 %v286
    %v1312 = vunpack.c.l.b16 %v287
    %v1313 = vunpack.c.h.b16 %v287
    %v1314 = vunpack.c.l.b16 %v288
    %v1315 = vunpack.c.h.b16 %v288
    %v1316 = vunpack.c.l.b16 %v289
    %v1317 = vunpack.c.h.b16 %v289
    %v1318 = vunpack.c.l.b16 %v290
    %v1319 = vunpack.c.h.b16 %v290
    %v1320 = vunpack.c.l.b16 %v291
    %v1321 = vunpack.c.h.b16 %v291
    %v1322 = vunpack.c.l.b16 %v292
    %v1323 = vunpack.c.h.b16 %v292
    %v1324 = vunpack.c.l.b16 %v293
    %v1325 = vunpack.c.h.b16 %v293
    %v1326 = vpack.c.b16 %v1302, %v1294
    %v1327 = vpack.c.b16 %v1303, %v1295
    %v1328 = vpack.c.b16 %v1304, %v1296
    %v1329 = vpack.c.b16 %v1305, %v1297
    %v1330 = vpack.c.b16 %v1306, %v1298
    %v1331 = vpack.c.b16 %v1307, %v1299
    %v1332 = vpack.c.b16 %v1308, %v1300
    %v1333 = vpack.c.b16 %v1309, %v1301
    %v1334 = vpack.c.b16 %v1318, %v1310
    %v1335 = vpack.c.b16 %v1319, %v1311
    %v1336 = vpack.c.b16 %v1320, %v1312
    %v1337 = vpack.c.b16 %v1321, %v1313
    %v1338 = vpack.c.b16 %v1322, %v1314
    %v1339 = vpack.c.b16 %v1323, %v1315
    %v1340 = vpack.c.b16 %v1324, %v1316
    %v1341 = vpack.c.b16 %v1325, %v1317
    %vm1358 = vcmask 261120
    %v1360 = vsel %vm1358, %v277, 0
    %1362 = vmatpush.bf16.msra.mxu0 0
    %1363 = vmatpush.bf16.msra.mxu0 0
    %1364 = vmatpush.bf16.msra.mxu0 0
    %1365 = vmatpush.bf16.msra.mxu0 0
    %1366 = vmatpush.bf16.msra.mxu0 0
    %1367 = vmatpush.bf16.msra.mxu0 0
    %1368 = vmatpush.bf16.msra.mxu0 %v1334
    %1369 = vmatpush.bf16.msra.mxu0 %v1326
    %1370 = vmatmul.bf16.gmra.mxu0 %v1360
    %v1371 = vpop.f32.mrf.mxu0
    %v1372 = vadd.f32 %v1093, %v1371
    %v1373 = vpop.f32.mrf.mxu0
    %1374 = vdwg.mxu0
    %1375 = vmatpush.bf16.msra.mxu0 0
    %1376 = vmatpush.bf16.msra.mxu0 0
    %1377 = vmatpush.bf16.msra.mxu0 0
    %1378 = vmatpush.bf16.msra.mxu0 0
    %1379 = vmatpush.bf16.msra.mxu0 0
    %1380 = vmatpush.bf16.msra.mxu0 0
    %1381 = vmatpush.bf16.msra.mxu0 %v1335
    %1382 = vmatpush.bf16.msra.mxu0 %v1327
    %1383 = vmatmul.bf16.gmra.mxu0 %v1360
    %v1384 = vpop.f32.mrf.mxu0
    %v1385 = vadd.f32 %v1119, %v1384
    %v1386 = vpop.f32.mrf.mxu0
    %1387 = vdwg.mxu0
    %1388 = vmatpush.bf16.msra.mxu0 0
    %1389 = vmatpush.bf16.msra.mxu0 0
    %1390 = vmatpush.bf16.msra.mxu0 0
    %1391 = vmatpush.bf16.msra.mxu0 0
    %1392 = vmatpush.bf16.msra.mxu0 0
    %1393 = vmatpush.bf16.msra.mxu0 0
    %1394 = vmatpush.bf16.msra.mxu0 %v1336
    %1395 = vmatpush.bf16.msra.mxu0 %v1328
    %1396 = vmatmul.bf16.gmra.mxu0 %v1360
    %v1397 = vpop.f32.mrf.mxu0
    %v1398 = vadd.f32 %v1145, %v1397
    %v1399 = vpop.f32.mrf.mxu0
    %1400 = vdwg.mxu0
    %1401 = vmatpush.bf16.msra.mxu0 0
    %1402 = vmatpush.bf16.msra.mxu0 0
    %1403 = vmatpush.bf16.msra.mxu0 0
    %1404 = vmatpush.bf16.msra.mxu0 0
    %1405 = vmatpush.bf16.msra.mxu0 0
    %1406 = vmatpush.bf16.msra.mxu0 0
    %1407 = vmatpush.bf16.msra.mxu0 %v1337
    %1408 = vmatpush.bf16.msra.mxu0 %v1329
    %1409 = vmatmul.bf16.gmra.mxu0 %v1360
    %v1410 = vpop.f32.mrf.mxu0
    %v1411 = vadd.f32 %v1171, %v1410
    %v1412 = vpop.f32.mrf.mxu0
    %1413 = vdwg.mxu0
    %1414 = vmatpush.bf16.msra.mxu0 0
    %1415 = vmatpush.bf16.msra.mxu0 0
    %1416 = vmatpush.bf16.msra.mxu0 0
    %1417 = vmatpush.bf16.msra.mxu0 0
    %1418 = vmatpush.bf16.msra.mxu0 0
    %1419 = vmatpush.bf16.msra.mxu0 0
    %1420 = vmatpush.bf16.msra.mxu0 %v1338
    %1421 = vmatpush.bf16.msra.mxu0 %v1330
    %1422 = vmatmul.bf16.gmra.mxu0 %v1360
    %v1423 = vpop.f32.mrf.mxu0
    %v1424 = vadd.f32 %v1197, %v1423
    %v1425 = vpop.f32.mrf.mxu0
    %1426 = vdwg.mxu0
    %1427 = vmatpush.bf16.msra.mxu0 0
    %1428 = vmatpush.bf16.msra.mxu0 0
    %1429 = vmatpush.bf16.msra.mxu0 0
    %1430 = vmatpush.bf16.msra.mxu0 0
    %1431 = vmatpush.bf16.msra.mxu0 0
    %1432 = vmatpush.bf16.msra.mxu0 0
    %1433 = vmatpush.bf16.msra.mxu0 %v1339
    %1434 = vmatpush.bf16.msra.mxu0 %v1331
    %1435 = vmatmul.bf16.gmra.mxu0 %v1360
    %v1436 = vpop.f32.mrf.mxu0
    %v1437 = vadd.f32 %v1223, %v1436
    %v1438 = vpop.f32.mrf.mxu0
    %1439 = vdwg.mxu0
    %1440 = vmatpush.bf16.msra.mxu0 0
    %1441 = vmatpush.bf16.msra.mxu0 0
    %1442 = vmatpush.bf16.msra.mxu0 0
    %1443 = vmatpush.bf16.msra.mxu0 0
    %1444 = vmatpush.bf16.msra.mxu0 0
    %1445 = vmatpush.bf16.msra.mxu0 0
    %1446 = vmatpush.bf16.msra.mxu0 %v1340
    %1447 = vmatpush.bf16.msra.mxu0 %v1332
    %1448 = vmatmul.bf16.gmra.mxu0 %v1360
    %v1449 = vpop.f32.mrf.mxu0
    %v1450 = vadd.f32 %v1249, %v1449
    %v1451 = vpop.f32.mrf.mxu0
    %1452 = vdwg.mxu0
    %1453 = vmatpush.bf16.msra.mxu0 0
    %1454 = vmatpush.bf16.msra.mxu0 0
    %1455 = vmatpush.bf16.msra.mxu0 0
    %1456 = vmatpush.bf16.msra.mxu0 0
    %1457 = vmatpush.bf16.msra.mxu0 0
    %1458 = vmatpush.bf16.msra.mxu0 0
    %1459 = vmatpush.bf16.msra.mxu0 %v1341
    %1460 = vmatpush.bf16.msra.mxu0 %v1333
    %1461 = vmatmul.bf16.gmra.mxu0 %v1360
    %v1462 = vpop.f32.mrf.mxu0
    %v1463 = vadd.f32 %v1275, %v1462
    %v1464 = vpop.f32.mrf.mxu0
    %1465 = vdwg.mxu0
    %v1466 = vld [vmem:[#allocation14] sm:$0xff]
    %v1468 = vperm.slane %v1466, 0
    %v1469 = vperm.slane %v1466, 1
    %v1470 = vperm.slane %v1466, 2
    %v1471 = vperm.slane %v1466, 3
    %v1472 = vperm.slane %v1466, 4
    %v1473 = vperm.slane %v1466, 5
    %v1474 = vperm.slane %v1466, 6
    %v1475 = vperm.slane %v1466, 7
    %v1484 = vadd.f32 %v1372, %v1468
    %v1485 = vadd.f32 %v1385, %v1469
    %v1486 = vadd.f32 %v1398, %v1470
    %v1487 = vadd.f32 %v1411, %v1471
    %v1488 = vadd.f32 %v1424, %v1472
    %v1489 = vadd.f32 %v1437, %v1473
    %v1490 = vadd.f32 %v1450, %v1474
    %v1491 = vadd.f32 %v1463, %v1475
    %v1492 = vsub.f32 0.0, %v1484
    %v1493 = vsub.f32 0.0, %v1485
    %v1494 = vmul.f32 %v1492, 1.442695
    %v1495 = vpow.pop %v1494
    %v1496 = vmul.f32 %v1493, 1.442695
    %v1497 = vpow.pop %v1496
    %v1498 = vadd.f32 %v1495, 1.0
    %v1499 = vadd.f32 %v1497, 1.0
    %v1500 = vrcp.pop %v1498
    %v1501 = vmul.f32 %v1498, %v1500
    %v1502 = vsub.f32 1.0, %v1501
    %v1503 = vmul.f32 %v1500, %v1502
    %v1504 = vadd.f32 %v1500, %v1503
    %vm1505 = vweird.f32 %v1498
    %vm1506 = vweird.f32 %v1500
    %vm1507 = vmor %vm1505, %vm1506
    %v1508 = vsel %vm1507, %v1500, %v1504
    %v1509 = vand.u32 2147483647, %v1498
    %vm1510 = vcmp.eq.f32.partialorder %v1509, 8.507059e+37
    %v1511 = vand.u32 %v1498, 2147483648
    %v1512 = vor.u32 1.1754944e-38, %v1511
    %v1513 = vsel %vm1510, %v1512, %v1508
    %v1514 = vmul.f32 1.0, %v1513
    %v1515 = vrcp.pop %v1499
    %v1516 = vmul.f32 %v1499, %v1515
    %v1517 = vsub.f32 1.0, %v1516
    %v1518 = vmul.f32 %v1515, %v1517
    %v1519 = vadd.f32 %v1515, %v1518
    %vm1520 = vweird.f32 %v1499
    %vm1521 = vweird.f32 %v1515
    %vm1522 = vmor %vm1520, %vm1521
    %v1523 = vsel %vm1522, %v1515, %v1519
    %v1524 = vand.u32 2147483647, %v1499
    %vm1525 = vcmp.eq.f32.partialorder %v1524, 8.507059e+37
    %v1526 = vand.u32 %v1499, 2147483648
    %v1527 = vor.u32 1.1754944e-38, %v1526
    %v1528 = vsel %vm1525, %v1527, %v1523
    %v1529 = vmul.f32 1.0, %v1528
    %v1530 = vsub.f32 0.0, %v1486
    %v1531 = vsub.f32 0.0, %v1487
    %v1532 = vmul.f32 %v1530, 1.442695
    %v1533 = vpow.pop %v1532
    %v1534 = vmul.f32 %v1531, 1.442695
    %v1535 = vpow.pop %v1534
    %v1536 = vadd.f32 %v1533, 1.0
    %v1537 = vadd.f32 %v1535, 1.0
    %v1538 = vrcp.pop %v1536
    %v1539 = vmul.f32 %v1536, %v1538
    %v1540 = vsub.f32 1.0, %v1539
    %v1541 = vmul.f32 %v1538, %v1540
    %v1542 = vadd.f32 %v1538, %v1541
    %vm1543 = vweird.f32 %v1536
    %vm1544 = vweird.f32 %v1538
    %vm1545 = vmor %vm1543, %vm1544
    %v1546 = vsel %vm1545, %v1538, %v1542
    %v1547 = vand.u32 2147483647, %v1536
    %vm1548 = vcmp.eq.f32.partialorder %v1547, 8.507059e+37
    %v1549 = vand.u32 %v1536, 2147483648
    %v1550 = vor.u32 1.1754944e-38, %v1549
    %v1551 = vsel %vm1548, %v1550, %v1546
    %v1552 = vmul.f32 1.0, %v1551
    %v1553 = vrcp.pop %v1537
    %v1554 = vmul.f32 %v1537, %v1553
    %v1555 = vsub.f32 1.0, %v1554
    %v1556 = vmul.f32 %v1553, %v1555
    %v1557 = vadd.f32 %v1553, %v1556
    %vm1558 = vweird.f32 %v1537
    %vm1559 = vweird.f32 %v1553
    %vm1560 = vmor %vm1558, %vm1559
    %v1561 = vsel %vm1560, %v1553, %v1557
    %v1562 = vand.u32 2147483647, %v1537
    %vm1563 = vcmp.eq.f32.partialorder %v1562, 8.507059e+37
    %v1564 = vand.u32 %v1537, 2147483648
    %v1565 = vor.u32 1.1754944e-38, %v1564
    %v1566 = vsel %vm1563, %v1565, %v1561
    %v1567 = vmul.f32 1.0, %v1566
    %v1568 = vtanh.pop %v1488
    %v1569 = vtanh.pop %v1489
    %v1570 = vsub.f32 0.0, %v1490
    %v1571 = vsub.f32 0.0, %v1491
    %v1572 = vmul.f32 %v1570, 1.442695
    %v1573 = vpow.pop %v1572
    %v1574 = vmul.f32 %v1571, 1.442695
    %v1575 = vpow.pop %v1574
    %v1576 = vadd.f32 %v1573, 1.0
    %v1577 = vadd.f32 %v1575, 1.0
    %v1578 = vrcp.pop %v1576
    %v1579 = vmul.f32 %v1576, %v1578
    %v1580 = vsub.f32 1.0, %v1579
    %v1581 = vmul.f32 %v1578, %v1580
    %v1582 = vadd.f32 %v1578, %v1581
    %vm1583 = vweird.f32 %v1576
    %vm1584 = vweird.f32 %v1578
    %vm1585 = vmor %vm1583, %vm1584
    %v1586 = vsel %vm1585, %v1578, %v1582
    %v1587 = vand.u32 2147483647, %v1576
    %vm1588 = vcmp.eq.f32.partialorder %v1587, 8.507059e+37
    %v1589 = vand.u32 %v1576, 2147483648
    %v1590 = vor.u32 1.1754944e-38, %v1589
    %v1591 = vsel %vm1588, %v1590, %v1586
    %v1592 = vmul.f32 1.0, %v1591
    %v1593 = vrcp.pop %v1577
    %v1594 = vmul.f32 %v1577, %v1593
    %v1595 = vsub.f32 1.0, %v1594
    %v1596 = vmul.f32 %v1593, %v1595
    %v1597 = vadd.f32 %v1593, %v1596
    %vm1598 = vweird.f32 %v1577
    %vm1599 = vweird.f32 %v1593
    %vm1600 = vmor %vm1598, %vm1599
    %v1601 = vsel %vm1600, %v1593, %v1597
    %v1602 = vand.u32 2147483647, %v1577
    %vm1603 = vcmp.eq.f32.partialorder %v1602, 8.507059e+37
    %v1604 = vand.u32 %v1577, 2147483648
    %v1605 = vor.u32 1.1754944e-38, %v1604
    %v1606 = vsel %vm1603, %v1605, %v1601
    %v1607 = vmul.f32 1.0, %v1606
    %1609 = vst [vmem:[#allocation1] ss:$4 sm:$0xff] %v276
    %v1610 = vld.sshfl [vmem:[#allocation1] sm:$0xff pattern:$0x73625140]
    %v1611 = vld.sshfl [vmem:[#allocation1 + $0x8] sm:$0xff pattern:$0x73625140]
    %v1614 = vmul.f32 %v1552, %v1610
    %v1615 = vmul.f32 %v1567, %v1611
    %v1616 = vmul.f32 %v1514, %v1568
    %v1617 = vmul.f32 %v1529, %v1569
    %v1618 = vadd.f32 %v1614, %v1616
    %v1619 = vadd.f32 %v1615, %v1617
    %v1620 = vtanh.pop %v1618
    %v1621 = vtanh.pop %v1619
    %v1622 = vmul.f32 %v1592, %v1620
    %v1623 = vmul.f32 %v1607, %v1621
    %v1624 = vld [vmem:[#allocation5] sm:$0xff]
    %v1625 = vld [vmem:[#allocation5 + $0x8] sm:$0xff]
    %v1626 = vld [vmem:[#allocation5 + $0x10] sm:$0xff]
    %v1627 = vld [vmem:[#allocation5 + $0x18] sm:$0xff]
    %v1628 = vpack.c.bf16 %v1625, %v1624
    %v1629 = vpack.c.bf16 %v1627, %v1626
    %v1630 = vpack.c.bf16 %v1622, %v1622
    %v1631 = vpack.c.bf16 %v1623, %v1623
    %v1632 = vld [vmem:[#allocation16] sm:$0xff]
    %v1633 = vld [vmem:[#allocation16 + $0x8] sm:$0xff]
    %v1634 = vld [vmem:[#allocation16 + $0x10] sm:$0xff]
    %v1635 = vld [vmem:[#allocation16 + $0x18] sm:$0xff]
    %v1636 = vld [vmem:[#allocation16 + $0x20] sm:$0xff]
    %v1637 = vld [vmem:[#allocation16 + $0x28] sm:$0xff]
    %v1638 = vld [vmem:[#allocation16 + $0x30] sm:$0xff]
    %v1639 = vld [vmem:[#allocation16 + $0x38] sm:$0xff]
    %v1640 = vld [vmem:[#allocation16 + $0x40] sm:$0xff]
    %v1641 = vld [vmem:[#allocation16 + $0x48] sm:$0xff]
    %v1642 = vld [vmem:[#allocation16 + $0x50] sm:$0xff]
    %v1643 = vld [vmem:[#allocation16 + $0x58] sm:$0xff]
    %v1644 = vld [vmem:[#allocation16 + $0x60] sm:$0xff]
    %v1645 = vld [vmem:[#allocation16 + $0x68] sm:$0xff]
    %v1646 = vld [vmem:[#allocation16 + $0x70] sm:$0xff]
    %v1647 = vld [vmem:[#allocation16 + $0x78] sm:$0xff]
    %v1648 = vld [vmem:[#allocation16 + $0x80] sm:$0xff]
    %v1649 = vld [vmem:[#allocation16 + $0x88] sm:$0xff]
    %v1650 = vld [vmem:[#allocation16 + $0x90] sm:$0xff]
    %v1651 = vld [vmem:[#allocation16 + $0x98] sm:$0xff]
    %v1652 = vld [vmem:[#allocation16 + $0xa0] sm:$0xff]
    %v1653 = vld [vmem:[#allocation16 + $0xa8] sm:$0xff]
    %v1654 = vld [vmem:[#allocation16 + $0xb0] sm:$0xff]
    %v1655 = vld [vmem:[#allocation16 + $0xb8] sm:$0xff]
    %v1656 = vld [vmem:[#allocation16 + $0xc0] sm:$0xff]
    %v1657 = vld [vmem:[#allocation16 + $0xc8] sm:$0xff]
    %v1658 = vld [vmem:[#allocation16 + $0xd0] sm:$0xff]
    %v1659 = vld [vmem:[#allocation16 + $0xd8] sm:$0xff]
    %v1660 = vld [vmem:[#allocation16 + $0xe0] sm:$0xff]
    %v1661 = vld [vmem:[#allocation16 + $0xe8] sm:$0xff]
    %v1662 = vld [vmem:[#allocation16 + $0xf0] sm:$0xff]
    %v1663 = vld [vmem:[#allocation16 + $0xf8] sm:$0xff]
    %v1696 = vunpack.c.l.b16 %v1632
    %v1697 = vunpack.c.h.b16 %v1632
    %v1698 = vunpack.c.l.b16 %v1633
    %v1699 = vunpack.c.h.b16 %v1633
    %v1700 = vunpack.c.l.b16 %v1634
    %v1701 = vunpack.c.h.b16 %v1634
    %v1702 = vunpack.c.l.b16 %v1635
    %v1703 = vunpack.c.h.b16 %v1635
    %v1704 = vunpack.c.l.b16 %v1636
    %v1705 = vunpack.c.h.b16 %v1636
    %v1706 = vunpack.c.l.b16 %v1637
    %v1707 = vunpack.c.h.b16 %v1637
    %v1708 = vunpack.c.l.b16 %v1638
    %v1709 = vunpack.c.h.b16 %v1638
    %v1710 = vunpack.c.l.b16 %v1639
    %v1711 = vunpack.c.h.b16 %v1639
    %v1712 = vunpack.c.l.b16 %v1640
    %v1713 = vunpack.c.h.b16 %v1640
    %v1714 = vunpack.c.l.b16 %v1641
    %v1715 = vunpack.c.h.b16 %v1641
    %v1716 = vunpack.c.l.b16 %v1642
    %v1717 = vunpack.c.h.b16 %v1642
    %v1718 = vunpack.c.l.b16 %v1643
    %v1719 = vunpack.c.h.b16 %v1643
    %v1720 = vunpack.c.l.b16 %v1644
    %v1721 = vunpack.c.h.b16 %v1644
    %v1722 = vunpack.c.l.b16 %v1645
    %v1723 = vunpack.c.h.b16 %v1645
    %v1724 = vunpack.c.l.b16 %v1646
    %v1725 = vunpack.c.h.b16 %v1646
    %v1726 = vunpack.c.l.b16 %v1647
    %v1727 = vunpack.c.h.b16 %v1647
    %v1728 = vunpack.c.l.b16 %v1648
    %v1729 = vunpack.c.h.b16 %v1648
    %v1730 = vunpack.c.l.b16 %v1649
    %v1731 = vunpack.c.h.b16 %v1649
    %v1732 = vunpack.c.l.b16 %v1650
    %v1733 = vunpack.c.h.b16 %v1650
    %v1734 = vunpack.c.l.b16 %v1651
    %v1735 = vunpack.c.h.b16 %v1651
    %v1736 = vunpack.c.l.b16 %v1652
    %v1737 = vunpack.c.h.b16 %v1652
    %v1738 = vunpack.c.l.b16 %v1653
    %v1739 = vunpack.c.h.b16 %v1653
    %v1740 = vunpack.c.l.b16 %v1654
    %v1741 = vunpack.c.h.b16 %v1654
    %v1742 = vunpack.c.l.b16 %v1655
    %v1743 = vunpack.c.h.b16 %v1655
    %v1744 = vunpack.c.l.b16 %v1656
    %v1745 = vunpack.c.h.b16 %v1656
    %v1746 = vunpack.c.l.b16 %v1657
    %v1747 = vunpack.c.h.b16 %v1657
    %v1748 = vunpack.c.l.b16 %v1658
    %v1749 = vunpack.c.h.b16 %v1658
    %v1750 = vunpack.c.l.b16 %v1659
    %v1751 = vunpack.c.h.b16 %v1659
    %v1752 = vunpack.c.l.b16 %v1660
    %v1753 = vunpack.c.h.b16 %v1660
    %v1754 = vunpack.c.l.b16 %v1661
    %v1755 = vunpack.c.h.b16 %v1661
    %v1756 = vunpack.c.l.b16 %v1662
    %v1757 = vunpack.c.h.b16 %v1662
    %v1758 = vunpack.c.l.b16 %v1663
    %v1759 = vunpack.c.h.b16 %v1663
    %v1760 = vpack.c.b16 %v1698, %v1696
    %v1761 = vpack.c.b16 %v1699, %v1697
    %v1762 = vpack.c.b16 %v1702, %v1700
    %v1763 = vpack.c.b16 %v1703, %v1701
    %v1764 = vpack.c.b16 %v1706, %v1704
    %v1765 = vpack.c.b16 %v1707, %v1705
    %v1766 = vpack.c.b16 %v1710, %v1708
    %v1767 = vpack.c.b16 %v1711, %v1709
    %v1768 = vpack.c.b16 %v1714, %v1712
    %v1769 = vpack.c.b16 %v1715, %v1713
    %v1770 = vpack.c.b16 %v1718, %v1716
    %v1771 = vpack.c.b16 %v1719, %v1717
    %v1772 = vpack.c.b16 %v1722, %v1720
    %v1773 = vpack.c.b16 %v1723, %v1721
    %v1774 = vpack.c.b16 %v1726, %v1724
    %v1775 = vpack.c.b16 %v1727, %v1725
    %v1776 = vpack.c.b16 %v1730, %v1728
    %v1777 = vpack.c.b16 %v1731, %v1729
    %v1778 = vpack.c.b16 %v1734, %v1732
    %v1779 = vpack.c.b16 %v1735, %v1733
    %v1780 = vpack.c.b16 %v1738, %v1736
    %v1781 = vpack.c.b16 %v1739, %v1737
    %v1782 = vpack.c.b16 %v1742, %v1740
    %v1783 = vpack.c.b16 %v1743, %v1741
    %v1784 = vpack.c.b16 %v1746, %v1744
    %v1785 = vpack.c.b16 %v1747, %v1745
    %v1786 = vpack.c.b16 %v1750, %v1748
    %v1787 = vpack.c.b16 %v1751, %v1749
    %v1788 = vpack.c.b16 %v1754, %v1752
    %v1789 = vpack.c.b16 %v1755, %v1753
    %v1790 = vpack.c.b16 %v1758, %v1756
    %v1791 = vpack.c.b16 %v1759, %v1757
    %1824 = vmatpush.bf16.msra.mxu0 %v1774
    %1825 = vmatpush.bf16.msra.mxu0 %v1772
    %1826 = vmatpush.bf16.msra.mxu0 %v1770
    %1827 = vmatpush.bf16.msra.mxu0 %v1768
    %1828 = vmatpush.bf16.msra.mxu0 %v1766
    %1829 = vmatpush.bf16.msra.mxu0 %v1764
    %1830 = vmatpush.bf16.msra.mxu0 %v1762
    %1831 = vmatpush.bf16.msra.mxu0 %v1760
    %1832 = vmatmul.bf16.gmra.mxu0 %v1630
    %v1833 = vpop.f32.mrf.mxu0
    %v1834 = vadd.f32 0.0, %v1833
    %v1835 = vpop.f32.mrf.mxu0
    %1836 = vdwg.mxu0
    %1837 = vmatpush.bf16.msra.mxu0 %v1790
    %1838 = vmatpush.bf16.msra.mxu0 %v1788
    %1839 = vmatpush.bf16.msra.mxu0 %v1786
    %1840 = vmatpush.bf16.msra.mxu0 %v1784
    %1841 = vmatpush.bf16.msra.mxu0 %v1782
    %1842 = vmatpush.bf16.msra.mxu0 %v1780
    %1843 = vmatpush.bf16.msra.mxu0 %v1778
    %1844 = vmatpush.bf16.msra.mxu0 %v1776
    %1845 = vmatmul.bf16.gmra.mxu0 %v1631
    %v1846 = vpop.f32.mrf.mxu0
    %v1847 = vadd.f32 %v1834, %v1846
    %v1848 = vpop.f32.mrf.mxu0
    %1849 = vdwg.mxu0
    %1850 = vmatpush.bf16.msra.mxu0 %v1775
    %1851 = vmatpush.bf16.msra.mxu0 %v1773
    %1852 = vmatpush.bf16.msra.mxu0 %v1771
    %1853 = vmatpush.bf16.msra.mxu0 %v1769
    %1854 = vmatpush.bf16.msra.mxu0 %v1767
    %1855 = vmatpush.bf16.msra.mxu0 %v1765
    %1856 = vmatpush.bf16.msra.mxu0 %v1763
    %1857 = vmatpush.bf16.msra.mxu0 %v1761
    %1858 = vmatmul.bf16.gmra.mxu0 %v1630
    %v1859 = vpop.f32.mrf.mxu0
    %v1860 = vadd.f32 0.0, %v1859
    %v1861 = vpop.f32.mrf.mxu0
    %1862 = vdwg.mxu0
    %1863 = vmatpush.bf16.msra.mxu0 %v1791
    %1864 = vmatpush.bf16.msra.mxu0 %v1789
    %1865 = vmatpush.bf16.msra.mxu0 %v1787
    %1866 = vmatpush.bf16.msra.mxu0 %v1785
    %1867 = vmatpush.bf16.msra.mxu0 %v1783
    %1868 = vmatpush.bf16.msra.mxu0 %v1781
    %1869 = vmatpush.bf16.msra.mxu0 %v1779
    %1870 = vmatpush.bf16.msra.mxu0 %v1777
    %1871 = vmatmul.bf16.gmra.mxu0 %v1631
    %v1872 = vpop.f32.mrf.mxu0
    %v1873 = vadd.f32 %v1860, %v1872
    %v1874 = vpop.f32.mrf.mxu0
    %1875 = vdwg.mxu0
    %v1878 = vrot.slane %v1873, 7
    %vm1879 = vcmask 1040384
    %v1880 = vsel %vm1879, %v1847, %v1878
    %vm1881 = vcmask 1041409
    %v1882 = vsel %vm1881, %v1847, %v1878
    %v1883 = vrot.slane %v1882, 1
    %v1884 = vperm.slane %v1880, 0
    %v1885 = vperm.slane %v1880, 1
    %v1886 = vperm.slane %v1883, 0
    %v1887 = vperm.slane %v1883, 1
    %v1892 = vpack.c.bf16 %v1885, %v1884
    %v1893 = vpack.c.bf16 %v1887, %v1886
    %v1895 = vunpack.c.l.b16 %v1892
    %v1896 = vunpack.c.h.b16 %v1892
    %v1897 = vpack.c.b16 %v1895, %v1895
    %v1898 = vpack.c.b16 %v1896, %v1896
    %v1902 = vunpack.c.l.b16 %v1628
    %v1903 = vunpack.c.h.b16 %v1628
    %v1904 = vpack.c.b16 %v1902, %v1902
    %v1905 = vpack.c.b16 %v1903, %v1903
    %1908 = vmatpush.bf16.xpose.msra.mxu0 0
    %1909 = vmatpush.bf16.xpose.msra.mxu0 0
    %1910 = vmatpush.bf16.xpose.msra.mxu0 0
    %1911 = vmatpush.bf16.xpose.msra.mxu0 0
    %1912 = vmatpush.bf16.xpose.msra.mxu0 0
    %1913 = vmatpush.bf16.xpose.msra.mxu0 0
    %1914 = vmatpush.bf16.xpose.msra.mxu0 0
    %1915 = vmatpush.bf16.xpose.msra.mxu0 %v1904
    %1916 = vmatmul.bf16.gmra.mxu0 %v1897
    %v1917 = vpop.f32.mrf.mxu0
    %v1918 = vadd.f32 0.0, %v1917
    %v1919 = vpop.f32.mrf.mxu0
    %1920 = vdwg.mxu0
    %1921 = vmatpush.bf16.xpose.msra.mxu0 0
    %1922 = vmatpush.bf16.xpose.msra.mxu0 0
    %1923 = vmatpush.bf16.xpose.msra.mxu0 0
    %1924 = vmatpush.bf16.xpose.msra.mxu0 0
    %1925 = vmatpush.bf16.xpose.msra.mxu0 0
    %1926 = vmatpush.bf16.xpose.msra.mxu0 0
    %1927 = vmatpush.bf16.xpose.msra.mxu0 0
    %1928 = vmatpush.bf16.xpose.msra.mxu0 %v1905
    %1929 = vmatmul.bf16.gmra.mxu0 %v1898
    %v1930 = vpop.f32.mrf.mxu0
    %v1931 = vadd.f32 %v1918, %v1930
    %v1932 = vpop.f32.mrf.mxu0
    %1933 = vdwg.mxu0
    %v1935 = vunpack.c.l.b16 %v1893
    %v1936 = vunpack.c.h.b16 %v1893
    %v1937 = vpack.c.b16 %v1935, %v1935
    %v1938 = vpack.c.b16 %v1936, %v1936
    %v1942 = vunpack.c.l.b16 %v1629
    %v1943 = vunpack.c.h.b16 %v1629
    %v1944 = vpack.c.b16 %v1942, %v1942
    %v1945 = vpack.c.b16 %v1943, %v1943
    %1948 = vmatpush.bf16.xpose.msra.mxu0 0
    %1949 = vmatpush.bf16.xpose.msra.mxu0 0
    %1950 = vmatpush.bf16.xpose.msra.mxu0 0
    %1951 = vmatpush.bf16.xpose.msra.mxu0 0
    %1952 = vmatpush.bf16.xpose.msra.mxu0 0
    %1953 = vmatpush.bf16.xpose.msra.mxu0 0
    %1954 = vmatpush.bf16.xpose.msra.mxu0 0
    %1955 = vmatpush.bf16.xpose.msra.mxu0 %v1944
    %1956 = vmatmul.bf16.gmra.mxu0 %v1937
    %v1957 = vpop.f32.mrf.mxu0
    %v1958 = vadd.f32 0.0, %v1957
    %v1959 = vpop.f32.mrf.mxu0
    %1960 = vdwg.mxu0
    %1961 = vmatpush.bf16.xpose.msra.mxu0 0
    %1962 = vmatpush.bf16.xpose.msra.mxu0 0
    %1963 = vmatpush.bf16.xpose.msra.mxu0 0
    %1964 = vmatpush.bf16.xpose.msra.mxu0 0
    %1965 = vmatpush.bf16.xpose.msra.mxu0 0
    %1966 = vmatpush.bf16.xpose.msra.mxu0 0
    %1967 = vmatpush.bf16.xpose.msra.mxu0 0
    %1968 = vmatpush.bf16.xpose.msra.mxu0 %v1945
    %1969 = vmatmul.bf16.gmra.mxu0 %v1938
    %v1970 = vpop.f32.mrf.mxu0
    %v1971 = vadd.f32 %v1958, %v1970
    %v1972 = vpop.f32.mrf.mxu0
    %1973 = vdwg.mxu0
    %v1976 = vrot.slane %v1971, 7
    %v1977 = vsel %vm1881, %v1976, %v1931
    %vm1979 = vcmask 58368
    %v1980 = vsel %vm1979, %v1977, -inf
    %1981 = vmax.xlane.f32.xlu0 %v1980
    %v1982 = vpop.xlane.xlu0 %1981
    %v1984 = vrot.slane %v1982, 1
    %v1987 = vsub.f32 %v1931, %v1982
    %v1988 = vsub.f32 %v1971, %v1984
    %v1989 = vmul.f32 %v1987, 1.442695
    %v1990 = vpow.pop %v1989
    %v1991 = vmul.f32 %v1988, 1.442695
    %v1992 = vpow.pop %v1991
    %v1995 = vrot.slane %v1992, 7
    %v1996 = vsel %vm1881, %v1995, %v1990
    %v1998 = vsel %vm1979, %v1996, 0.0
    %1999 = vadd.xlane.f32.xlu0 %v1998
    %v2000 = vpop.xlane.xlu0 %1999
    %v2002 = vrot.slane %v2000, 1
    %v2005 = vrcp.pop %v2000
    %v2006 = vmul.f32 %v2000, %v2005
    %v2007 = vsub.f32 1.0, %v2006
    %v2008 = vmul.f32 %v2005, %v2007
    %v2009 = vadd.f32 %v2005, %v2008
    %vm2010 = vweird.f32 %v2000
    %vm2011 = vweird.f32 %v2005
    %vm2012 = vmor %vm2010, %vm2011
    %v2013 = vsel %vm2012, %v2005, %v2009
    %v2014 = vand.u32 2147483647, %v2000
    %vm2015 = vcmp.eq.f32.partialorder %v2014, 8.507059e+37
    %v2016 = vand.u32 %v2000, 2147483648
    %v2017 = vor.u32 1.1754944e-38, %v2016
    %v2018 = vsel %vm2015, %v2017, %v2013
    %v2019 = vmul.f32 %v1990, %v2018
    %v2020 = vrcp.pop %v2002
    %v2021 = vmul.f32 %v2002, %v2020
    %v2022 = vsub.f32 1.0, %v2021
    %v2023 = vmul.f32 %v2020, %v2022
    %v2024 = vadd.f32 %v2020, %v2023
    %vm2025 = vweird.f32 %v2002
    %vm2026 = vweird.f32 %v2020
    %vm2027 = vmor %vm2025, %vm2026
    %v2028 = vsel %vm2027, %v2020, %v2024
    %v2029 = vand.u32 2147483647, %v2002
    %vm2030 = vcmp.eq.f32.partialorder %v2029, 8.507059e+37
    %v2031 = vand.u32 %v2002, 2147483648
    %v2032 = vor.u32 1.1754944e-38, %v2031
    %v2033 = vsel %vm2030, %v2032, %v2028
    %v2034 = vmul.f32 %v1992, %v2033
    %v2035 = vpack.c.bf16 %v2019, %v2019
    %v2036 = vpack.c.bf16 %v2034, %v2034
    %vm2037 = vcmask 64512
    %v2039 = vsel %vm2037, %v2035, 0
    %vm2041 = vcmask 1043456
    %v2043 = vsel %vm2041, %v1904, 0
    %v2046 = vsel %vm2041, %v1905, 0
    %2048 = vmatpush.bf16.msra.mxu0 0
    %2049 = vmatpush.bf16.msra.mxu0 0
    %2050 = vmatpush.bf16.msra.mxu0 0
    %2051 = vmatpush.bf16.msra.mxu0 0
    %2052 = vmatpush.bf16.msra.mxu0 0
    %2053 = vmatpush.bf16.msra.mxu0 0
    %2054 = vmatpush.bf16.msra.mxu0 0
    %2055 = vmatpush.bf16.msra.mxu0 %v2043
    %2056 = vmatmul.bf16.gmra.mxu0 %v2039
    %v2057 = vpop.f32.mrf.mxu0
    %v2058 = vadd.f32 0.0, %v2057
    %v2059 = vpop.f32.mrf.mxu0
    %2060 = vdwg.mxu0
    %2061 = vmatpush.bf16.msra.mxu0 0
    %2062 = vmatpush.bf16.msra.mxu0 0
    %2063 = vmatpush.bf16.msra.mxu0 0
    %2064 = vmatpush.bf16.msra.mxu0 0
    %2065 = vmatpush.bf16.msra.mxu0 0
    %2066 = vmatpush.bf16.msra.mxu0 0
    %2067 = vmatpush.bf16.msra.mxu0 0
    %2068 = vmatpush.bf16.msra.mxu0 %v2046
    %2069 = vmatmul.bf16.gmra.mxu0 %v2039
    %v2070 = vpop.f32.mrf.mxu0
    %v2071 = vadd.f32 0.0, %v2070
    %v2072 = vpop.f32.mrf.mxu0
    %2073 = vdwg.mxu0
    %v2075 = vsel %vm2037, %v2036, 0
    %v2078 = vsel %vm2041, %v1944, 0
    %v2081 = vsel %vm2041, %v1945, 0
    %2083 = vmatpush.bf16.msra.mxu0 0
    %2084 = vmatpush.bf16.msra.mxu0 0
    %2085 = vmatpush.bf16.msra.mxu0 0
    %2086 = vmatpush.bf16.msra.mxu0 0
    %2087 = vmatpush.bf16.msra.mxu0 0
    %2088 = vmatpush.bf16.msra.mxu0 0
    %2089 = vmatpush.bf16.msra.mxu0 0
    %2090 = vmatpush.bf16.msra.mxu0 %v2078
    %2091 = vmatmul.bf16.gmra.mxu0 %v2075
    %v2092 = vpop.f32.mrf.mxu0
    %v2093 = vadd.f32 0.0, %v2092
    %v2094 = vpop.f32.mrf.mxu0
    %2095 = vdwg.mxu0
    %2096 = vmatpush.bf16.msra.mxu0 0
    %2097 = vmatpush.bf16.msra.mxu0 0
    %2098 = vmatpush.bf16.msra.mxu0 0
    %2099 = vmatpush.bf16.msra.mxu0 0
    %2100 = vmatpush.bf16.msra.mxu0 0
    %2101 = vmatpush.bf16.msra.mxu0 0
    %2102 = vmatpush.bf16.msra.mxu0 0
    %2103 = vmatpush.bf16.msra.mxu0 %v2081
    %2104 = vmatmul.bf16.gmra.mxu0 %v2075
    %v2105 = vpop.f32.mrf.mxu0
    %v2106 = vadd.f32 0.0, %v2105
    %v2107 = vpop.f32.mrf.mxu0
    %2108 = vdwg.mxu0
    %v2109 = vpack.c.bf16 %v2058, %v2058
    %v2110 = vpack.c.bf16 %v2071, %v2071
    %v2111 = vpack.c.bf16 %v2093, %v2093
    %v2112 = vpack.c.bf16 %v2106, %v2106
    %v2113 = vld [vmem:[#allocation17] sm:$0xff]
    %v2114 = vld [vmem:[#allocation17 + $0x8] sm:$0xff]
    %v2115 = vld [vmem:[#allocation17 + $0x10] sm:$0xff]
    %v2116 = vld [vmem:[#allocation17 + $0x18] sm:$0xff]
    %v2117 = vld [vmem:[#allocation17 + $0x20] sm:$0xff]
    %v2118 = vld [vmem:[#allocation17 + $0x28] sm:$0xff]
    %v2119 = vld [vmem:[#allocation17 + $0x30] sm:$0xff]
    %v2120 = vld [vmem:[#allocation17 + $0x38] sm:$0xff]
    %v2121 = vld [vmem:[#allocation17 + $0x40] sm:$0xff]
    %v2122 = vld [vmem:[#allocation17 + $0x48] sm:$0xff]
    %v2123 = vld [vmem:[#allocation17 + $0x50] sm:$0xff]
    %v2124 = vld [vmem:[#allocation17 + $0x58] sm:$0xff]
    %v2125 = vld [vmem:[#allocation17 + $0x60] sm:$0xff]
    %v2126 = vld [vmem:[#allocation17 + $0x68] sm:$0xff]
    %v2127 = vld [vmem:[#allocation17 + $0x70] sm:$0xff]
    %v2128 = vld [vmem:[#allocation17 + $0x78] sm:$0xff]
    %v2129 = vld [vmem:[#allocation17 + $0x80] sm:$0xff]
    %v2130 = vld [vmem:[#allocation17 + $0x88] sm:$0xff]
    %v2131 = vld [vmem:[#allocation17 + $0x90] sm:$0xff]
    %v2132 = vld [vmem:[#allocation17 + $0x98] sm:$0xff]
    %v2133 = vld [vmem:[#allocation17 + $0xa0] sm:$0xff]
    %v2134 = vld [vmem:[#allocation17 + $0xa8] sm:$0xff]
    %v2135 = vld [vmem:[#allocation17 + $0xb0] sm:$0xff]
    %v2136 = vld [vmem:[#allocation17 + $0xb8] sm:$0xff]
    %v2137 = vld [vmem:[#allocation17 + $0xc0] sm:$0xff]
    %v2138 = vld [vmem:[#allocation17 + $0xc8] sm:$0xff]
    %v2139 = vld [vmem:[#allocation17 + $0xd0] sm:$0xff]
    %v2140 = vld [vmem:[#allocation17 + $0xd8] sm:$0xff]
    %v2141 = vld [vmem:[#allocation17 + $0xe0] sm:$0xff]
    %v2142 = vld [vmem:[#allocation17 + $0xe8] sm:$0xff]
    %v2143 = vld [vmem:[#allocation17 + $0xf0] sm:$0xff]
    %v2144 = vld [vmem:[#allocation17 + $0xf8] sm:$0xff]
    %v2145 = vld [vmem:[#allocation17 + $0x100] sm:$0xff]
    %v2146 = vld [vmem:[#allocation17 + $0x108] sm:$0xff]
    %v2147 = vld [vmem:[#allocation17 + $0x110] sm:$0xff]
    %v2148 = vld [vmem:[#allocation17 + $0x118] sm:$0xff]
    %v2149 = vld [vmem:[#allocation17 + $0x120] sm:$0xff]
    %v2150 = vld [vmem:[#allocation17 + $0x128] sm:$0xff]
    %v2151 = vld [vmem:[#allocation17 + $0x130] sm:$0xff]
    %v2152 = vld [vmem:[#allocation17 + $0x138] sm:$0xff]
    %v2153 = vld [vmem:[#allocation17 + $0x140] sm:$0xff]
    %v2154 = vld [vmem:[#allocation17 + $0x148] sm:$0xff]
    %v2155 = vld [vmem:[#allocation17 + $0x150] sm:$0xff]
    %v2156 = vld [vmem:[#allocation17 + $0x158] sm:$0xff]
    %v2157 = vld [vmem:[#allocation17 + $0x160] sm:$0xff]
    %v2158 = vld [vmem:[#allocation17 + $0x168] sm:$0xff]
    %v2159 = vld [vmem:[#allocation17 + $0x170] sm:$0xff]
    %v2160 = vld [vmem:[#allocation17 + $0x178] sm:$0xff]
    %v2161 = vld [vmem:[#allocation17 + $0x180] sm:$0xff]
    %v2162 = vld [vmem:[#allocation17 + $0x188] sm:$0xff]
    %v2163 = vld [vmem:[#allocation17 + $0x190] sm:$0xff]
    %v2164 = vld [vmem:[#allocation17 + $0x198] sm:$0xff]
    %v2165 = vld [vmem:[#allocation17 + $0x1a0] sm:$0xff]
    %v2166 = vld [vmem:[#allocation17 + $0x1a8] sm:$0xff]
    %v2167 = vld [vmem:[#allocation17 + $0x1b0] sm:$0xff]
    %v2168 = vld [vmem:[#allocation17 + $0x1b8] sm:$0xff]
    %v2169 = vld [vmem:[#allocation17 + $0x1c0] sm:$0xff]
    %v2170 = vld [vmem:[#allocation17 + $0x1c8] sm:$0xff]
    %v2171 = vld [vmem:[#allocation17 + $0x1d0] sm:$0xff]
    %v2172 = vld [vmem:[#allocation17 + $0x1d8] sm:$0xff]
    %v2173 = vld [vmem:[#allocation17 + $0x1e0] sm:$0xff]
    %v2174 = vld [vmem:[#allocation17 + $0x1e8] sm:$0xff]
    %v2175 = vld [vmem:[#allocation17 + $0x1f0] sm:$0xff]
    %v2176 = vld [vmem:[#allocation17 + $0x1f8] sm:$0xff]
    %v2209 = vunpack.c.l.b16 %v2145
    %v2210 = vunpack.c.h.b16 %v2145
    %v2211 = vunpack.c.l.b16 %v2146
    %v2212 = vunpack.c.h.b16 %v2146
    %v2213 = vunpack.c.l.b16 %v2147
    %v2214 = vunpack.c.h.b16 %v2147
    %v2215 = vunpack.c.l.b16 %v2148
    %v2216 = vunpack.c.h.b16 %v2148
    %v2217 = vunpack.c.l.b16 %v2149
    %v2218 = vunpack.c.h.b16 %v2149
    %v2219 = vunpack.c.l.b16 %v2150
    %v2220 = vunpack.c.h.b16 %v2150
    %v2221 = vunpack.c.l.b16 %v2151
    %v2222 = vunpack.c.h.b16 %v2151
    %v2223 = vunpack.c.l.b16 %v2152
    %v2224 = vunpack.c.h.b16 %v2152
    %v2225 = vunpack.c.l.b16 %v2153
    %v2226 = vunpack.c.h.b16 %v2153
    %v2227 = vunpack.c.l.b16 %v2154
    %v2228 = vunpack.c.h.b16 %v2154
    %v2229 = vunpack.c.l.b16 %v2155
    %v2230 = vunpack.c.h.b16 %v2155
    %v2231 = vunpack.c.l.b16 %v2156
    %v2232 = vunpack.c.h.b16 %v2156
    %v2233 = vunpack.c.l.b16 %v2157
    %v2234 = vunpack.c.h.b16 %v2157
    %v2235 = vunpack.c.l.b16 %v2158
    %v2236 = vunpack.c.h.b16 %v2158
    %v2237 = vunpack.c.l.b16 %v2159
    %v2238 = vunpack.c.h.b16 %v2159
    %v2239 = vunpack.c.l.b16 %v2160
    %v2240 = vunpack.c.h.b16 %v2160
    %v2241 = vunpack.c.l.b16 %v2161
    %v2242 = vunpack.c.h.b16 %v2161
    %v2243 = vunpack.c.l.b16 %v2162
    %v2244 = vunpack.c.h.b16 %v2162
    %v2245 = vunpack.c.l.b16 %v2163
    %v2246 = vunpack.c.h.b16 %v2163
    %v2247 = vunpack.c.l.b16 %v2164
    %v2248 = vunpack.c.h.b16 %v2164
    %v2249 = vunpack.c.l.b16 %v2165
    %v2250 = vunpack.c.h.b16 %v2165
    %v2251 = vunpack.c.l.b16 %v2166
    %v2252 = vunpack.c.h.b16 %v2166
    %v2253 = vunpack.c.l.b16 %v2167
    %v2254 = vunpack.c.h.b16 %v2167
    %v2255 = vunpack.c.l.b16 %v2168
    %v2256 = vunpack.c.h.b16 %v2168
    %v2257 = vunpack.c.l.b16 %v2169
    %v2258 = vunpack.c.h.b16 %v2169
    %v2259 = vunpack.c.l.b16 %v2170
    %v2260 = vunpack.c.h.b16 %v2170
    %v2261 = vunpack.c.l.b16 %v2171
    %v2262 = vunpack.c.h.b16 %v2171
    %v2263 = vunpack.c.l.b16 %v2172
    %v2264 = vunpack.c.h.b16 %v2172
    %v2265 = vunpack.c.l.b16 %v2173
    %v2266 = vunpack.c.h.b16 %v2173
    %v2267 = vunpack.c.l.b16 %v2174
    %v2268 = vunpack.c.h.b16 %v2174
    %v2269 = vunpack.c.l.b16 %v2175
    %v2270 = vunpack.c.h.b16 %v2175
    %v2271 = vunpack.c.l.b16 %v2176
    %v2272 = vunpack.c.h.b16 %v2176
    %v2273 = vpack.c.b16 %v2211, %v2209
    %v2274 = vpack.c.b16 %v2212, %v2210
    %v2275 = vpack.c.b16 %v2215, %v2213
    %v2276 = vpack.c.b16 %v2216, %v2214
    %v2277 = vpack.c.b16 %v2219, %v2217
    %v2278 = vpack.c.b16 %v2220, %v2218
    %v2279 = vpack.c.b16 %v2223, %v2221
    %v2280 = vpack.c.b16 %v2224, %v2222
    %v2281 = vpack.c.b16 %v2227, %v2225
    %v2282 = vpack.c.b16 %v2228, %v2226
    %v2283 = vpack.c.b16 %v2231, %v2229
    %v2284 = vpack.c.b16 %v2232, %v2230
    %v2285 = vpack.c.b16 %v2235, %v2233
    %v2286 = vpack.c.b16 %v2236, %v2234
    %v2287 = vpack.c.b16 %v2239, %v2237
    %v2288 = vpack.c.b16 %v2240, %v2238
    %v2289 = vpack.c.b16 %v2243, %v2241
    %v2290 = vpack.c.b16 %v2244, %v2242
    %v2291 = vpack.c.b16 %v2247, %v2245
    %v2292 = vpack.c.b16 %v2248, %v2246
    %v2293 = vpack.c.b16 %v2251, %v2249
    %v2294 = vpack.c.b16 %v2252, %v2250
    %v2295 = vpack.c.b16 %v2255, %v2253
    %v2296 = vpack.c.b16 %v2256, %v2254
    %v2297 = vpack.c.b16 %v2259, %v2257
    %v2298 = vpack.c.b16 %v2260, %v2258
    %v2299 = vpack.c.b16 %v2263, %v2261
    %v2300 = vpack.c.b16 %v2264, %v2262
    %v2301 = vpack.c.b16 %v2267, %v2265
    %v2302 = vpack.c.b16 %v2268, %v2266
    %v2303 = vpack.c.b16 %v2271, %v2269
    %v2304 = vpack.c.b16 %v2272, %v2270
    %2337 = vmatpush.bf16.msra.mxu0 %v2287
    %2338 = vmatpush.bf16.msra.mxu0 %v2285
    %2339 = vmatpush.bf16.msra.mxu0 %v2283
    %2340 = vmatpush.bf16.msra.mxu0 %v2281
    %2341 = vmatpush.bf16.msra.mxu0 %v2279
    %2342 = vmatpush.bf16.msra.mxu0 %v2277
    %2343 = vmatpush.bf16.msra.mxu0 %v2275
    %2344 = vmatpush.bf16.msra.mxu0 %v2273
    %2345 = vmatmul.bf16.gmra.mxu0 %v1630
    %v2346 = vpop.f32.mrf.mxu0
    %v2347 = vadd.f32 0.0, %v2346
    %v2348 = vpop.f32.mrf.mxu0
    %2349 = vdwg.mxu0
    %2350 = vmatpush.bf16.msra.mxu0 %v2303
    %2351 = vmatpush.bf16.msra.mxu0 %v2301
    %2352 = vmatpush.bf16.msra.mxu0 %v2299
    %2353 = vmatpush.bf16.msra.mxu0 %v2297
    %2354 = vmatpush.bf16.msra.mxu0 %v2295
    %2355 = vmatpush.bf16.msra.mxu0 %v2293
    %2356 = vmatpush.bf16.msra.mxu0 %v2291
    %2357 = vmatpush.bf16.msra.mxu0 %v2289
    %2358 = vmatmul.bf16.gmra.mxu0 %v1631
    %v2359 = vpop.f32.mrf.mxu0
    %v2360 = vadd.f32 %v2347, %v2359
    %v2361 = vpop.f32.mrf.mxu0
    %2362 = vdwg.mxu0
    %2363 = vmatpush.bf16.msra.mxu0 %v2288
    %2364 = vmatpush.bf16.msra.mxu0 %v2286
    %2365 = vmatpush.bf16.msra.mxu0 %v2284
    %2366 = vmatpush.bf16.msra.mxu0 %v2282
    %2367 = vmatpush.bf16.msra.mxu0 %v2280
    %2368 = vmatpush.bf16.msra.mxu0 %v2278
    %2369 = vmatpush.bf16.msra.mxu0 %v2276
    %2370 = vmatpush.bf16.msra.mxu0 %v2274
    %2371 = vmatmul.bf16.gmra.mxu0 %v1630
    %v2372 = vpop.f32.mrf.mxu0
    %v2373 = vadd.f32 0.0, %v2372
    %v2374 = vpop.f32.mrf.mxu0
    %2375 = vdwg.mxu0
    %2376 = vmatpush.bf16.msra.mxu0 %v2304
    %2377 = vmatpush.bf16.msra.mxu0 %v2302
    %2378 = vmatpush.bf16.msra.mxu0 %v2300
    %2379 = vmatpush.bf16.msra.mxu0 %v2298
    %2380 = vmatpush.bf16.msra.mxu0 %v2296
    %2381 = vmatpush.bf16.msra.mxu0 %v2294
    %2382 = vmatpush.bf16.msra.mxu0 %v2292
    %2383 = vmatpush.bf16.msra.mxu0 %v2290
    %2384 = vmatmul.bf16.gmra.mxu0 %v1631
    %v2385 = vpop.f32.mrf.mxu0
    %v2386 = vadd.f32 %v2373, %v2385
    %v2387 = vpop.f32.mrf.mxu0
    %2388 = vdwg.mxu0
    %v2393 = vunpack.c.l.b16 %v2109
    %v2394 = vunpack.c.l.b16 %v2110
    %v2395 = vunpack.c.l.b16 %v2111
    %v2396 = vunpack.c.l.b16 %v2112
    %v2397 = vrot.slane %v2395, 7
    %v2398 = vsel %vm1881, %v2397, %v2393
    %v2399 = vrot.slane %v2396, 7
    %v2400 = vsel %vm1881, %v2399, %v2394
    %v2401 = vpack.c.b16 %v2398, %v2398
    %v2402 = vpack.c.b16 %v2400, %v2400
    %v2437 = vunpack.c.l.b16 %v2113
    %v2438 = vunpack.c.h.b16 %v2113
    %v2439 = vunpack.c.l.b16 %v2114
    %v2440 = vunpack.c.h.b16 %v2114
    %v2441 = vunpack.c.l.b16 %v2115
    %v2442 = vunpack.c.h.b16 %v2115
    %v2443 = vunpack.c.l.b16 %v2116
    %v2444 = vunpack.c.h.b16 %v2116
    %v2445 = vunpack.c.l.b16 %v2117
    %v2446 = vunpack.c.h.b16 %v2117
    %v2447 = vunpack.c.l.b16 %v2118
    %v2448 = vunpack.c.h.b16 %v2118
    %v2449 = vunpack.c.l.b16 %v2119
    %v2450 = vunpack.c.h.b16 %v2119
    %v2451 = vunpack.c.l.b16 %v2120
    %v2452 = vunpack.c.h.b16 %v2120
    %v2453 = vunpack.c.l.b16 %v2121
    %v2454 = vunpack.c.h.b16 %v2121
    %v2455 = vunpack.c.l.b16 %v2122
    %v2456 = vunpack.c.h.b16 %v2122
    %v2457 = vunpack.c.l.b16 %v2123
    %v2458 = vunpack.c.h.b16 %v2123
    %v2459 = vunpack.c.l.b16 %v2124
    %v2460 = vunpack.c.h.b16 %v2124
    %v2461 = vunpack.c.l.b16 %v2125
    %v2462 = vunpack.c.h.b16 %v2125
    %v2463 = vunpack.c.l.b16 %v2126
    %v2464 = vunpack.c.h.b16 %v2126
    %v2465 = vunpack.c.l.b16 %v2127
    %v2466 = vunpack.c.h.b16 %v2127
    %v2467 = vunpack.c.l.b16 %v2128
    %v2468 = vunpack.c.h.b16 %v2128
    %v2469 = vunpack.c.l.b16 %v2129
    %v2470 = vunpack.c.h.b16 %v2129
    %v2471 = vunpack.c.l.b16 %v2130
    %v2472 = vunpack.c.h.b16 %v2130
    %v2473 = vunpack.c.l.b16 %v2131
    %v2474 = vunpack.c.h.b16 %v2131
    %v2475 = vunpack.c.l.b16 %v2132
    %v2476 = vunpack.c.h.b16 %v2132
    %v2477 = vunpack.c.l.b16 %v2133
    %v2478 = vunpack.c.h.b16 %v2133
    %v2479 = vunpack.c.l.b16 %v2134
    %v2480 = vunpack.c.h.b16 %v2134
    %v2481 = vunpack.c.l.b16 %v2135
    %v2482 = vunpack.c.h.b16 %v2135
    %v2483 = vunpack.c.l.b16 %v2136
    %v2484 = vunpack.c.h.b16 %v2136
    %v2485 = vunpack.c.l.b16 %v2137
    %v2486 = vunpack.c.h.b16 %v2137
    %v2487 = vunpack.c.l.b16 %v2138
    %v2488 = vunpack.c.h.b16 %v2138
    %v2489 = vunpack.c.l.b16 %v2139
    %v2490 = vunpack.c.h.b16 %v2139
    %v2491 = vunpack.c.l.b16 %v2140
    %v2492 = vunpack.c.h.b16 %v2140
    %v2493 = vunpack.c.l.b16 %v2141
    %v2494 = vunpack.c.h.b16 %v2141
    %v2495 = vunpack.c.l.b16 %v2142
    %v2496 = vunpack.c.h.b16 %v2142
    %v2497 = vunpack.c.l.b16 %v2143
    %v2498 = vunpack.c.h.b16 %v2143
    %v2499 = vunpack.c.l.b16 %v2144
    %v2500 = vunpack.c.h.b16 %v2144
    %v2501 = vpack.c.b16 %v2439, %v2437
    %v2502 = vpack.c.b16 %v2440, %v2438
    %v2503 = vpack.c.b16 %v2443, %v2441
    %v2504 = vpack.c.b16 %v2444, %v2442
    %v2505 = vpack.c.b16 %v2447, %v2445
    %v2506 = vpack.c.b16 %v2448, %v2446
    %v2507 = vpack.c.b16 %v2451, %v2449
    %v2508 = vpack.c.b16 %v2452, %v2450
    %v2509 = vpack.c.b16 %v2455, %v2453
    %v2510 = vpack.c.b16 %v2456, %v2454
    %v2511 = vpack.c.b16 %v2459, %v2457
    %v2512 = vpack.c.b16 %v2460, %v2458
    %v2513 = vpack.c.b16 %v2463, %v2461
    %v2514 = vpack.c.b16 %v2464, %v2462
    %v2515 = vpack.c.b16 %v2467, %v2465
    %v2516 = vpack.c.b16 %v2468, %v2466
    %v2517 = vpack.c.b16 %v2471, %v2469
    %v2518 = vpack.c.b16 %v2472, %v2470
    %v2519 = vpack.c.b16 %v2475, %v2473
    %v2520 = vpack.c.b16 %v2476, %v2474
    %v2521 = vpack.c.b16 %v2479, %v2477
    %v2522 = vpack.c.b16 %v2480, %v2478
    %v2523 = vpack.c.b16 %v2483, %v2481
    %v2524 = vpack.c.b16 %v2484, %v2482
    %v2525 = vpack.c.b16 %v2487, %v2485
    %v2526 = vpack.c.b16 %v2488, %v2486
    %v2527 = vpack.c.b16 %v2491, %v2489
    %v2528 = vpack.c.b16 %v2492, %v2490
    %v2529 = vpack.c.b16 %v2495, %v2493
    %v2530 = vpack.c.b16 %v2496, %v2494
    %v2531 = vpack.c.b16 %v2499, %v2497
    %v2532 = vpack.c.b16 %v2500, %v2498
    %2565 = vmatpush.bf16.msra.mxu0 %v2515
    %2566 = vmatpush.bf16.msra.mxu0 %v2513
    %2567 = vmatpush.bf16.msra.mxu0 %v2511
    %2568 = vmatpush.bf16.msra.mxu0 %v2509
    %2569 = vmatpush.bf16.msra.mxu0 %v2507
    %2570 = vmatpush.bf16.msra.mxu0 %v2505
    %2571 = vmatpush.bf16.msra.mxu0 %v2503
    %2572 = vmatpush.bf16.msra.mxu0 %v2501
    %2573 = vmatmul.bf16.gmra.mxu0 %v2401
    %v2574 = vpop.f32.mrf.mxu0
    %v2575 = vadd.f32 %v2360, %v2574
    %v2576 = vpop.f32.mrf.mxu0
    %2577 = vdwg.mxu0
    %2578 = vmatpush.bf16.msra.mxu0 %v2531
    %2579 = vmatpush.bf16.msra.mxu0 %v2529
    %2580 = vmatpush.bf16.msra.mxu0 %v2527
    %2581 = vmatpush.bf16.msra.mxu0 %v2525
    %2582 = vmatpush.bf16.msra.mxu0 %v2523
    %2583 = vmatpush.bf16.msra.mxu0 %v2521
    %2584 = vmatpush.bf16.msra.mxu0 %v2519
    %2585 = vmatpush.bf16.msra.mxu0 %v2517
    %2586 = vmatmul.bf16.gmra.mxu0 %v2402
    %v2587 = vpop.f32.mrf.mxu0
    %v2588 = vadd.f32 %v2575, %v2587
    %v2589 = vpop.f32.mrf.mxu0
    %2590 = vdwg.mxu0
    %2591 = vmatpush.bf16.msra.mxu0 %v2516
    %2592 = vmatpush.bf16.msra.mxu0 %v2514
    %2593 = vmatpush.bf16.msra.mxu0 %v2512
    %2594 = vmatpush.bf16.msra.mxu0 %v2510
    %2595 = vmatpush.bf16.msra.mxu0 %v2508
    %2596 = vmatpush.bf16.msra.mxu0 %v2506
    %2597 = vmatpush.bf16.msra.mxu0 %v2504
    %2598 = vmatpush.bf16.msra.mxu0 %v2502
    %2599 = vmatmul.bf16.gmra.mxu0 %v2401
    %v2600 = vpop.f32.mrf.mxu0
    %v2601 = vadd.f32 %v2386, %v2600
    %v2602 = vpop.f32.mrf.mxu0
    %2603 = vdwg.mxu0
    %2604 = vmatpush.bf16.msra.mxu0 %v2532
    %2605 = vmatpush.bf16.msra.mxu0 %v2530
    %2606 = vmatpush.bf16.msra.mxu0 %v2528
    %2607 = vmatpush.bf16.msra.mxu0 %v2526
    %2608 = vmatpush.bf16.msra.mxu0 %v2524
    %2609 = vmatpush.bf16.msra.mxu0 %v2522
    %2610 = vmatpush.bf16.msra.mxu0 %v2520
    %2611 = vmatpush.bf16.msra.mxu0 %v2518
    %2612 = vmatmul.bf16.gmra.mxu0 %v2402
    %v2613 = vpop.f32.mrf.mxu0
    %v2614 = vadd.f32 %v2601, %v2613
    %v2615 = vpop.f32.mrf.mxu0
    %2616 = vdwg.mxu0
    %v2617 = vtanh.pop %v2588
    %v2618 = vtanh.pop %v2614
    %v2619 = vpack.c.bf16 %v2617, %v2617
    %v2620 = vpack.c.bf16 %v2618, %v2618
    %v2621 = vld [vmem:[#allocation19] sm:$0xff]
    %v2622 = vld [vmem:[#allocation19 + $0x8] sm:$0xff]
    %v2623 = vld [vmem:[#allocation19 + $0x10] sm:$0xff]
    %v2624 = vld [vmem:[#allocation19 + $0x18] sm:$0xff]
    %v2625 = vld [vmem:[#allocation19 + $0x20] sm:$0xff]
    %v2626 = vld [vmem:[#allocation19 + $0x28] sm:$0xff]
    %v2627 = vld [vmem:[#allocation19 + $0x30] sm:$0xff]
    %v2628 = vld [vmem:[#allocation19 + $0x38] sm:$0xff]
    %v2629 = vld [vmem:[#allocation19 + $0x40] sm:$0xff]
    %v2630 = vld [vmem:[#allocation19 + $0x48] sm:$0xff]
    %v2631 = vld [vmem:[#allocation19 + $0x50] sm:$0xff]
    %v2632 = vld [vmem:[#allocation19 + $0x58] sm:$0xff]
    %v2633 = vld [vmem:[#allocation19 + $0x60] sm:$0xff]
    %v2634 = vld [vmem:[#allocation19 + $0x68] sm:$0xff]
    %v2635 = vld [vmem:[#allocation19 + $0x70] sm:$0xff]
    %v2636 = vld [vmem:[#allocation19 + $0x78] sm:$0xff]
    %v2637 = vld [vmem:[#allocation19 + $0x80] sm:$0xff]
    %v2638 = vld [vmem:[#allocation19 + $0x88] sm:$0xff]
    %v2639 = vld [vmem:[#allocation19 + $0x90] sm:$0xff]
    %v2640 = vld [vmem:[#allocation19 + $0x98] sm:$0xff]
    %v2641 = vld [vmem:[#allocation19 + $0xa0] sm:$0xff]
    %v2642 = vld [vmem:[#allocation19 + $0xa8] sm:$0xff]
    %v2643 = vld [vmem:[#allocation19 + $0xb0] sm:$0xff]
    %v2644 = vld [vmem:[#allocation19 + $0xb8] sm:$0xff]
    %v2645 = vld [vmem:[#allocation19 + $0xc0] sm:$0xff]
    %v2646 = vld [vmem:[#allocation19 + $0xc8] sm:$0xff]
    %v2647 = vld [vmem:[#allocation19 + $0xd0] sm:$0xff]
    %v2648 = vld [vmem:[#allocation19 + $0xd8] sm:$0xff]
    %v2649 = vld [vmem:[#allocation19 + $0xe0] sm:$0xff]
    %v2650 = vld [vmem:[#allocation19 + $0xe8] sm:$0xff]
    %v2651 = vld [vmem:[#allocation19 + $0xf0] sm:$0xff]
    %v2652 = vld [vmem:[#allocation19 + $0xf8] sm:$0xff]
    %v2653 = vld [vmem:[%s12] sm:$0x3]
    %v2655 = vperm.slane %v2653, 0
    %v2656 = vperm.slane %v2653, 1
    %v2691 = vunpack.c.l.b16 %v2621
    %v2692 = vunpack.c.h.b16 %v2621
    %v2693 = vunpack.c.l.b16 %v2622
    %v2694 = vunpack.c.h.b16 %v2622
    %v2695 = vunpack.c.l.b16 %v2623
    %v2696 = vunpack.c.h.b16 %v2623
    %v2697 = vunpack.c.l.b16 %v2624
    %v2698 = vunpack.c.h.b16 %v2624
    %v2699 = vunpack.c.l.b16 %v2625
    %v2700 = vunpack.c.h.b16 %v2625
    %v2701 = vunpack.c.l.b16 %v2626
    %v2702 = vunpack.c.h.b16 %v2626
    %v2703 = vunpack.c.l.b16 %v2627
    %v2704 = vunpack.c.h.b16 %v2627
    %v2705 = vunpack.c.l.b16 %v2628
    %v2706 = vunpack.c.h.b16 %v2628
    %v2707 = vunpack.c.l.b16 %v2629
    %v2708 = vunpack.c.h.b16 %v2629
    %v2709 = vunpack.c.l.b16 %v2630
    %v2710 = vunpack.c.h.b16 %v2630
    %v2711 = vunpack.c.l.b16 %v2631
    %v2712 = vunpack.c.h.b16 %v2631
    %v2713 = vunpack.c.l.b16 %v2632
    %v2714 = vunpack.c.h.b16 %v2632
    %v2715 = vunpack.c.l.b16 %v2633
    %v2716 = vunpack.c.h.b16 %v2633
    %v2717 = vunpack.c.l.b16 %v2634
    %v2718 = vunpack.c.h.b16 %v2634
    %v2719 = vunpack.c.l.b16 %v2635
    %v2720 = vunpack.c.h.b16 %v2635
    %v2721 = vunpack.c.l.b16 %v2636
    %v2722 = vunpack.c.h.b16 %v2636
    %v2723 = vunpack.c.l.b16 %v2637
    %v2724 = vunpack.c.h.b16 %v2637
    %v2725 = vunpack.c.l.b16 %v2638
    %v2726 = vunpack.c.h.b16 %v2638
    %v2727 = vunpack.c.l.b16 %v2639
    %v2728 = vunpack.c.h.b16 %v2639
    %v2729 = vunpack.c.l.b16 %v2640
    %v2730 = vunpack.c.h.b16 %v2640
    %v2731 = vunpack.c.l.b16 %v2641
    %v2732 = vunpack.c.h.b16 %v2641
    %v2733 = vunpack.c.l.b16 %v2642
    %v2734 = vunpack.c.h.b16 %v2642
    %v2735 = vunpack.c.l.b16 %v2643
    %v2736 = vunpack.c.h.b16 %v2643
    %v2737 = vunpack.c.l.b16 %v2644
    %v2738 = vunpack.c.h.b16 %v2644
    %v2739 = vunpack.c.l.b16 %v2645
    %v2740 = vunpack.c.h.b16 %v2645
    %v2741 = vunpack.c.l.b16 %v2646
    %v2742 = vunpack.c.h.b16 %v2646
    %v2743 = vunpack.c.l.b16 %v2647
    %v2744 = vunpack.c.h.b16 %v2647
    %v2745 = vunpack.c.l.b16 %v2648
    %v2746 = vunpack.c.h.b16 %v2648
    %v2747 = vunpack.c.l.b16 %v2649
    %v2748 = vunpack.c.h.b16 %v2649
    %v2749 = vunpack.c.l.b16 %v2650
    %v2750 = vunpack.c.h.b16 %v2650
    %v2751 = vunpack.c.l.b16 %v2651
    %v2752 = vunpack.c.h.b16 %v2651
    %v2753 = vunpack.c.l.b16 %v2652
    %v2754 = vunpack.c.h.b16 %v2652
    %v2755 = vpack.c.b16 %v2693, %v2691
    %v2756 = vpack.c.b16 %v2694, %v2692
    %v2757 = vpack.c.b16 %v2697, %v2695
    %v2758 = vpack.c.b16 %v2698, %v2696
    %v2759 = vpack.c.b16 %v2701, %v2699
    %v2760 = vpack.c.b16 %v2702, %v2700
    %v2761 = vpack.c.b16 %v2705, %v2703
    %v2762 = vpack.c.b16 %v2706, %v2704
    %v2763 = vpack.c.b16 %v2709, %v2707
    %v2764 = vpack.c.b16 %v2710, %v2708
    %v2765 = vpack.c.b16 %v2713, %v2711
    %v2766 = vpack.c.b16 %v2714, %v2712
    %v2767 = vpack.c.b16 %v2717, %v2715
    %v2768 = vpack.c.b16 %v2718, %v2716
    %v2769 = vpack.c.b16 %v2721, %v2719
    %v2770 = vpack.c.b16 %v2722, %v2720
    %v2771 = vpack.c.b16 %v2725, %v2723
    %v2772 = vpack.c.b16 %v2726, %v2724
    %v2773 = vpack.c.b16 %v2729, %v2727
    %v2774 = vpack.c.b16 %v2730, %v2728
    %v2775 = vpack.c.b16 %v2733, %v2731
    %v2776 = vpack.c.b16 %v2734, %v2732
    %v2777 = vpack.c.b16 %v2737, %v2735
    %v2778 = vpack.c.b16 %v2738, %v2736
    %v2779 = vpack.c.b16 %v2741, %v2739
    %v2780 = vpack.c.b16 %v2742, %v2740
    %v2781 = vpack.c.b16 %v2745, %v2743
    %v2782 = vpack.c.b16 %v2746, %v2744
    %v2783 = vpack.c.b16 %v2749, %v2747
    %v2784 = vpack.c.b16 %v2750, %v2748
    %v2785 = vpack.c.b16 %v2753, %v2751
    %v2786 = vpack.c.b16 %v2754, %v2752
    %2819 = vmatpush.bf16.msra.mxu0 %v2769
    %2820 = vmatpush.bf16.msra.mxu0 %v2767
    %2821 = vmatpush.bf16.msra.mxu0 %v2765
    %2822 = vmatpush.bf16.msra.mxu0 %v2763
    %2823 = vmatpush.bf16.msra.mxu0 %v2761
    %2824 = vmatpush.bf16.msra.mxu0 %v2759
    %2825 = vmatpush.bf16.msra.mxu0 %v2757
    %2826 = vmatpush.bf16.msra.mxu0 %v2755
    %2827 = vmatmul.bf16.gmra.mxu0 %v2619
    %v2828 = vpop.f32.mrf.mxu0
    %v2829 = vadd.f32 %v2655, %v2828
    %v2830 = vpop.f32.mrf.mxu0
    %2831 = vdwg.mxu0
    %2832 = vmatpush.bf16.msra.mxu0 %v2785
    %2833 = vmatpush.bf16.msra.mxu0 %v2783
    %2834 = vmatpush.bf16.msra.mxu0 %v2781
    %2835 = vmatpush.bf16.msra.mxu0 %v2779
    %2836 = vmatpush.bf16.msra.mxu0 %v2777
    %2837 = vmatpush.bf16.msra.mxu0 %v2775
    %2838 = vmatpush.bf16.msra.mxu0 %v2773
    %2839 = vmatpush.bf16.msra.mxu0 %v2771
    %2840 = vmatmul.bf16.gmra.mxu0 %v2620
    %v2841 = vpop.f32.mrf.mxu0
    %v2842 = vadd.f32 %v2829, %v2841
    %v2843 = vpop.f32.mrf.mxu0
    %2844 = vdwg.mxu0
    %2845 = vmatpush.bf16.msra.mxu0 %v2770
    %2846 = vmatpush.bf16.msra.mxu0 %v2768
    %2847 = vmatpush.bf16.msra.mxu0 %v2766
    %2848 = vmatpush.bf16.msra.mxu0 %v2764
    %2849 = vmatpush.bf16.msra.mxu0 %v2762
    %2850 = vmatpush.bf16.msra.mxu0 %v2760
    %2851 = vmatpush.bf16.msra.mxu0 %v2758
    %2852 = vmatpush.bf16.msra.mxu0 %v2756
    %2853 = vmatmul.bf16.gmra.mxu0 %v2619
    %v2854 = vpop.f32.mrf.mxu0
    %v2855 = vadd.f32 %v2656, %v2854
    %v2856 = vpop.f32.mrf.mxu0
    %2857 = vdwg.mxu0
    %2858 = vmatpush.bf16.msra.mxu0 %v2786
    %2859 = vmatpush.bf16.msra.mxu0 %v2784
    %2860 = vmatpush.bf16.msra.mxu0 %v2782
    %2861 = vmatpush.bf16.msra.mxu0 %v2780
    %2862 = vmatpush.bf16.msra.mxu0 %v2778
    %2863 = vmatpush.bf16.msra.mxu0 %v2776
    %2864 = vmatpush.bf16.msra.mxu0 %v2774
    %2865 = vmatpush.bf16.msra.mxu0 %v2772
    %2866 = vmatmul.bf16.gmra.mxu0 %v2620
    %v2867 = vpop.f32.mrf.mxu0
    %v2868 = vadd.f32 %v2855, %v2867
    %v2869 = vpop.f32.mrf.mxu0
    %2870 = vdwg.mxu0
    %v2871 = vmax.f32 %v2842, 0.0
    %v2872 = vmax.f32 %v2868, 0.0
    %v2873 = vpack.c.bf16 %v2871, %v2871
    %v2874 = vpack.c.bf16 %v2872, %v2872
    %v2875 = vld [vmem:[#allocation20] sm:$0xf]
    %v2876 = vld [vmem:[#allocation20 + $0x4] sm:$0xf]
    %v2877 = vld [vmem:[#allocation20 + $0x8] sm:$0xf]
    %v2878 = vld [vmem:[#allocation20 + $0xc] sm:$0xf]
    %v2879 = vld [vmem:[#allocation20 + $0x10] sm:$0xf]
    %v2880 = vld [vmem:[#allocation20 + $0x14] sm:$0xf]
    %v2881 = vld [vmem:[#allocation20 + $0x18] sm:$0xf]
    %v2882 = vld [vmem:[#allocation20 + $0x1c] sm:$0xf]
    %v2883 = vld [vmem:[#allocation20 + $0x20] sm:$0xf]
    %v2884 = vld [vmem:[#allocation20 + $0x24] sm:$0xf]
    %v2885 = vld [vmem:[#allocation20 + $0x28] sm:$0xf]
    %v2886 = vld [vmem:[#allocation20 + $0x2c] sm:$0xf]
    %v2887 = vld [vmem:[#allocation20 + $0x30] sm:$0xf]
    %v2888 = vld [vmem:[#allocation20 + $0x34] sm:$0xf]
    %v2889 = vld [vmem:[#allocation20 + $0x38] sm:$0xf]
    %v2890 = vld [vmem:[#allocation20 + $0x3c] sm:$0xf]
    %v2891 = vld [vmem:[#allocation20 + $0x40] sm:$0xf]
    %v2892 = vld [vmem:[#allocation20 + $0x44] sm:$0xf]
    %v2893 = vld [vmem:[#allocation20 + $0x48] sm:$0xf]
    %v2894 = vld [vmem:[#allocation20 + $0x4c] sm:$0xf]
    %v2895 = vld [vmem:[#allocation20 + $0x50] sm:$0xf]
    %v2896 = vld [vmem:[#allocation20 + $0x54] sm:$0xf]
    %v2897 = vld [vmem:[#allocation20 + $0x58] sm:$0xf]
    %v2898 = vld [vmem:[#allocation20 + $0x5c] sm:$0xf]
    %v2899 = vld [vmem:[#allocation20 + $0x60] sm:$0xf]
    %v2900 = vld [vmem:[#allocation20 + $0x64] sm:$0xf]
    %v2901 = vld [vmem:[#allocation20 + $0x68] sm:$0xf]
    %v2902 = vld [vmem:[#allocation20 + $0x6c] sm:$0xf]
    %v2903 = vld [vmem:[#allocation20 + $0x70] sm:$0xf]
    %v2904 = vld [vmem:[#allocation20 + $0x74] sm:$0xf]
    %v2905 = vld [vmem:[#allocation20 + $0x78] sm:$0xf]
    %v2906 = vld [vmem:[#allocation20 + $0x7c] sm:$0xf]
    %v2907 = vld [vmem:[%s14] sm:$0x1]
    %v2909 = vperm.slane %v2907, 0
    %v2943 = vunpack.c.l.b16 %v2875
    %v2944 = vunpack.c.l.b16 %v2876
    %v2945 = vunpack.c.l.b16 %v2877
    %v2946 = vunpack.c.l.b16 %v2878
    %v2947 = vunpack.c.l.b16 %v2879
    %v2948 = vunpack.c.l.b16 %v2880
    %v2949 = vunpack.c.l.b16 %v2881
    %v2950 = vunpack.c.l.b16 %v2882
    %v2951 = vunpack.c.l.b16 %v2883
    %v2952 = vunpack.c.l.b16 %v2884
    %v2953 = vunpack.c.l.b16 %v2885
    %v2954 = vunpack.c.l.b16 %v2886
    %v2955 = vunpack.c.l.b16 %v2887
    %v2956 = vunpack.c.l.b16 %v2888
    %v2957 = vunpack.c.l.b16 %v2889
    %v2958 = vunpack.c.l.b16 %v2890
    %v2959 = vunpack.c.l.b16 %v2891
    %v2960 = vunpack.c.l.b16 %v2892
    %v2961 = vunpack.c.l.b16 %v2893
    %v2962 = vunpack.c.l.b16 %v2894
    %v2963 = vunpack.c.l.b16 %v2895
    %v2964 = vunpack.c.l.b16 %v2896
    %v2965 = vunpack.c.l.b16 %v2897
    %v2966 = vunpack.c.l.b16 %v2898
    %v2967 = vunpack.c.l.b16 %v2899
    %v2968 = vunpack.c.l.b16 %v2900
    %v2969 = vunpack.c.l.b16 %v2901
    %v2970 = vunpack.c.l.b16 %v2902
    %v2971 = vunpack.c.l.b16 %v2903
    %v2972 = vunpack.c.l.b16 %v2904
    %v2973 = vunpack.c.l.b16 %v2905
    %v2974 = vunpack.c.l.b16 %v2906
    %v2975 = vpack.c.b16 %v2944, %v2943
    %v2976 = vpack.c.b16 %v2946, %v2945
    %v2977 = vpack.c.b16 %v2948, %v2947
    %v2978 = vpack.c.b16 %v2950, %v2949
    %v2979 = vpack.c.b16 %v2952, %v2951
    %v2980 = vpack.c.b16 %v2954, %v2953
    %v2981 = vpack.c.b16 %v2956, %v2955
    %v2982 = vpack.c.b16 %v2958, %v2957
    %v2983 = vpack.c.b16 %v2960, %v2959
    %v2984 = vpack.c.b16 %v2962, %v2961
    %v2985 = vpack.c.b16 %v2964, %v2963
    %v2986 = vpack.c.b16 %v2966, %v2965
    %v2987 = vpack.c.b16 %v2968, %v2967
    %v2988 = vpack.c.b16 %v2970, %v2969
    %v2989 = vpack.c.b16 %v2972, %v2971
    %v2990 = vpack.c.b16 %v2974, %v2973
    %3007 = vmatpush.bf16.msra.mxu0 %v2982
    %3008 = vmatpush.bf16.msra.mxu0 %v2981
    %3009 = vmatpush.bf16.msra.mxu0 %v2980
    %3010 = vmatpush.bf16.msra.mxu0 %v2979
    %3011 = vmatpush.bf16.msra.mxu0 %v2978
    %3012 = vmatpush.bf16.msra.mxu0 %v2977
    %3013 = vmatpush.bf16.msra.mxu0 %v2976
    %3014 = vmatpush.bf16.msra.mxu0 %v2975
    %3015 = vmatmul.bf16.gmra.mxu0 %v2873
    %v3016 = vpop.f32.mrf.mxu0
    %v3017 = vadd.f32 %v2909, %v3016
    %v3018 = vpop.f32.mrf.mxu0
    %3019 = vdwg.mxu0
    %3020 = vmatpush.bf16.msra.mxu0 %v2990
    %3021 = vmatpush.bf16.msra.mxu0 %v2989
    %3022 = vmatpush.bf16.msra.mxu0 %v2988
    %3023 = vmatpush.bf16.msra.mxu0 %v2987
    %3024 = vmatpush.bf16.msra.mxu0 %v2986
    %3025 = vmatpush.bf16.msra.mxu0 %v2985
    %3026 = vmatpush.bf16.msra.mxu0 %v2984
    %3027 = vmatpush.bf16.msra.mxu0 %v2983
    %3028 = vmatmul.bf16.gmra.mxu0 %v2874
    %v3029 = vpop.f32.mrf.mxu0
    %v3030 = vadd.f32 %v3017, %v3029
    %v3031 = vpop.f32.mrf.mxu0
    %3032 = vdwg.mxu0
    %v3033 = vmax.f32 %v3030, 0.0
    %v3034 = vpack.c.bf16 %v3033, %v3033
    %v3035 = vld [vmem:[#allocation22] sm:$0xf]
    %v3036 = vld [vmem:[#allocation22 + $0x4] sm:$0xf]
    %v3037 = vld [vmem:[#allocation22 + $0x8] sm:$0xf]
    %v3038 = vld [vmem:[#allocation22 + $0xc] sm:$0xf]
    %v3039 = vld [vmem:[#allocation22 + $0x10] sm:$0xf]
    %v3040 = vld [vmem:[#allocation22 + $0x14] sm:$0xf]
    %v3041 = vld [vmem:[#allocation22 + $0x18] sm:$0xf]
    %v3042 = vld [vmem:[#allocation22 + $0x1c] sm:$0xf]
    %v3043 = vld [vmem:[#allocation22 + $0x20] sm:$0xf]
    %v3044 = vld [vmem:[#allocation22 + $0x24] sm:$0xf]
    %v3045 = vld [vmem:[#allocation22 + $0x28] sm:$0xf]
    %v3046 = vld [vmem:[#allocation22 + $0x2c] sm:$0xf]
    %v3047 = vld [vmem:[#allocation22 + $0x30] sm:$0xf]
    %v3048 = vld [vmem:[#allocation22 + $0x34] sm:$0xf]
    %v3049 = vld [vmem:[#allocation22 + $0x38] sm:$0xf]
    %v3050 = vld [vmem:[#allocation22 + $0x3c] sm:$0xf]
    %v3051 = vld [vmem:[%s16] sm:$0x1]
    %v3053 = vperm.slane %v3051, 0
    %v3071 = vunpack.c.l.b16 %v3035
    %v3072 = vunpack.c.l.b16 %v3036
    %v3073 = vunpack.c.l.b16 %v3037
    %v3074 = vunpack.c.l.b16 %v3038
    %v3075 = vunpack.c.l.b16 %v3039
    %v3076 = vunpack.c.l.b16 %v3040
    %v3077 = vunpack.c.l.b16 %v3041
    %v3078 = vunpack.c.l.b16 %v3042
    %v3079 = vunpack.c.l.b16 %v3043
    %v3080 = vunpack.c.l.b16 %v3044
    %v3081 = vunpack.c.l.b16 %v3045
    %v3082 = vunpack.c.l.b16 %v3046
    %v3083 = vunpack.c.l.b16 %v3047
    %v3084 = vunpack.c.l.b16 %v3048
    %v3085 = vunpack.c.l.b16 %v3049
    %v3086 = vunpack.c.l.b16 %v3050
    %v3087 = vpack.c.b16 %v3072, %v3071
    %v3088 = vpack.c.b16 %v3074, %v3073
    %v3089 = vpack.c.b16 %v3076, %v3075
    %v3090 = vpack.c.b16 %v3078, %v3077
    %v3091 = vpack.c.b16 %v3080, %v3079
    %v3092 = vpack.c.b16 %v3082, %v3081
    %v3093 = vpack.c.b16 %v3084, %v3083
    %v3094 = vpack.c.b16 %v3086, %v3085
    %3103 = vmatpush.bf16.msra.mxu0 %v3094
    %3104 = vmatpush.bf16.msra.mxu0 %v3093
    %3105 = vmatpush.bf16.msra.mxu0 %v3092
    %3106 = vmatpush.bf16.msra.mxu0 %v3091
    %3107 = vmatpush.bf16.msra.mxu0 %v3090
    %3108 = vmatpush.bf16.msra.mxu0 %v3089
    %3109 = vmatpush.bf16.msra.mxu0 %v3088
    %3110 = vmatpush.bf16.msra.mxu0 %v3087
    %3111 = vmatmul.bf16.gmra.mxu0 %v3034
    %v3112 = vpop.f32.mrf.mxu0
    %v3113 = vadd.f32 %v3053, %v3112
    %v3114 = vpop.f32.mrf.mxu0
    %3115 = vdwg.mxu0
    %v3118 = vrot.slane %v1623, 6
    %vm3119 = vcmask 1041408
    %v3120 = vsel %vm3119, %v1622, %v3118
    %3122 = vst [vmem:[#allocation23] sm:$0xf] %v3120
    %v3125 = vrot.slane %v1619, 6
    %v3126 = vsel %vm3119, %v1618, %v3125
    %3128 = vst [vmem:[#allocation24] sm:$0xf] %v3126
    %3129 = vst [vmem:[#allocation26] sm:$0x3] %v3113
    // Predicated region
    $region122: #{tpu_custom_call.1} parent=1 // pred_check
      _
    $region123: #{tpu_custom_call.1} parent=1 // pred_check_branch
      %3131 = sbr.rel (0) target = $region125
    $region124: #{tpu_custom_call.1} parent=1 // pred_region
      %3133 = vsyncadd [#allocation4], 0
      %s3135 = sshll.u32 [#allocation23], 4
      %s3136 = int_to_ptr.vmem [resolvable:$true] %s3135
      %s3137 = sshll.u32 %s17, 4
      %s3138 = int_to_ptr.hbm [resolvable:$true] %s3137
      %3140 = dma.vmem_to_hbm [thread:$0]  %s3136, 64, %s3138, [#allocation4]
    $region125: #{tpu_custom_call.1} parent=1 // pred_fallthru
      _
    // Predicated region
    $region126: #{tpu_custom_call.1} parent=1 // pred_check
      _
    $region127: #{tpu_custom_call.1} parent=1 // pred_check_branch
      %3142 = sbr.rel (0) target = $region129
    $region128: #{tpu_custom_call.1} parent=1 // pred_region
      %3144 = vsyncadd [#allocation25], 0
      %s3146 = sshll.u32 [#allocation24], 4
      %s3147 = int_to_ptr.vmem [resolvable:$true] %s3146
      %s3148 = sshll.u32 %s18, 4
      %s3149 = int_to_ptr.hbm [resolvable:$true] %s3148
      %3151 = dma.vmem_to_hbm [thread:$0]  %s3147, 64, %s3149, [#allocation25]
    $region129: #{tpu_custom_call.1} parent=1 // pred_fallthru
      _
    // Predicated region
    $region130: #{tpu_custom_call.1} parent=1 // pred_check
      _
    $region131: #{tpu_custom_call.1} parent=1 // pred_check_branch
      %3153 = sbr.rel (0) target = $region133
    $region132: #{tpu_custom_call.1} parent=1 // pred_region
      %3155 = vsyncadd [#allocation25], 0
      %s3157 = sshll.u32 [#allocation26], 4
      %s3158 = int_to_ptr.vmem [resolvable:$true] %s3157
      %s3159 = sshll.u32 %s19, 4
      %s3160 = int_to_ptr.hbm [resolvable:$true] %s3159
      %3162 = dma.vmem_to_hbm [thread:$0]  %s3158, 32, %s3160, [#allocation25]
    $region133: #{tpu_custom_call.1} parent=1 // pred_fallthru
      _
    // Predicated region
    $region134: #{tpu_custom_call.1} parent=1 // pred_check
      _
    $region135: #{tpu_custom_call.1} parent=1 // pred_check_branch
      %3164 = sbr.rel (0) target = $region137
    $region136: #{tpu_custom_call.1} parent=1 // pred_region
      %3166 = dma.done [#allocation4], 64
    $region137: #{tpu_custom_call.1} parent=1 // pred_fallthru
      _
    // Predicated region
    $region138: #{tpu_custom_call.1} parent=1 // pred_check
      _
    $region139: #{tpu_custom_call.1} parent=1 // pred_check_branch
      %3168 = sbr.rel (0) target = $region141
    $region140: #{tpu_custom_call.1} parent=1 // pred_region
      %3170 = dma.done [#allocation25], 64
    $region141: #{tpu_custom_call.1} parent=1 // pred_fallthru
      _
    // Predicated region
    $region142: #{tpu_custom_call.1} parent=1 // pred_check
      _
    $region143: #{tpu_custom_call.1} parent=1 // pred_check_branch
      %3172 = sbr.rel (0) target = $region145
    $region144: #{tpu_custom_call.1} parent=1 // pred_region
      %3174 = dma.done [#allocation25], 32
    $region145: #{tpu_custom_call.1} parent=1 // pred_fallthru
      _
    %3175 = vsyncpa [#allocation3], 1
    %3176 = vsyncpa [#allocation6], 1
    %3177 = vsyncpa [#allocation9], 1
    %3178 = vsyncpa [#allocation12], 1
    %3179 = vsyncpa [#allocation15], 1
    %3180 = vsyncpa [#allocation18], 1
    %3181 = vsyncpa [#allocation21], 1
    %3182 = vsyncpa [#allocation4], 1
    %3183 = vsyncpa [#allocation25], 1

</llo_original>
